<compile_context>
chip_gen: v5e
topology: v5e:2x2
jax: 0.10.0
libtpu: 0.0.40
codegen_flags: <defaults>
</compile_context>

<pallas_src>
import functools

import jax
import jax.numpy as jnp
from jax import lax
from jax.experimental import pallas as pl
from jax.experimental.pallas import tpu as pltpu

_LN_EPS = 1e-5


def _layernorm(x, gamma, beta):
    # x: (tn, d); gamma/beta: (1, d)
    mean = jnp.mean(x, axis=-1, keepdims=True)
    xc = x - mean
    var = jnp.mean(xc * xc, axis=-1, keepdims=True)
    return xc * lax.rsqrt(var + _LN_EPS) * gamma + beta


def _kv_stats_kernel(x_ref, wk_ref, bk_ref, wv_ref, bv_ref,
                     gk_ref, bk_ln_ref, gv_ref, bv_ln_ref,
                     amap_ref, *, nhead, d):
    """Accumulate attn_map[b, h] = LN(K_h)^T @ LN(V_h) over sequence tiles."""
    j = pl.program_id(1)

    @pl.when(j == 0)
    def _():
        amap_ref[...] = jnp.zeros_like(amap_ref)

    x = x_ref[0]                                                # (tn, Cin)
    k = jnp.dot(x, wk_ref[...], preferred_element_type=jnp.float32) + bk_ref[...]
    v = jnp.dot(x, wv_ref[...], preferred_element_type=jnp.float32) + bv_ref[...]

    for i in range(nhead):                                      # static unroll
        k_h = _layernorm(k[:, i * d:(i + 1) * d],
                         gk_ref[i:i + 1, :], bk_ln_ref[i:i + 1, :])
        v_h = _layernorm(v[:, i * d:(i + 1) * d],
                         gv_ref[i:i + 1, :], bv_ln_ref[i:i + 1, :])
        # (d, d): contract over the sequence axis on the MXU (no explicit .T).
        amap_ref[0, i] = amap_ref[0, i] + lax.dot_general(
            k_h, v_h, (((0,), (0,)), ((), ())),
            preferred_element_type=jnp.float32)


def _q_apply_kernel(x_ref, amap_ref, wq_ref, bq_ref, wo_ref, bo_ref, out_ref,
                    *, nhead, d, inv_n):
    """out = (concat_h Q_h @ attn_map[b, h]) @ Wo + bo, scaled by 1/n."""
    x = x_ref[0]                                                # (tn, Cin)
    q = jnp.dot(x, wq_ref[...], preferred_element_type=jnp.float32) + bq_ref[...]
    tn = q.shape[0]
    dout = out_ref.shape[-1]
    acc = jnp.zeros((tn, dout), jnp.float32)
    for i in range(nhead):                                      # static unroll
        q_h = q[:, i * d:(i + 1) * d]                           # (tn, d)
        ao = jnp.dot(q_h, amap_ref[0, i],
                     preferred_element_type=jnp.float32)        # (tn, d)
        acc = acc + jnp.dot(ao, wo_ref[i * d:(i + 1) * d, :],
                            preferred_element_type=jnp.float32)
    out_ref[0] = ((acc + bo_ref[...]) * inv_n).astype(out_ref.dtype)


def _pick_seq_tile(n, max_tile=512):
    """Largest sequence tile <= max_tile that divides n (sublane aligned)."""
    if n <= max_tile:
        return n
    for t in range(max_tile, 7, -1):
        if n % t == 0 and t % 8 == 0:
            return t
    return n


def _full_spec(arr):
    """BlockSpec covering the full array, resident across the whole grid."""
    zeros = (0,) * arr.ndim
    return pl.BlockSpec(arr.shape, lambda b, j: zeros)


class GalerkinAttention1dPallas:
    """JAX/Pallas port of the PyTorch GalerkinAttention1d module.

    Input  v : (B, n, in_channels)  float32
    Output   : (B, n, out_channels) float32
    """

    def __init__(self, in_channels, out_channels, nhead=5, *, key):
        self.in_channels = in_channels
        self.out_channels = out_channels
        self.nhead = nhead
        h_dim = out_channels * nhead

        def linear(key, fan_in, fan_out):
            # matches torch.nn.Linear default init bounds (U(-1/sqrt(fan_in), .))
            kw, kb = jax.random.split(key)
            bound = 1.0 / (fan_in ** 0.5)
            w = jax.random.uniform(kw, (fan_in, fan_out), jnp.float32,
                                   -bound, bound)     # stored pre-transposed
            b = jax.random.uniform(kb, (1, fan_out), jnp.float32, -bound, bound)
            return w, b

        kq, kk, kv, ko = jax.random.split(key, 4)
        self.wq_t, self.bq = linear(kq, in_channels, h_dim)
        self.wk_t, self.bk = linear(kk, in_channels, h_dim)
        self.wv_t, self.bv = linear(kv, in_channels, h_dim)
        self.wo_t, self.bo = linear(ko, h_dim, out_channels)

        # Per-head LayerNorm params (LnK / LnV), prepared once (hoisted out of
        # the forward pass per the perf review).
        self.gk = jnp.ones((nhead, out_channels), jnp.float32)
        self.bk_ln = jnp.zeros((nhead, out_channels), jnp.float32)
        self.gv = jnp.ones((nhead, out_channels), jnp.float32)
        self.bv_ln = jnp.zeros((nhead, out_channels), jnp.float32)

    def __call__(self, v, *, seq_tile=None):
        B, n, cin = v.shape
        d = self.out_channels
        h = self.nhead
        hd = h * d
        if seq_tile is None or n % seq_tile != 0:
            seq_tile = _pick_seq_tile(n)
        tn = seq_tile
        sn = n // tn
        inv_n = 1.0 / float(n)

        x_spec = pl.BlockSpec((1, tn, cin), lambda b, j: (b, j, 0))
        amap_spec = pl.BlockSpec((1, h, d, d), lambda b, j: (b, 0, 0, 0))
        out_spec = pl.BlockSpec((1, tn, d), lambda b, j: (b, j, 0))

        # ---- pass 1: attn_map[b, h] = LN(K_h)^T LN(V_h), reduced over seq tiles
        flops1 = int(4 * B * n * cin * hd + 2 * B * n * hd * d + 10 * B * n * hd)
        bytes1 = int(4 * (B * n * cin + 2 * cin * hd + 2 * hd
                          + 4 * h * d + B * h * d * d))
        attn_map = pl.pallas_call(
            functools.partial(_kv_stats_kernel, nhead=h, d=d),
            out_shape=jax.ShapeDtypeStruct((B, h, d, d), jnp.float32),
            grid=(B, sn),
            in_specs=[x_spec,
                      _full_spec(self.wk_t), _full_spec(self.bk),
                      _full_spec(self.wv_t), _full_spec(self.bv),
                      _full_spec(self.gk), _full_spec(self.bk_ln),
                      _full_spec(self.gv), _full_spec(self.bv_ln)],
            out_specs=amap_spec,
            compiler_params=pltpu.CompilerParams(
                dimension_semantics=("parallel", "arbitrary")),
            cost_estimate=pl.CostEstimate(
                flops=flops1, transcendentals=int(2 * B * n * h),
                bytes_accessed=bytes1),
        )(v, self.wk_t, self.bk, self.wv_t, self.bv,
          self.gk, self.bk_ln, self.gv, self.bv_ln)

        # ---- pass 2: out = (concat_h Q_h @ attn_map_h) @ Wo + bo, scaled 1/n
        flops2 = int(2 * B * n * cin * hd + 4 * B * n * hd * d)
        bytes2 = int(4 * (B * n * cin + B * h * d * d + cin * hd + hd
                          + hd * d + d + B * n * d))
        out = pl.pallas_call(
            functools.partial(_q_apply_kernel, nhead=h, d=d, inv_n=inv_n),
            out_shape=jax.ShapeDtypeStruct((B, n, d), jnp.float32),
            grid=(B, sn),
            in_specs=[x_spec, amap_spec,
                      _full_spec(self.wq_t), _full_spec(self.bq),
                      _full_spec(self.wo_t), _full_spec(self.bo)],
            out_specs=out_spec,
            compiler_params=pltpu.CompilerParams(
                dimension_semantics=("parallel", "parallel")),
            cost_estimate=pl.CostEstimate(
                flops=flops2, transcendentals=0, bytes_accessed=bytes2),
        )(v, attn_map, self.wq_t, self.bq, self.wo_t, self.bo)
        return out


def _reference_forward(mod, v):
    """Pure-JAX (no Pallas) reference matching the PyTorch module."""
    B, n, _ = v.shape
    d, h = mod.out_channels, mod.nhead
    hp = jax.lax.Precision.HIGHEST

    q = jnp.matmul(v, mod.wq_t, precision=hp) + mod.bq        # (B, n, h*d)
    k = jnp.matmul(v, mod.wk_t, precision=hp) + mod.bk
    w = jnp.matmul(v, mod.wv_t, precision=hp) + mod.bv

    def heads(x):                                             # 'b l (h d) -> b h l d'
        return x.reshape(B, n, h, d).transpose(0, 2, 1, 3)

    q, k, w = heads(q), heads(k), heads(w)

    def ln(x, g, b):
        mean = x.mean(-1, keepdims=True)
        var = ((x - mean) ** 2).mean(-1, keepdims=True)
        return (x - mean) / jnp.sqrt(var + _LN_EPS) * g + b

    k = jnp.stack([ln(k[:, i], mod.gk[i], mod.bk_ln[i]) for i in range(h)], 1)
    w = jnp.stack([ln(w[:, i], mod.gv[i], mod.bv_ln[i]) for i in range(h)], 1)

    amap = jnp.einsum('bhmd,bhmc->bhdc', k, w, precision=hp)
    ao = jnp.einsum('bhld,bhdc->bhlc', q, amap, precision=hp)
    ao = ao.transpose(0, 2, 1, 3).reshape(B, n, h * d)        # 'b h l d -> b l (h d)'
    out = jnp.matmul(ao, mod.wo_t, precision=hp) + mod.bo
    return out / n


if __name__ == "__main__":
    key = jax.random.PRNGKey(0)
    k_params, k_x = jax.random.split(key)

    # Small demo shapes, chosen so the lane axis is dense (h*d = 512, d = 128).
    B, n = 2, 256
    in_channels, out_channels, nhead = 64, 128, 4

    mod = GalerkinAttention1dPallas(in_channels, out_channels, nhead,
                                    key=k_params)
    v = jax.random.normal(k_x, (B, n, in_channels), dtype=jnp.float32)

    out = jax.block_until_ready(mod(v, seq_tile=128))   # 2 sequence tiles
    ref = jax.block_until_ready(_reference_forward(mod, v))

    assert out.shape == (B, n, out_channels), out.shape
    max_err = float(jnp.max(jnp.abs(out - ref)))
    assert jnp.allclose(out, ref, atol=5e-3, rtol=5e-3), max_err

    print("KERNEL_OK")
</pallas_src>

<mosaic_0001>
module attributes {stable_mosaic.version = 11 : i64} {
  func.func @_kv_stats_kernel(%arg0: i32, %arg1: i32, %arg2: memref<1x128x64xf32, #tpu.memory_space<vmem>>, %arg3: memref<64x512xf32, #tpu.memory_space<vmem>>, %arg4: memref<1x512xf32, #tpu.memory_space<vmem>>, %arg5: memref<64x512xf32, #tpu.memory_space<vmem>>, %arg6: memref<1x512xf32, #tpu.memory_space<vmem>>, %arg7: memref<4x128xf32, #tpu.memory_space<vmem>>, %arg8: memref<4x128xf32, #tpu.memory_space<vmem>>, %arg9: memref<4x128xf32, #tpu.memory_space<vmem>>, %arg10: memref<4x128xf32, #tpu.memory_space<vmem>>, %arg11: memref<1x4x128x128xf32, #tpu.memory_space<vmem>>) attributes {dimension_semantics = [#tpu.dimension_semantics<parallel>, #tpu.dimension_semantics<arbitrary>], iteration_bounds = array<i64: 2, 2>, scalar_prefetch = 0 : i64, scratch_operands = 0 : i64, tpu.core_type = #tpu.core_type<tc>, window_params = [{transform_indices = @transform_0, window_bounds = array<i64: 1, 128, 64>}, {pipeline_mode = #tpu.pipeline_mode<synchronous>, transform_indices = @transform_1, window_bounds = array<i64: 64, 512>}, {pipeline_mode = #tpu.pipeline_mode<synchronous>, transform_indices = @transform_2, window_bounds = array<i64: 1, 512>}, {pipeline_mode = #tpu.pipeline_mode<synchronous>, transform_indices = @transform_3, window_bounds = array<i64: 64, 512>}, {pipeline_mode = #tpu.pipeline_mode<synchronous>, transform_indices = @transform_4, window_bounds = array<i64: 1, 512>}, {pipeline_mode = #tpu.pipeline_mode<synchronous>, transform_indices = @transform_5, window_bounds = array<i64: 4, 128>}, {pipeline_mode = #tpu.pipeline_mode<synchronous>, transform_indices = @transform_6, window_bounds = array<i64: 4, 128>}, {pipeline_mode = #tpu.pipeline_mode<synchronous>, transform_indices = @transform_7, window_bounds = array<i64: 4, 128>}, {pipeline_mode = #tpu.pipeline_mode<synchronous>, transform_indices = @transform_8, window_bounds = array<i64: 4, 128>}, {transform_indices = @transform_9, window_bounds = array<i64: 1, 4, 128, 128>}]} {
    %c0_i32 = arith.constant 0 : i32
    %0 = arith.cmpi eq, %arg1, %c0_i32 : i32
    %1 = arith.extui %0 : i1 to i32
    %c0_i32_0 = arith.constant 0 : i32
    %2 = arith.cmpi ne, %1, %c0_i32_0 : i32
    scf.if %2 {
      %cst_117 = arith.constant 0.000000e+00 : f32
      %227 = vector.broadcast %cst_117 : f32 to vector<1x4x128x128xf32>
      %c0_118 = arith.constant 0 : index
      %c0_119 = arith.constant 0 : index
      %c0_120 = arith.constant 0 : index
      %c0_121 = arith.constant 0 : index
      %228 = vector.load %arg11[%c0_118, %c0_119, %c0_120, %c0_121] : memref<1x4x128x128xf32, #tpu.memory_space<vmem>>, vector<1x4x128x128xf32>
      tpu.vector_store %arg11[%c0_118, %c0_119, %c0_120, %c0_121], %227 {strides = array<i32>} : memref<1x4x128x128xf32, #tpu.memory_space<vmem>>, vector<1x4x128x128xf32>,
    } else {
    }
    %c0 = arith.constant 0 : index
    %c0_1 = arith.constant 0 : index
    %c0_2 = arith.constant 0 : index
    %3 = vector.load %arg2[%c0, %c0_1, %c0_2] : memref<1x128x64xf32, #tpu.memory_space<vmem>>, vector<1x128x64xf32>
    %4 = vector.shape_cast %3 : vector<1x128x64xf32> to vector<128x64xf32>
    %c0_3 = arith.constant 0 : index
    %c0_4 = arith.constant 0 : index
    %5 = vector.load %arg3[%c0_3, %c0_4] : memref<64x512xf32, #tpu.memory_space<vmem>>, vector<64x512xf32>
    %cst = arith.constant dense<0.000000e+00> : vector<128x512xf32>
    %6 = tpu.matmul %4, %5, %cst {dimension_numbers = #tpu.dot_dimension_numbers<[1], [0], [0], [1], [0, 0, 1, 1], [], []>} : vector<128x64xf32>, vector<64x512xf32>, vector<128x512xf32> -> vector<128x512xf32>
    %c0_5 = arith.constant 0 : index
    %c0_6 = arith.constant 0 : index
    %7 = vector.load %arg4[%c0_5, %c0_6] : memref<1x512xf32, #tpu.memory_space<vmem>>, vector<1x512xf32>
    %8 = vector.broadcast %7 : vector<1x512xf32> to vector<128x512xf32>
    %9 = arith.addf %6, %8 : vector<128x512xf32>
    %c0_7 = arith.constant 0 : index
    %c0_8 = arith.constant 0 : index
    %10 = vector.load %arg5[%c0_7, %c0_8] : memref<64x512xf32, #tpu.memory_space<vmem>>, vector<64x512xf32>
    %cst_9 = arith.constant dense<0.000000e+00> : vector<128x512xf32>
    %11 = tpu.matmul %4, %10, %cst_9 {dimension_numbers = #tpu.dot_dimension_numbers<[1], [0], [0], [1], [0, 0, 1, 1], [], []>} : vector<128x64xf32>, vector<64x512xf32>, vector<128x512xf32> -> vector<128x512xf32>
    %c0_10 = arith.constant 0 : index
    %c0_11 = arith.constant 0 : index
    %12 = vector.load %arg6[%c0_10, %c0_11] : memref<1x512xf32, #tpu.memory_space<vmem>>, vector<1x512xf32>
    %13 = vector.broadcast %12 : vector<1x512xf32> to vector<128x512xf32>
    %14 = arith.addf %11, %13 : vector<128x512xf32>
    %15 = vector.extract_strided_slice %9 {offsets = [0, 0], sizes = [128, 128], strides = [1, 1]} : vector<128x512xf32> to vector<128x128xf32>
    %c0_12 = arith.constant 0 : index
    %c0_13 = arith.constant 0 : index
    %16 = vector.load %arg7[%c0_12, %c0_13] : memref<4x128xf32, #tpu.memory_space<vmem>>, vector<1x128xf32>
    %c0_14 = arith.constant 0 : index
    %c0_15 = arith.constant 0 : index
    %17 = vector.load %arg8[%c0_14, %c0_15] : memref<4x128xf32, #tpu.memory_space<vmem>>, vector<1x128xf32>
    %cst_16 = arith.constant dense<0.000000e+00> : vector<128xf32>
    %18 = vector.multi_reduction <add>, %15, %cst_16 [1] : vector<128x128xf32> to vector<128xf32>
    %19 = vector.shape_cast %18 : vector<128xf32> to vector<128x1xf32>
    %cst_17 = arith.constant 1.280000e+02 : f32
    %20 = vector.broadcast %cst_17 : f32 to vector<128x1xf32>
    %21 = arith.divf %19, %20 : vector<128x1xf32>
    %22 = vector.broadcast %21 : vector<128x1xf32> to vector<128x128xf32>
    %23 = arith.subf %15, %22 : vector<128x128xf32>
    %24 = arith.mulf %23, %23 : vector<128x128xf32>
    %cst_18 = arith.constant dense<0.000000e+00> : vector<128xf32>
    %25 = vector.multi_reduction <add>, %24, %cst_18 [1] : vector<128x128xf32> to vector<128xf32>
    %26 = vector.shape_cast %25 : vector<128xf32> to vector<128x1xf32>
    %cst_19 = arith.constant 1.280000e+02 : f32
    %27 = vector.broadcast %cst_19 : f32 to vector<128x1xf32>
    %28 = arith.divf %26, %27 : vector<128x1xf32>
    %cst_20 = arith.constant 9.99999974E-6 : f32
    %29 = vector.broadcast %cst_20 : f32 to vector<128x1xf32>
    %30 = arith.addf %28, %29 : vector<128x1xf32>
    %31 = math.rsqrt %30 : vector<128x1xf32>
    %32 = vector.broadcast %31 : vector<128x1xf32> to vector<128x128xf32>
    %33 = arith.mulf %23, %32 : vector<128x128xf32>
    %34 = vector.broadcast %16 : vector<1x128xf32> to vector<128x128xf32>
    %35 = arith.mulf %33, %34 : vector<128x128xf32>
    %36 = vector.broadcast %17 : vector<1x128xf32> to vector<128x128xf32>
    %37 = arith.addf %35, %36 : vector<128x128xf32>
    %38 = vector.extract_strided_slice %14 {offsets = [0, 0], sizes = [128, 128], strides = [1, 1]} : vector<128x512xf32> to vector<128x128xf32>
    %c0_21 = arith.constant 0 : index
    %c0_22 = arith.constant 0 : index
    %39 = vector.load %arg9[%c0_21, %c0_22] : memref<4x128xf32, #tpu.memory_space<vmem>>, vector<1x128xf32>
    %c0_23 = arith.constant 0 : index
    %c0_24 = arith.constant 0 : index
    %40 = vector.load %arg10[%c0_23, %c0_24] : memref<4x128xf32, #tpu.memory_space<vmem>>, vector<1x128xf32>
    %cst_25 = arith.constant dense<0.000000e+00> : vector<128xf32>
    %41 = vector.multi_reduction <add>, %38, %cst_25 [1] : vector<128x128xf32> to vector<128xf32>
    %42 = vector.shape_cast %41 : vector<128xf32> to vector<128x1xf32>
    %cst_26 = arith.constant 1.280000e+02 : f32
    %43 = vector.broadcast %cst_26 : f32 to vector<128x1xf32>
    %44 = arith.divf %42, %43 : vector<128x1xf32>
    %45 = vector.broadcast %44 : vector<128x1xf32> to vector<128x128xf32>
    %46 = arith.subf %38, %45 : vector<128x128xf32>
    %47 = arith.mulf %46, %46 : vector<128x128xf32>
    %cst_27 = arith.constant dense<0.000000e+00> : vector<128xf32>
    %48 = vector.multi_reduction <add>, %47, %cst_27 [1] : vector<128x128xf32> to vector<128xf32>
    %49 = vector.shape_cast %48 : vector<128xf32> to vector<128x1xf32>
    %cst_28 = arith.constant 1.280000e+02 : f32
    %50 = vector.broadcast %cst_28 : f32 to vector<128x1xf32>
    %51 = arith.divf %49, %50 : vector<128x1xf32>
    %cst_29 = arith.constant 9.99999974E-6 : f32
    %52 = vector.broadcast %cst_29 : f32 to vector<128x1xf32>
    %53 = arith.addf %51, %52 : vector<128x1xf32>
    %54 = math.rsqrt %53 : vector<128x1xf32>
    %55 = vector.broadcast %54 : vector<128x1xf32> to vector<128x128xf32>
    %56 = arith.mulf %46, %55 : vector<128x128xf32>
    %57 = vector.broadcast %39 : vector<1x128xf32> to vector<128x128xf32>
    %58 = arith.mulf %56, %57 : vector<128x128xf32>
    %59 = vector.broadcast %40 : vector<1x128xf32> to vector<128x128xf32>
    %60 = arith.addf %58, %59 : vector<128x128xf32>
    %c0_30 = arith.constant 0 : index
    %c0_31 = arith.constant 0 : index
    %c0_32 = arith.constant 0 : index
    %c0_33 = arith.constant 0 : index
    %61 = vector.load %arg11[%c0_30, %c0_31, %c0_32, %c0_33] : memref<1x4x128x128xf32, #tpu.memory_space<vmem>>, vector<1x1x128x128xf32>
    %62 = vector.shape_cast %61 : vector<1x1x128x128xf32> to vector<128x128xf32>
    %cst_34 = arith.constant dense<0.000000e+00> : vector<128x128xf32>
    %63 = tpu.matmul %37, %60, %cst_34 {dimension_numbers = #tpu.dot_dimension_numbers<[0], [0], [1], [1], [0, 1, 1, 1], [], []>} : vector<128x128xf32>, vector<128x128xf32>, vector<128x128xf32> -> vector<128x128xf32>
    %64 = arith.addf %62, %63 : vector<128x128xf32>
    %c0_35 = arith.constant 0 : index
    %c0_36 = arith.constant 0 : index
    %c0_37 = arith.constant 0 : index
    %c0_38 = arith.constant 0 : index
    %65 = vector.load %arg11[%c0_35, %c0_36, %c0_37, %c0_38] : memref<1x4x128x128xf32, #tpu.memory_space<vmem>>, vector<1x1x128x128xf32>
    %66 = vector.shape_cast %65 : vector<1x1x128x128xf32> to vector<128x128xf32>
    %67 = vector.shape_cast %64 : vector<128x128xf32> to vector<1x1x128x128xf32>
    tpu.vector_store %arg11[%c0_35, %c0_36, %c0_37, %c0_38], %67 {strides = array<i32>} : memref<1x4x128x128xf32, #tpu.memory_space<vmem>>, vector<1x1x128x128xf32>,
    %68 = vector.extract_strided_slice %9 {offsets = [0, 128], sizes = [128, 128], strides = [1, 1]} : vector<128x512xf32> to vector<128x128xf32>
    %c1 = arith.constant 1 : index
    %c0_39 = arith.constant 0 : index
    %69 = vector.load %arg7[%c1, %c0_39] : memref<4x128xf32, #tpu.memory_space<vmem>>, vector<1x128xf32>
    %c1_40 = arith.constant 1 : index
    %c0_41 = arith.constant 0 : index
    %70 = vector.load %arg8[%c1_40, %c0_41] : memref<4x128xf32, #tpu.memory_space<vmem>>, vector<1x128xf32>
    %cst_42 = arith.constant dense<0.000000e+00> : vector<128xf32>
    %71 = vector.multi_reduction <add>, %68, %cst_42 [1] : vector<128x128xf32> to vector<128xf32>
    %72 = vector.shape_cast %71 : vector<128xf32> to vector<128x1xf32>
    %cst_43 = arith.constant 1.280000e+02 : f32
    %73 = vector.broadcast %cst_43 : f32 to vector<128x1xf32>
    %74 = arith.divf %72, %73 : vector<128x1xf32>
    %75 = vector.broadcast %74 : vector<128x1xf32> to vector<128x128xf32>
    %76 = arith.subf %68, %75 : vector<128x128xf32>
    %77 = arith.mulf %76, %76 : vector<128x128xf32>
    %cst_44 = arith.constant dense<0.000000e+00> : vector<128xf32>
    %78 = vector.multi_reduction <add>, %77, %cst_44 [1] : vector<128x128xf32> to vector<128xf32>
    %79 = vector.shape_cast %78 : vector<128xf32> to vector<128x1xf32>
    %cst_45 = arith.constant 1.280000e+02 : f32
    %80 = vector.broadcast %cst_45 : f32 to vector<128x1xf32>
    %81 = arith.divf %79, %80 : vector<128x1xf32>
    %cst_46 = arith.constant 9.99999974E-6 : f32
    %82 = vector.broadcast %cst_46 : f32 to vector<128x1xf32>
    %83 = arith.addf %81, %82 : vector<128x1xf32>
    %84 = math.rsqrt %83 : vector<128x1xf32>
    %85 = vector.broadcast %84 : vector<128x1xf32> to vector<128x128xf32>
    %86 = arith.mulf %76, %85 : vector<128x128xf32>
    %87 = vector.broadcast %69 : vector<1x128xf32> to vector<128x128xf32>
    %88 = arith.mulf %86, %87 : vector<128x128xf32>
    %89 = vector.broadcast %70 : vector<1x128xf32> to vector<128x128xf32>
    %90 = arith.addf %88, %89 : vector<128x128xf32>
    %91 = vector.extract_strided_slice %14 {offsets = [0, 128], sizes = [128, 128], strides = [1, 1]} : vector<128x512xf32> to vector<128x128xf32>
    %c1_47 = arith.constant 1 : index
    %c0_48 = arith.constant 0 : index
    %92 = vector.load %arg9[%c1_47, %c0_48] : memref<4x128xf32, #tpu.memory_space<vmem>>, vector<1x128xf32>
    %c1_49 = arith.constant 1 : index
    %c0_50 = arith.constant 0 : index
    %93 = vector.load %arg10[%c1_49, %c0_50] : memref<4x128xf32, #tpu.memory_space<vmem>>, vector<1x128xf32>
    %cst_51 = arith.constant dense<0.000000e+00> : vector<128xf32>
    %94 = vector.multi_reduction <add>, %91, %cst_51 [1] : vector<128x128xf32> to vector<128xf32>
    %95 = vector.shape_cast %94 : vector<128xf32> to vector<128x1xf32>
    %cst_52 = arith.constant 1.280000e+02 : f32
    %96 = vector.broadcast %cst_52 : f32 to vector<128x1xf32>
    %97 = arith.divf %95, %96 : vector<128x1xf32>
    %98 = vector.broadcast %97 : vector<128x1xf32> to vector<128x128xf32>
    %99 = arith.subf %91, %98 : vector<128x128xf32>
    %100 = arith.mulf %99, %99 : vector<128x128xf32>
    %cst_53 = arith.constant dense<0.000000e+00> : vector<128xf32>
    %101 = vector.multi_reduction <add>, %100, %cst_53 [1] : vector<128x128xf32> to vector<128xf32>
    %102 = vector.shape_cast %101 : vector<128xf32> to vector<128x1xf32>
    %cst_54 = arith.constant 1.280000e+02 : f32
    %103 = vector.broadcast %cst_54 : f32 to vector<128x1xf32>
    %104 = arith.divf %102, %103 : vector<128x1xf32>
    %cst_55 = arith.constant 9.99999974E-6 : f32
    %105 = vector.broadcast %cst_55 : f32 to vector<128x1xf32>
    %106 = arith.addf %104, %105 : vector<128x1xf32>
    %107 = math.rsqrt %106 : vector<128x1xf32>
    %108 = vector.broadcast %107 : vector<128x1xf32> to vector<128x128xf32>
    %109 = arith.mulf %99, %108 : vector<128x128xf32>
    %110 = vector.broadcast %92 : vector<1x128xf32> to vector<128x128xf32>
    %111 = arith.mulf %109, %110 : vector<128x128xf32>
    %112 = vector.broadcast %93 : vector<1x128xf32> to vector<128x128xf32>
    %113 = arith.addf %111, %112 : vector<128x128xf32>
    %c0_56 = arith.constant 0 : index
    %c1_57 = arith.constant 1 : index
    %c0_58 = arith.constant 0 : index
    %c0_59 = arith.constant 0 : index
    %114 = vector.load %arg11[%c0_56, %c1_57, %c0_58, %c0_59] : memref<1x4x128x128xf32, #tpu.memory_space<vmem>>, vector<1x1x128x128xf32>
    %115 = vector.shape_cast %114 : vector<1x1x128x128xf32> to vector<128x128xf32>
    %cst_60 = arith.constant dense<0.000000e+00> : vector<128x128xf32>
    %116 = tpu.matmul %90, %113, %cst_60 {dimension_numbers = #tpu.dot_dimension_numbers<[0], [0], [1], [1], [0, 1, 1, 1], [], []>} : vector<128x128xf32>, vector<128x128xf32>, vector<128x128xf32> -> vector<128x128xf32>
    %117 = arith.addf %115, %116 : vector<128x128xf32>
    %c0_61 = arith.constant 0 : index
    %c1_62 = arith.constant 1 : index
    %c0_63 = arith.constant 0 : index
    %c0_64 = arith.constant 0 : index
    %118 = vector.load %arg11[%c0_61, %c1_62, %c0_63, %c0_64] : memref<1x4x128x128xf32, #tpu.memory_space<vmem>>, vector<1x1x128x128xf32>
    %119 = vector.shape_cast %118 : vector<1x1x128x128xf32> to vector<128x128xf32>
    %120 = vector.shape_cast %117 : vector<128x128xf32> to vector<1x1x128x128xf32>
    tpu.vector_store %arg11[%c0_61, %c1_62, %c0_63, %c0_64], %120 {strides = array<i32>} : memref<1x4x128x128xf32, #tpu.memory_space<vmem>>, vector<1x1x128x128xf32>,
    %121 = vector.extract_strided_slice %9 {offsets = [0, 256], sizes = [128, 128], strides = [1, 1]} : vector<128x512xf32> to vector<128x128xf32>
    %c2 = arith.constant 2 : index
    %c0_65 = arith.constant 0 : index
    %122 = vector.load %arg7[%c2, %c0_65] : memref<4x128xf32, #tpu.memory_space<vmem>>, vector<1x128xf32>
    %c2_66 = arith.constant 2 : index
    %c0_67 = arith.constant 0 : index
    %123 = vector.load %arg8[%c2_66, %c0_67] : memref<4x128xf32, #tpu.memory_space<vmem>>, vector<1x128xf32>
    %cst_68 = arith.constant dense<0.000000e+00> : vector<128xf32>
    %124 = vector.multi_reduction <add>, %121, %cst_68 [1] : vector<128x128xf32> to vector<128xf32>
    %125 = vector.shape_cast %124 : vector<128xf32> to vector<128x1xf32>
    %cst_69 = arith.constant 1.280000e+02 : f32
    %126 = vector.broadcast %cst_69 : f32 to vector<128x1xf32>
    %127 = arith.divf %125, %126 : vector<128x1xf32>
    %128 = vector.broadcast %127 : vector<128x1xf32> to vector<128x128xf32>
    %129 = arith.subf %121, %128 : vector<128x128xf32>
    %130 = arith.mulf %129, %129 : vector<128x128xf32>
    %cst_70 = arith.constant dense<0.000000e+00> : vector<128xf32>
    %131 = vector.multi_reduction <add>, %130, %cst_70 [1] : vector<128x128xf32> to vector<128xf32>
    %132 = vector.shape_cast %131 : vector<128xf32> to vector<128x1xf32>
    %cst_71 = arith.constant 1.280000e+02 : f32
    %133 = vector.broadcast %cst_71 : f32 to vector<128x1xf32>
    %134 = arith.divf %132, %133 : vector<128x1xf32>
    %cst_72 = arith.constant 9.99999974E-6 : f32
    %135 = vector.broadcast %cst_72 : f32 to vector<128x1xf32>
    %136 = arith.addf %134, %135 : vector<128x1xf32>
    %137 = math.rsqrt %136 : vector<128x1xf32>
    %138 = vector.broadcast %137 : vector<128x1xf32> to vector<128x128xf32>
    %139 = arith.mulf %129, %138 : vector<128x128xf32>
    %140 = vector.broadcast %122 : vector<1x128xf32> to vector<128x128xf32>
    %141 = arith.mulf %139, %140 : vector<128x128xf32>
    %142 = vector.broadcast %123 : vector<1x128xf32> to vector<128x128xf32>
    %143 = arith.addf %141, %142 : vector<128x128xf32>
    %144 = vector.extract_strided_slice %14 {offsets = [0, 256], sizes = [128, 128], strides = [1, 1]} : vector<128x512xf32> to vector<128x128xf32>
    %c2_73 = arith.constant 2 : index
    %c0_74 = arith.constant 0 : index
    %145 = vector.load %arg9[%c2_73, %c0_74] : memref<4x128xf32, #tpu.memory_space<vmem>>, vector<1x128xf32>
    %c2_75 = arith.constant 2 : index
    %c0_76 = arith.constant 0 : index
    %146 = vector.load %arg10[%c2_75, %c0_76] : memref<4x128xf32, #tpu.memory_space<vmem>>, vector<1x128xf32>
    %cst_77 = arith.constant dense<0.000000e+00> : vector<128xf32>
    %147 = vector.multi_reduction <add>, %144, %cst_77 [1] : vector<128x128xf32> to vector<128xf32>
    %148 = vector.shape_cast %147 : vector<128xf32> to vector<128x1xf32>
    %cst_78 = arith.constant 1.280000e+02 : f32
    %149 = vector.broadcast %cst_78 : f32 to vector<128x1xf32>
    %150 = arith.divf %148, %149 : vector<128x1xf32>
    %151 = vector.broadcast %150 : vector<128x1xf32> to vector<128x128xf32>
    %152 = arith.subf %144, %151 : vector<128x128xf32>
    %153 = arith.mulf %152, %152 : vector<128x128xf32>
    %cst_79 = arith.constant dense<0.000000e+00> : vector<128xf32>
    %154 = vector.multi_reduction <add>, %153, %cst_79 [1] : vector<128x128xf32> to vector<128xf32>
    %155 = vector.shape_cast %154 : vector<128xf32> to vector<128x1xf32>
    %cst_80 = arith.constant 1.280000e+02 : f32
    %156 = vector.broadcast %cst_80 : f32 to vector<128x1xf32>
    %157 = arith.divf %155, %156 : vector<128x1xf32>
    %cst_81 = arith.constant 9.99999974E-6 : f32
    %158 = vector.broadcast %cst_81 : f32 to vector<128x1xf32>
    %159 = arith.addf %157, %158 : vector<128x1xf32>
    %160 = math.rsqrt %159 : vector<128x1xf32>
    %161 = vector.broadcast %160 : vector<128x1xf32> to vector<128x128xf32>
    %162 = arith.mulf %152, %161 : vector<128x128xf32>
    %163 = vector.broadcast %145 : vector<1x128xf32> to vector<128x128xf32>
    %164 = arith.mulf %162, %163 : vector<128x128xf32>
    %165 = vector.broadcast %146 : vector<1x128xf32> to vector<128x128xf32>
    %166 = arith.addf %164, %165 : vector<128x128xf32>
    %c0_82 = arith.constant 0 : index
    %c2_83 = arith.constant 2 : index
    %c0_84 = arith.constant 0 : index
    %c0_85 = arith.constant 0 : index
    %167 = vector.load %arg11[%c0_82, %c2_83, %c0_84, %c0_85] : memref<1x4x128x128xf32, #tpu.memory_space<vmem>>, vector<1x1x128x128xf32>
    %168 = vector.shape_cast %167 : vector<1x1x128x128xf32> to vector<128x128xf32>
    %cst_86 = arith.constant dense<0.000000e+00> : vector<128x128xf32>
    %169 = tpu.matmul %143, %166, %cst_86 {dimension_numbers = #tpu.dot_dimension_numbers<[0], [0], [1], [1], [0, 1, 1, 1], [], []>} : vector<128x128xf32>, vector<128x128xf32>, vector<128x128xf32> -> vector<128x128xf32>
    %170 = arith.addf %168, %169 : vector<128x128xf32>
    %c0_87 = arith.constant 0 : index
    %c2_88 = arith.constant 2 : index
    %c0_89 = arith.constant 0 : index
    %c0_90 = arith.constant 0 : index
    %171 = vector.load %arg11[%c0_87, %c2_88, %c0_89, %c0_90] : memref<1x4x128x128xf32, #tpu.memory_space<vmem>>, vector<1x1x128x128xf32>
    %172 = vector.shape_cast %171 : vector<1x1x128x128xf32> to vector<128x128xf32>
    %173 = vector.shape_cast %170 : vector<128x128xf32> to vector<1x1x128x128xf32>
    tpu.vector_store %arg11[%c0_87, %c2_88, %c0_89, %c0_90], %173 {strides = array<i32>} : memref<1x4x128x128xf32, #tpu.memory_space<vmem>>, vector<1x1x128x128xf32>,
    %174 = vector.extract_strided_slice %9 {offsets = [0, 384], sizes = [128, 128], strides = [1, 1]} : vector<128x512xf32> to vector<128x128xf32>
    %c3 = arith.constant 3 : index
    %c0_91 = arith.constant 0 : index
    %175 = vector.load %arg7[%c3, %c0_91] : memref<4x128xf32, #tpu.memory_space<vmem>>, vector<1x128xf32>
    %c3_92 = arith.constant 3 : index
    %c0_93 = arith.constant 0 : index
    %176 = vector.load %arg8[%c3_92, %c0_93] : memref<4x128xf32, #tpu.memory_space<vmem>>, vector<1x128xf32>
    %cst_94 = arith.constant dense<0.000000e+00> : vector<128xf32>
    %177 = vector.multi_reduction <add>, %174, %cst_94 [1] : vector<128x128xf32> to vector<128xf32>
    %178 = vector.shape_cast %177 : vector<128xf32> to vector<128x1xf32>
    %cst_95 = arith.constant 1.280000e+02 : f32
    %179 = vector.broadcast %cst_95 : f32 to vector<128x1xf32>
    %180 = arith.divf %178, %179 : vector<128x1xf32>
    %181 = vector.broadcast %180 : vector<128x1xf32> to vector<128x128xf32>
    %182 = arith.subf %174, %181 : vector<128x128xf32>
    %183 = arith.mulf %182, %182 : vector<128x128xf32>
    %cst_96 = arith.constant dense<0.000000e+00> : vector<128xf32>
    %184 = vector.multi_reduction <add>, %183, %cst_96 [1] : vector<128x128xf32> to vector<128xf32>
    %185 = vector.shape_cast %184 : vector<128xf32> to vector<128x1xf32>
    %cst_97 = arith.constant 1.280000e+02 : f32
    %186 = vector.broadcast %cst_97 : f32 to vector<128x1xf32>
    %187 = arith.divf %185, %186 : vector<128x1xf32>
    %cst_98 = arith.constant 9.99999974E-6 : f32
    %188 = vector.broadcast %cst_98 : f32 to vector<128x1xf32>
    %189 = arith.addf %187, %188 : vector<128x1xf32>
    %190 = math.rsqrt %189 : vector<128x1xf32>
    %191 = vector.broadcast %190 : vector<128x1xf32> to vector<128x128xf32>
    %192 = arith.mulf %182, %191 : vector<128x128xf32>
    %193 = vector.broadcast %175 : vector<1x128xf32> to vector<128x128xf32>
    %194 = arith.mulf %192, %193 : vector<128x128xf32>
    %195 = vector.broadcast %176 : vector<1x128xf32> to vector<128x128xf32>
    %196 = arith.addf %194, %195 : vector<128x128xf32>
    %197 = vector.extract_strided_slice %14 {offsets = [0, 384], sizes = [128, 128], strides = [1, 1]} : vector<128x512xf32> to vector<128x128xf32>
    %c3_99 = arith.constant 3 : index
    %c0_100 = arith.constant 0 : index
    %198 = vector.load %arg9[%c3_99, %c0_100] : memref<4x128xf32, #tpu.memory_space<vmem>>, vector<1x128xf32>
    %c3_101 = arith.constant 3 : index
    %c0_102 = arith.constant 0 : index
    %199 = vector.load %arg10[%c3_101, %c0_102] : memref<4x128xf32, #tpu.memory_space<vmem>>, vector<1x128xf32>
    %cst_103 = arith.constant dense<0.000000e+00> : vector<128xf32>
    %200 = vector.multi_reduction <add>, %197, %cst_103 [1] : vector<128x128xf32> to vector<128xf32>
    %201 = vector.shape_cast %200 : vector<128xf32> to vector<128x1xf32>
    %cst_104 = arith.constant 1.280000e+02 : f32
    %202 = vector.broadcast %cst_104 : f32 to vector<128x1xf32>
    %203 = arith.divf %201, %202 : vector<128x1xf32>
    %204 = vector.broadcast %203 : vector<128x1xf32> to vector<128x128xf32>
    %205 = arith.subf %197, %204 : vector<128x128xf32>
    %206 = arith.mulf %205, %205 : vector<128x128xf32>
    %cst_105 = arith.constant dense<0.000000e+00> : vector<128xf32>
    %207 = vector.multi_reduction <add>, %206, %cst_105 [1] : vector<128x128xf32> to vector<128xf32>
    %208 = vector.shape_cast %207 : vector<128xf32> to vector<128x1xf32>
    %cst_106 = arith.constant 1.280000e+02 : f32
    %209 = vector.broadcast %cst_106 : f32 to vector<128x1xf32>
    %210 = arith.divf %208, %209 : vector<128x1xf32>
    %cst_107 = arith.constant 9.99999974E-6 : f32
    %211 = vector.broadcast %cst_107 : f32 to vector<128x1xf32>
    %212 = arith.addf %210, %211 : vector<128x1xf32>
    %213 = math.rsqrt %212 : vector<128x1xf32>
    %214 = vector.broadcast %213 : vector<128x1xf32> to vector<128x128xf32>
    %215 = arith.mulf %205, %214 : vector<128x128xf32>
    %216 = vector.broadcast %198 : vector<1x128xf32> to vector<128x128xf32>
    %217 = arith.mulf %215, %216 : vector<128x128xf32>
    %218 = vector.broadcast %199 : vector<1x128xf32> to vector<128x128xf32>
    %219 = arith.addf %217, %218 : vector<128x128xf32>
    %c0_108 = arith.constant 0 : index
    %c3_109 = arith.constant 3 : index
    %c0_110 = arith.constant 0 : index
    %c0_111 = arith.constant 0 : index
    %220 = vector.load %arg11[%c0_108, %c3_109, %c0_110, %c0_111] : memref<1x4x128x128xf32, #tpu.memory_space<vmem>>, vector<1x1x128x128xf32>
    %221 = vector.shape_cast %220 : vector<1x1x128x128xf32> to vector<128x128xf32>
    %cst_112 = arith.constant dense<0.000000e+00> : vector<128x128xf32>
    %222 = tpu.matmul %196, %219, %cst_112 {dimension_numbers = #tpu.dot_dimension_numbers<[0], [0], [1], [1], [0, 1, 1, 1], [], []>} : vector<128x128xf32>, vector<128x128xf32>, vector<128x128xf32> -> vector<128x128xf32>
    %223 = arith.addf %221, %222 : vector<128x128xf32>
    %c0_113 = arith.constant 0 : index
    %c3_114 = arith.constant 3 : index
    %c0_115 = arith.constant 0 : index
    %c0_116 = arith.constant 0 : index
    %224 = vector.load %arg11[%c0_113, %c3_114, %c0_115, %c0_116] : memref<1x4x128x128xf32, #tpu.memory_space<vmem>>, vector<1x1x128x128xf32>
    %225 = vector.shape_cast %224 : vector<1x1x128x128xf32> to vector<128x128xf32>
    %226 = vector.shape_cast %223 : vector<128x128xf32> to vector<1x1x128x128xf32>
    tpu.vector_store %arg11[%c0_113, %c3_114, %c0_115, %c0_116], %226 {strides = array<i32>} : memref<1x4x128x128xf32, #tpu.memory_space<vmem>>, vector<1x1x128x128xf32>,
    return
  }
  func.func @transform_0(%arg0: i32, %arg1: i32) -> (i32, i32, i32) {
    %c0_i32 = arith.constant 0 : i32
    %c0_i32_0 = arith.constant 0 : i32
    return %arg0, %arg1, %c0_i32 : i32, i32, i32
  }
  func.func @transform_1(%arg0: i32, %arg1: i32) -> (i32, i32) {
    %c0_i32 = arith.constant 0 : i32
    %c0_i32_0 = arith.constant 0 : i32
    %c0_i32_1 = arith.constant 0 : i32
    return %c0_i32, %c0_i32_0 : i32, i32
  }
  func.func @transform_2(%arg0: i32, %arg1: i32) -> (i32, i32) {
    %c0_i32 = arith.constant 0 : i32
    %c0_i32_0 = arith.constant 0 : i32
    %c0_i32_1 = arith.constant 0 : i32
    return %c0_i32, %c0_i32_0 : i32, i32
  }
  func.func @transform_3(%arg0: i32, %arg1: i32) -> (i32, i32) {
    %c0_i32 = arith.constant 0 : i32
    %c0_i32_0 = arith.constant 0 : i32
    %c0_i32_1 = arith.constant 0 : i32
    return %c0_i32, %c0_i32_0 : i32, i32
  }
  func.func @transform_4(%arg0: i32, %arg1: i32) -> (i32, i32) {
    %c0_i32 = arith.constant 0 : i32
    %c0_i32_0 = arith.constant 0 : i32
    %c0_i32_1 = arith.constant 0 : i32
    return %c0_i32, %c0_i32_0 : i32, i32
  }
  func.func @transform_5(%arg0: i32, %arg1: i32) -> (i32, i32) {
    %c0_i32 = arith.constant 0 : i32
    %c0_i32_0 = arith.constant 0 : i32
    %c0_i32_1 = arith.constant 0 : i32
    return %c0_i32, %c0_i32_0 : i32, i32
  }
  func.func @transform_6(%arg0: i32, %arg1: i32) -> (i32, i32) {
    %c0_i32 = arith.constant 0 : i32
    %c0_i32_0 = arith.constant 0 : i32
    %c0_i32_1 = arith.constant 0 : i32
    return %c0_i32, %c0_i32_0 : i32, i32
  }
  func.func @transform_7(%arg0: i32, %arg1: i32) -> (i32, i32) {
    %c0_i32 = arith.constant 0 : i32
    %c0_i32_0 = arith.constant 0 : i32
    %c0_i32_1 = arith.constant 0 : i32
    return %c0_i32, %c0_i32_0 : i32, i32
  }
  func.func @transform_8(%arg0: i32, %arg1: i32) -> (i32, i32) {
    %c0_i32 = arith.constant 0 : i32
    %c0_i32_0 = arith.constant 0 : i32
    %c0_i32_1 = arith.constant 0 : i32
    return %c0_i32, %c0_i32_0 : i32, i32
  }
  func.func @transform_9(%arg0: i32, %arg1: i32) -> (i32, i32, i32, i32) {
    %c0_i32 = arith.constant 0 : i32
    %c0_i32_0 = arith.constant 0 : i32
    %c0_i32_1 = arith.constant 0 : i32
    %c0_i32_2 = arith.constant 0 : i32
    return %arg0, %c0_i32, %c0_i32_0, %c0_i32_1 : i32, i32, i32, i32
  }
}

</mosaic_0001>

<llo_original>
// kernel: tpu_custom_call.1
$region0: #{tpu_custom_call.1}
  #allocation0 [shape = 'u32[]', space=smem, size = 0x4, offset = 0x4, fixed_abs, tag = 'smem constant byte address 0x4 - core index']
  #allocation1 [shape = 'u32[72,128]{1,0:T(1,128)}', space=vmem, size = 0x9000, scoped, tag = 'internal scratch']
  %s0 = inlined_call_operand.vmem [shape: f32[2,256,64], index: 0, kind: input, shape index: {}]
  %s1 = inlined_call_operand.vmem [shape: f32[64,512], index: 1, kind: input, shape index: {}]
  %s2 = inlined_call_operand.vmem [shape: f32[1,512], index: 2, kind: input, shape index: {}]
  %s3 = inlined_call_operand.vmem [shape: f32[64,512], index: 3, kind: input, shape index: {}]
  %s4 = inlined_call_operand.vmem [shape: f32[1,512], index: 4, kind: input, shape index: {}]
  %s5 = inlined_call_operand.vmem [shape: f32[4,128], index: 5, kind: input, shape index: {}]
  %s6 = inlined_call_operand.vmem [shape: f32[4,128], index: 6, kind: input, shape index: {}]
  %s7 = inlined_call_operand.vmem [shape: f32[4,128], index: 7, kind: input, shape index: {}]
  %s8 = inlined_call_operand.vmem [shape: f32[4,128], index: 8, kind: input, shape index: {}]
  %s9 = inlined_call_operand.hbm [shape: f32[2,4,128,128], index: 9, kind: output, shape index: {}]
  %s10 = sld [smem:[#allocation0]]
  $region73: #{tpu_custom_call.1} parent=0
    _
  %s12 = ssub.s32 1, %s10
  %s13 = scalar_select 0, %s12, %s10
  $region1: #{tpu_custom_call.1} parent=0
    #allocation2 [shape = 'u8[524288]{0}', space=vmem, size = 0x80000, scoped, tag = 'output window, operand 0']
    #allocation3 [shape = 's32[2]{0}', space=sflag, size = 0x8, scoped, tag = 'scoped memory for tpu_custom_call.1']
    %14 = vsyncpa [#allocation3], 0
    %s15 = scalar_lea.sflag [#allocation3], 1
    %16 = vsyncpa %s15, 0
    loop: start=0, step=1, limit=6
    $region2: #{tpu_custom_call.1} parent=1 // loop_pre_header
      _
    $region3: #{tpu_custom_call.1} parent=1 // loop_header
      %s18 = sphi 0, %s22
      %p19 = scmp.ge.s32.totalorder %s18, 6
      %s25 = sphi 0, %s37
      %s26 = sphi 0, %s33
      %s27 = sphi 0, %s25
      %s28 = sphi 0, %s26
      %s29 = sphi 0, %s27
      %s30 = sphi 0, %s28
      %s42 = sphi 0, %s44
      %s45 = sphi 0, %s42
      %s46 = sphi 0, %s45
      %s62 = sphi 0, %s46
      %s66 = sphi 0, %s66
      %s68 = sphi 0, %s66
      %s69 = sphi 0, %s68
      %s83 = sphi 0, %s69
      %s87 = sphi 0, %s87
      %s89 = sphi 0, %s87
      %s90 = sphi 0, %s89
      %s104 = sphi 0, %s90
      %s108 = sphi 0, %s108
      %s110 = sphi 0, %s108
      %s111 = sphi 0, %s110
      %s125 = sphi 0, %s111
      %s129 = sphi 0, %s129
      %s131 = sphi 0, %s129
      %s132 = sphi 0, %s131
      %s146 = sphi 0, %s132
      %s150 = sphi 0, %s150
      %s152 = sphi 0, %s150
      %s153 = sphi 0, %s152
      %s167 = sphi 0, %s153
      %s171 = sphi 0, %s171
      %s173 = sphi 0, %s171
      %s174 = sphi 0, %s173
      %s188 = sphi 0, %s174
      %s192 = sphi 0, %s192
      %s194 = sphi 0, %s192
      %s195 = sphi 0, %s194
      %s209 = sphi 0, %s195
      %s213 = sphi 0, %s213
      %s215 = sphi 0, %s213
      %s216 = sphi 0, %s215
      %s230 = sphi 0, %s216
      %s236 = sphi 0, %s238
      %s239 = sphi 0, %s236
      %s240 = sphi 0, %s239
      %s256 = sphi 0, %s240
    $region4: #{tpu_custom_call.1} parent=1 // loop_header_branch
      %21 = sbr.rel (%p19) target = $region8
    $region5: #{tpu_custom_call.1} parent=1 // loop_body
      %s23 = ssub.s32 %s18, 1
      %s24 = ssub.s32 %s18, 2
      %s31 = sadd.s32 1, %s26
      %p32 = scmp.ge.s32.totalorder %s31, 2
      %s33 = scalar_select %p32, 0, %s31
      %s34 = sadd.s32 1, %s25
      %s35 = scalar_select %p32, %s34, %s25
      %p36 = scmp.ge.s32.totalorder %s35, 2
      %s37 = scalar_select %p36, 0, %s35
      %s38 = ssub.s32 %s25, %s37
      %s39 = ssub.s32 %s26, %s33
      %s40 = sor.u32 %s38, %s39
      %p41 = scmp.eq.s32.totalorder %s40, 0
      %s43 = sadd.s32 %s42, 1
      %s44 = scalar_select %p41, %s42, %s43
      %p47 = pneg %p41
      %p48 = scmp.eq.s32.totalorder %s18, 3
      %p49 = por %p47, %p48
      %p50 = scmp.ne.s32.totalorder %s42, %s45
      %p51 = scmp.eq.s32.totalorder %s18, 0
      %p52 = por %p50, %p51
      %p53 = scmp.ne.s32.totalorder %s42, %s45
      %p54 = scmp.eq.s32.totalorder %s23, 3
      %p55 = por %p53, %p54
      %p56 = scmp.ne.s32.totalorder %s45, %s46
      %p57 = scmp.eq.s32.totalorder %s23, 0
      %p58 = por %p56, %p57
      %p59 = scmp.ne.s32.totalorder %s45, %s46
      %p60 = scmp.eq.s32.totalorder %s24, 3
      %p61 = por %p59, %p60
      %p63 = scmp.ne.s32.totalorder %s46, %s62
      %p64 = scmp.eq.s32.totalorder %s24, 0
      %p65 = por %p63, %p64
      %s67 = sadd.s32 %s66, 1
      %p70 = scmp.eq.s32.totalorder %s18, 3
      %p71 = scmp.ne.s32.totalorder %s66, %s68
      %p72 = scmp.eq.s32.totalorder %s18, 0
      %p73 = por %p71, %p72
      %p74 = scmp.ne.s32.totalorder %s66, %s68
      %p75 = scmp.eq.s32.totalorder %s23, 3
      %p76 = por %p74, %p75
      %p77 = scmp.ne.s32.totalorder %s68, %s69
      %p78 = scmp.eq.s32.totalorder %s23, 0
      %p79 = por %p77, %p78
      %p80 = scmp.ne.s32.totalorder %s68, %s69
      %p81 = scmp.eq.s32.totalorder %s24, 3
      %p82 = por %p80, %p81
      %p84 = scmp.ne.s32.totalorder %s69, %s83
      %p85 = scmp.eq.s32.totalorder %s24, 0
      %p86 = por %p84, %p85
      %s88 = sadd.s32 %s87, 1
      %p91 = scmp.eq.s32.totalorder %s18, 3
      %p92 = scmp.ne.s32.totalorder %s87, %s89
      %p93 = scmp.eq.s32.totalorder %s18, 0
      %p94 = por %p92, %p93
      %p95 = scmp.ne.s32.totalorder %s87, %s89
      %p96 = scmp.eq.s32.totalorder %s23, 3
      %p97 = por %p95, %p96
      %p98 = scmp.ne.s32.totalorder %s89, %s90
      %p99 = scmp.eq.s32.totalorder %s23, 0
      %p100 = por %p98, %p99
      %p101 = scmp.ne.s32.totalorder %s89, %s90
      %p102 = scmp.eq.s32.totalorder %s24, 3
      %p103 = por %p101, %p102
      %p105 = scmp.ne.s32.totalorder %s90, %s104
      %p106 = scmp.eq.s32.totalorder %s24, 0
      %p107 = por %p105, %p106
      %s109 = sadd.s32 %s108, 1
      %p112 = scmp.eq.s32.totalorder %s18, 3
      %p113 = scmp.ne.s32.totalorder %s108, %s110
      %p114 = scmp.eq.s32.totalorder %s18, 0
      %p115 = por %p113, %p114
      %p116 = scmp.ne.s32.totalorder %s108, %s110
      %p117 = scmp.eq.s32.totalorder %s23, 3
      %p118 = por %p116, %p117
      %p119 = scmp.ne.s32.totalorder %s110, %s111
      %p120 = scmp.eq.s32.totalorder %s23, 0
      %p121 = por %p119, %p120
      %p122 = scmp.ne.s32.totalorder %s110, %s111
      %p123 = scmp.eq.s32.totalorder %s24, 3
      %p124 = por %p122, %p123
      %p126 = scmp.ne.s32.totalorder %s111, %s125
      %p127 = scmp.eq.s32.totalorder %s24, 0
      %p128 = por %p126, %p127
      %s130 = sadd.s32 %s129, 1
      %p133 = scmp.eq.s32.totalorder %s18, 3
      %p134 = scmp.ne.s32.totalorder %s129, %s131
      %p135 = scmp.eq.s32.totalorder %s18, 0
      %p136 = por %p134, %p135
      %p137 = scmp.ne.s32.totalorder %s129, %s131
      %p138 = scmp.eq.s32.totalorder %s23, 3
      %p139 = por %p137, %p138
      %p140 = scmp.ne.s32.totalorder %s131, %s132
      %p141 = scmp.eq.s32.totalorder %s23, 0
      %p142 = por %p140, %p141
      %p143 = scmp.ne.s32.totalorder %s131, %s132
      %p144 = scmp.eq.s32.totalorder %s24, 3
      %p145 = por %p143, %p144
      %p147 = scmp.ne.s32.totalorder %s132, %s146
      %p148 = scmp.eq.s32.totalorder %s24, 0
      %p149 = por %p147, %p148
      %s151 = sadd.s32 %s150, 1
      %p154 = scmp.eq.s32.totalorder %s18, 3
      %p155 = scmp.ne.s32.totalorder %s150, %s152
      %p156 = scmp.eq.s32.totalorder %s18, 0
      %p157 = por %p155, %p156
      %p158 = scmp.ne.s32.totalorder %s150, %s152
      %p159 = scmp.eq.s32.totalorder %s23, 3
      %p160 = por %p158, %p159
      %p161 = scmp.ne.s32.totalorder %s152, %s153
      %p162 = scmp.eq.s32.totalorder %s23, 0
      %p163 = por %p161, %p162
      %p164 = scmp.ne.s32.totalorder %s152, %s153
      %p165 = scmp.eq.s32.totalorder %s24, 3
      %p166 = por %p164, %p165
      %p168 = scmp.ne.s32.totalorder %s153, %s167
      %p169 = scmp.eq.s32.totalorder %s24, 0
      %p170 = por %p168, %p169
      %s172 = sadd.s32 %s171, 1
      %p175 = scmp.eq.s32.totalorder %s18, 3
      %p176 = scmp.ne.s32.totalorder %s171, %s173
      %p177 = scmp.eq.s32.totalorder %s18, 0
      %p178 = por %p176, %p177
      %p179 = scmp.ne.s32.totalorder %s171, %s173
      %p180 = scmp.eq.s32.totalorder %s23, 3
      %p181 = por %p179, %p180
      %p182 = scmp.ne.s32.totalorder %s173, %s174
      %p183 = scmp.eq.s32.totalorder %s23, 0
      %p184 = por %p182, %p183
      %p185 = scmp.ne.s32.totalorder %s173, %s174
      %p186 = scmp.eq.s32.totalorder %s24, 3
      %p187 = por %p185, %p186
      %p189 = scmp.ne.s32.totalorder %s174, %s188
      %p190 = scmp.eq.s32.totalorder %s24, 0
      %p191 = por %p189, %p190
      %s193 = sadd.s32 %s192, 1
      %p196 = scmp.eq.s32.totalorder %s18, 3
      %p197 = scmp.ne.s32.totalorder %s192, %s194
      %p198 = scmp.eq.s32.totalorder %s18, 0
      %p199 = por %p197, %p198
      %p200 = scmp.ne.s32.totalorder %s192, %s194
      %p201 = scmp.eq.s32.totalorder %s23, 3
      %p202 = por %p200, %p201
      %p203 = scmp.ne.s32.totalorder %s194, %s195
      %p204 = scmp.eq.s32.totalorder %s23, 0
      %p205 = por %p203, %p204
      %p206 = scmp.ne.s32.totalorder %s194, %s195
      %p207 = scmp.eq.s32.totalorder %s24, 3
      %p208 = por %p206, %p207
      %p210 = scmp.ne.s32.totalorder %s195, %s209
      %p211 = scmp.eq.s32.totalorder %s24, 0
      %p212 = por %p210, %p211
      %s214 = sadd.s32 %s213, 1
      %p217 = scmp.eq.s32.totalorder %s18, 3
      %p218 = scmp.ne.s32.totalorder %s213, %s215
      %p219 = scmp.eq.s32.totalorder %s18, 0
      %p220 = por %p218, %p219
      %p221 = scmp.ne.s32.totalorder %s213, %s215
      %p222 = scmp.eq.s32.totalorder %s23, 3
      %p223 = por %p221, %p222
      %p224 = scmp.ne.s32.totalorder %s215, %s216
      %p225 = scmp.eq.s32.totalorder %s23, 0
      %p226 = por %p224, %p225
      %p227 = scmp.ne.s32.totalorder %s215, %s216
      %p228 = scmp.eq.s32.totalorder %s24, 3
      %p229 = por %p227, %p228
      %p231 = scmp.ne.s32.totalorder %s216, %s230
      %p232 = scmp.eq.s32.totalorder %s24, 0
      %p233 = por %p231, %p232
      %s234 = ssub.s32 %s25, %s37
      %p235 = scmp.eq.s32.totalorder %s234, 0
      %s237 = sadd.s32 %s236, 1
      %s238 = scalar_select %p235, %s236, %s237
      %p241 = pneg %p235
      %p242 = scmp.eq.s32.totalorder %s18, 3
      %p243 = por %p241, %p242
      %p244 = scmp.ne.s32.totalorder %s236, %s239
      %p245 = scmp.eq.s32.totalorder %s18, 0
      %p246 = por %p244, %p245
      %p247 = scmp.ne.s32.totalorder %s236, %s239
      %p248 = scmp.eq.s32.totalorder %s23, 3
      %p249 = por %p247, %p248
      %p250 = scmp.ne.s32.totalorder %s239, %s240
      %p251 = scmp.eq.s32.totalorder %s23, 0
      %p252 = por %p250, %p251
      %p253 = scmp.ne.s32.totalorder %s239, %s240
      %p254 = scmp.eq.s32.totalorder %s24, 3
      %p255 = por %p253, %p254
      %p257 = scmp.ne.s32.totalorder %s240, %s256
      %p258 = scmp.eq.s32.totalorder %s24, 0
      %p259 = por %p257, %p258
      %p260 = scmp.le.s32.totalorder 1, %s18
      %p261 = scmp.lt.s32.totalorder %s18, 5
      %p262 = pnand %p260, %p261
      %p263 = pneg %p262
      // Predicated region
      $region9: #{tpu_custom_call.1} parent=5 // pred_check
        _
      $region10: #{tpu_custom_call.1} parent=5 // pred_check_branch
        %265 = sbr.rel (%p262) target = $region12
      $region11: #{tpu_custom_call.1} parent=5 // pred_region
        %s266 = ssub.s32 %s18, 1
        // Predicated region
        $region13: #{tpu_custom_call.1} parent=11 // pred_check
          %p267 = pneg %p79
        $region14: #{tpu_custom_call.1} parent=11 // pred_check_branch
          %269 = sbr.rel (%p267) target = $region16
        $region15: #{tpu_custom_call.1} parent=11 // pred_region
          _
        $region16: #{tpu_custom_call.1} parent=11 // pred_fallthru
          _
        // Predicated region
        $region17: #{tpu_custom_call.1} parent=11 // pred_check
          %p270 = pneg %p100
        $region18: #{tpu_custom_call.1} parent=11 // pred_check_branch
          %272 = sbr.rel (%p270) target = $region20
        $region19: #{tpu_custom_call.1} parent=11 // pred_region
          _
        $region20: #{tpu_custom_call.1} parent=11 // pred_fallthru
          _
        // Predicated region
        $region21: #{tpu_custom_call.1} parent=11 // pred_check
          %p273 = pneg %p121
        $region22: #{tpu_custom_call.1} parent=11 // pred_check_branch
          %275 = sbr.rel (%p273) target = $region24
        $region23: #{tpu_custom_call.1} parent=11 // pred_region
          _
        $region24: #{tpu_custom_call.1} parent=11 // pred_fallthru
          _
        // Predicated region
        $region25: #{tpu_custom_call.1} parent=11 // pred_check
          %p276 = pneg %p142
        $region26: #{tpu_custom_call.1} parent=11 // pred_check_branch
          %278 = sbr.rel (%p276) target = $region28
        $region27: #{tpu_custom_call.1} parent=11 // pred_region
          _
        $region28: #{tpu_custom_call.1} parent=11 // pred_fallthru
          _
        // Predicated region
        $region29: #{tpu_custom_call.1} parent=11 // pred_check
          %p279 = pneg %p163
        $region30: #{tpu_custom_call.1} parent=11 // pred_check_branch
          %281 = sbr.rel (%p279) target = $region32
        $region31: #{tpu_custom_call.1} parent=11 // pred_region
          _
        $region32: #{tpu_custom_call.1} parent=11 // pred_fallthru
          _
        // Predicated region
        $region33: #{tpu_custom_call.1} parent=11 // pred_check
          %p282 = pneg %p184
        $region34: #{tpu_custom_call.1} parent=11 // pred_check_branch
          %284 = sbr.rel (%p282) target = $region36
        $region35: #{tpu_custom_call.1} parent=11 // pred_region
          _
        $region36: #{tpu_custom_call.1} parent=11 // pred_fallthru
          _
        // Predicated region
        $region37: #{tpu_custom_call.1} parent=11 // pred_check
          %p285 = pneg %p205
        $region38: #{tpu_custom_call.1} parent=11 // pred_check_branch
          %287 = sbr.rel (%p285) target = $region40
        $region39: #{tpu_custom_call.1} parent=11 // pred_region
          _
        $region40: #{tpu_custom_call.1} parent=11 // pred_fallthru
          _
        // Predicated region
        $region41: #{tpu_custom_call.1} parent=11 // pred_check
          %p288 = pneg %p226
        $region42: #{tpu_custom_call.1} parent=11 // pred_check_branch
          %290 = sbr.rel (%p288) target = $region44
        $region43: #{tpu_custom_call.1} parent=11 // pred_region
          _
        $region44: #{tpu_custom_call.1} parent=11 // pred_fallthru
          _
      $region12: #{tpu_custom_call.1} parent=5 // pred_fallthru
        _
      %p291 = scmp.lt.s32.totalorder %s18, 4
      // Predicated region
      $region45: #{tpu_custom_call.1} parent=5 // pred_check
        %p292 = pneg %p291
      $region46: #{tpu_custom_call.1} parent=5 // pred_check_branch
        %294 = sbr.rel (%p292) target = $region48
      $region47: #{tpu_custom_call.1} parent=5 // pred_region
        // Predicated region
        $region49: #{tpu_custom_call.1} parent=47 // pred_check
          %p295 = pneg %p52
        $region50: #{tpu_custom_call.1} parent=47 // pred_check_branch
          %297 = sbr.rel (%p295) target = $region52
        $region51: #{tpu_custom_call.1} parent=47 // pred_region
          %s298 = smul.u32 16, %s26
          %p299 = scmp.lt.s32.totalorder %s25, 1
          %s300 = scalar_select %p299, %s25, 1
          %p301 = scmp.lt.s32.totalorder %s298, 31
          %s302 = scalar_select %p301, %s298, 31
          %s303 = smul.addr %s300, 32
          %s304 = sadd.s32 %s302, %s303
          %s305 = smul.addr %s304, 8
          %s306 = scalar_lea.vmem %s0, %s305
          %s307 = smul.u32 16, %s26
        $region52: #{tpu_custom_call.1} parent=47 // pred_fallthru
          _
      $region48: #{tpu_custom_call.1} parent=5 // pred_fallthru
        _
      %p308 = scmp.le.s32.totalorder 1, %s18
      %p309 = scmp.lt.s32.totalorder %s18, 5
      %p310 = pnand %p308, %p309
      %p311 = pneg %p310
      // Predicated region
      $region53: #{tpu_custom_call.1} parent=5 // pred_check
        _
      $region54: #{tpu_custom_call.1} parent=5 // pred_check_branch
        %313 = sbr.rel (%p310) target = $region56
      $region55: #{tpu_custom_call.1} parent=5 // pred_region
        %s314 = ssub.s32 %s18, 1
        %s315 = smul.u32 16, %s28
        %p316 = scmp.lt.s32.totalorder %s27, 1
        %s317 = scalar_select %p316, %s27, 1
        %p318 = scmp.lt.s32.totalorder %s315, 31
        %s319 = scalar_select %p318, %s315, 31
        %s320 = smul.addr %s317, 32
        %s321 = sadd.s32 %s319, %s320
        %s322 = smul.addr %s321, 8
        %s323 = scalar_lea.vmem %s0, %s322
        %p324 = pneg %p58
        %p325 = pneg %p55
        %p326 = pneg %p79
        %p327 = pneg %p76
        %p328 = pneg %p100
        %p329 = pneg %p97
        %p330 = pneg %p121
        %p331 = pneg %p118
        %p332 = pneg %p142
        %p333 = pneg %p139
        %p334 = pneg %p163
        %p335 = pneg %p160
        %p336 = pneg %p184
        %p337 = pneg %p181
        %p338 = pneg %p205
        %p339 = pneg %p202
        %p340 = pneg %p226
        %p341 = pneg %p223
        %p342 = pneg %p252
        %p343 = pneg %p249
        %s344 = sand.u32 %s239, 1
        %s345 = scalar_lea.sflag [#allocation3], %s344
        %s346 = sand.u32 %s239, 1
        %s347 = smul.addr %s346, 512
        %s348 = scalar_lea.vmem [#allocation2], %s347
        %s349 = smul.u32 16, %s28
        %p350 = scmp.lt.s32.totalorder %s27, 1
        %s351 = scalar_select %p350, %s27, 1
        %p352 = scmp.lt.s32.totalorder %s349, 31
        %s353 = scalar_select %p352, %s349, 31
        %s354 = smul.addr %s351, 32
        %s355 = sadd.s32 %s353, %s354
        %s356 = smul.addr %s355, 8
        %s357 = scalar_lea.vmem %s0, %s356
        %s358 = smul.u32 16, %s28
        %p359 = scmp.eq.s32.totalorder %s28, 0
        // Predicated region
        $region57: #{tpu_custom_call.1} parent=55 // pred_check
          %p360 = pneg %p359
        $region58: #{tpu_custom_call.1} parent=55 // pred_check_branch
          %362 = sbr.rel (%p360) target = $region60
        $region59: #{tpu_custom_call.1} parent=55 // pred_region
          %363 = vst [vmem:[%s348] sm:$0xff] 0.0
          %364 = vst [vmem:[%s348 + $0x8] sm:$0xff] 0.0
          %365 = vst [vmem:[%s348 + $0x10] sm:$0xff] 0.0
          %366 = vst [vmem:[%s348 + $0x18] sm:$0xff] 0.0
          %367 = vst [vmem:[%s348 + $0x20] sm:$0xff] 0.0
          %368 = vst [vmem:[%s348 + $0x28] sm:$0xff] 0.0
          %369 = vst [vmem:[%s348 + $0x30] sm:$0xff] 0.0
          %370 = vst [vmem:[%s348 + $0x38] sm:$0xff] 0.0
          %371 = vst [vmem:[%s348 + $0x40] sm:$0xff] 0.0
          %372 = vst [vmem:[%s348 + $0x48] sm:$0xff] 0.0
          %373 = vst [vmem:[%s348 + $0x50] sm:$0xff] 0.0
          %374 = vst [vmem:[%s348 + $0x58] sm:$0xff] 0.0
          %375 = vst [vmem:[%s348 + $0x60] sm:$0xff] 0.0
          %376 = vst [vmem:[%s348 + $0x68] sm:$0xff] 0.0
          %377 = vst [vmem:[%s348 + $0x70] sm:$0xff] 0.0
          %378 = vst [vmem:[%s348 + $0x78] sm:$0xff] 0.0
          %379 = vst [vmem:[%s348 + $0x80] sm:$0xff] 0.0
          %380 = vst [vmem:[%s348 + $0x88] sm:$0xff] 0.0
          %381 = vst [vmem:[%s348 + $0x90] sm:$0xff] 0.0
          %382 = vst [vmem:[%s348 + $0x98] sm:$0xff] 0.0
          %383 = vst [vmem:[%s348 + $0xa0] sm:$0xff] 0.0
          %384 = vst [vmem:[%s348 + $0xa8] sm:$0xff] 0.0
          %385 = vst [vmem:[%s348 + $0xb0] sm:$0xff] 0.0
          %386 = vst [vmem:[%s348 + $0xb8] sm:$0xff] 0.0
          %387 = vst [vmem:[%s348 + $0xc0] sm:$0xff] 0.0
          %388 = vst [vmem:[%s348 + $0xc8] sm:$0xff] 0.0
          %389 = vst [vmem:[%s348 + $0xd0] sm:$0xff] 0.0
          %390 = vst [vmem:[%s348 + $0xd8] sm:$0xff] 0.0
          %391 = vst [vmem:[%s348 + $0xe0] sm:$0xff] 0.0
          %392 = vst [vmem:[%s348 + $0xe8] sm:$0xff] 0.0
          %393 = vst [vmem:[%s348 + $0xf0] sm:$0xff] 0.0
          %394 = vst [vmem:[%s348 + $0xf8] sm:$0xff] 0.0
          %395 = vst [vmem:[%s348 + $0x100] sm:$0xff] 0.0
          %396 = vst [vmem:[%s348 + $0x108] sm:$0xff] 0.0
          %397 = vst [vmem:[%s348 + $0x110] sm:$0xff] 0.0
          %398 = vst [vmem:[%s348 + $0x118] sm:$0xff] 0.0
          %399 = vst [vmem:[%s348 + $0x120] sm:$0xff] 0.0
          %400 = vst [vmem:[%s348 + $0x128] sm:$0xff] 0.0
          %401 = vst [vmem:[%s348 + $0x130] sm:$0xff] 0.0
          %402 = vst [vmem:[%s348 + $0x138] sm:$0xff] 0.0
          %403 = vst [vmem:[%s348 + $0x140] sm:$0xff] 0.0
          %404 = vst [vmem:[%s348 + $0x148] sm:$0xff] 0.0
          %405 = vst [vmem:[%s348 + $0x150] sm:$0xff] 0.0
          %406 = vst [vmem:[%s348 + $0x158] sm:$0xff] 0.0
          %407 = vst [vmem:[%s348 + $0x160] sm:$0xff] 0.0
          %408 = vst [vmem:[%s348 + $0x168] sm:$0xff] 0.0
          %409 = vst [vmem:[%s348 + $0x170] sm:$0xff] 0.0
          %410 = vst [vmem:[%s348 + $0x178] sm:$0xff] 0.0
          %411 = vst [vmem:[%s348 + $0x180] sm:$0xff] 0.0
          %412 = vst [vmem:[%s348 + $0x188] sm:$0xff] 0.0
          %413 = vst [vmem:[%s348 + $0x190] sm:$0xff] 0.0
          %414 = vst [vmem:[%s348 + $0x198] sm:$0xff] 0.0
          %415 = vst [vmem:[%s348 + $0x1a0] sm:$0xff] 0.0
          %416 = vst [vmem:[%s348 + $0x1a8] sm:$0xff] 0.0
          %417 = vst [vmem:[%s348 + $0x1b0] sm:$0xff] 0.0
          %418 = vst [vmem:[%s348 + $0x1b8] sm:$0xff] 0.0
          %419 = vst [vmem:[%s348 + $0x1c0] sm:$0xff] 0.0
          %420 = vst [vmem:[%s348 + $0x1c8] sm:$0xff] 0.0
          %421 = vst [vmem:[%s348 + $0x1d0] sm:$0xff] 0.0
          %422 = vst [vmem:[%s348 + $0x1d8] sm:$0xff] 0.0
          %423 = vst [vmem:[%s348 + $0x1e0] sm:$0xff] 0.0
          %424 = vst [vmem:[%s348 + $0x1e8] sm:$0xff] 0.0
          %425 = vst [vmem:[%s348 + $0x1f0] sm:$0xff] 0.0
          %426 = vst [vmem:[%s348 + $0x1f8] sm:$0xff] 0.0
        $region60: #{tpu_custom_call.1} parent=55 // pred_fallthru
          _
        %v427 = vld [vmem:[%s357] sm:$0xff]
        %v428 = vld [vmem:[%s357 + $0x8] sm:$0xff]
        %v429 = vld [vmem:[%s357 + $0x10] sm:$0xff]
        %v430 = vld [vmem:[%s357 + $0x18] sm:$0xff]
        %v431 = vld [vmem:[%s357 + $0x20] sm:$0xff]
        %v432 = vld [vmem:[%s357 + $0x28] sm:$0xff]
        %v433 = vld [vmem:[%s357 + $0x30] sm:$0xff]
        %v434 = vld [vmem:[%s357 + $0x38] sm:$0xff]
        %v435 = vld [vmem:[%s357 + $0x40] sm:$0xff]
        %v436 = vld [vmem:[%s357 + $0x48] sm:$0xff]
        %v437 = vld [vmem:[%s357 + $0x50] sm:$0xff]
        %v438 = vld [vmem:[%s357 + $0x58] sm:$0xff]
        %v439 = vld [vmem:[%s357 + $0x60] sm:$0xff]
        %v440 = vld [vmem:[%s357 + $0x68] sm:$0xff]
        %v441 = vld [vmem:[%s357 + $0x70] sm:$0xff]
        %v442 = vld [vmem:[%s357 + $0x78] sm:$0xff]
        %v443 = vld [vmem:[%s1] sm:$0xff]
        %v444 = vld [vmem:[%s1 + $0x8] sm:$0xff]
        %v445 = vld [vmem:[%s1 + $0x10] sm:$0xff]
        %v446 = vld [vmem:[%s1 + $0x18] sm:$0xff]
        %v447 = vld [vmem:[%s1 + $0x20] sm:$0xff]
        %v448 = vld [vmem:[%s1 + $0x28] sm:$0xff]
        %v449 = vld [vmem:[%s1 + $0x30] sm:$0xff]
        %v450 = vld [vmem:[%s1 + $0x38] sm:$0xff]
        %v451 = vld [vmem:[%s1 + $0x40] sm:$0xff]
        %v452 = vld [vmem:[%s1 + $0x48] sm:$0xff]
        %v453 = vld [vmem:[%s1 + $0x50] sm:$0xff]
        %v454 = vld [vmem:[%s1 + $0x58] sm:$0xff]
        %v455 = vld [vmem:[%s1 + $0x60] sm:$0xff]
        %v456 = vld [vmem:[%s1 + $0x68] sm:$0xff]
        %v457 = vld [vmem:[%s1 + $0x70] sm:$0xff]
        %v458 = vld [vmem:[%s1 + $0x78] sm:$0xff]
        %v459 = vld [vmem:[%s1 + $0x80] sm:$0xff]
        %v460 = vld [vmem:[%s1 + $0x88] sm:$0xff]
        %v461 = vld [vmem:[%s1 + $0x90] sm:$0xff]
        %v462 = vld [vmem:[%s1 + $0x98] sm:$0xff]
        %v463 = vld [vmem:[%s1 + $0xa0] sm:$0xff]
        %v464 = vld [vmem:[%s1 + $0xa8] sm:$0xff]
        %v465 = vld [vmem:[%s1 + $0xb0] sm:$0xff]
        %v466 = vld [vmem:[%s1 + $0xb8] sm:$0xff]
        %v467 = vld [vmem:[%s1 + $0xc0] sm:$0xff]
        %v468 = vld [vmem:[%s1 + $0xc8] sm:$0xff]
        %v469 = vld [vmem:[%s1 + $0xd0] sm:$0xff]
        %v470 = vld [vmem:[%s1 + $0xd8] sm:$0xff]
        %v471 = vld [vmem:[%s1 + $0xe0] sm:$0xff]
        %v472 = vld [vmem:[%s1 + $0xe8] sm:$0xff]
        %v473 = vld [vmem:[%s1 + $0xf0] sm:$0xff]
        %v474 = vld [vmem:[%s1 + $0xf8] sm:$0xff]
        %v475 = vld [vmem:[%s2] sm:$0xf]
        %v477 = vperm.slane %v475, 0
        %v478 = vperm.slane %v475, 1
        %v479 = vperm.slane %v475, 2
        %v480 = vperm.slane %v475, 3
        %vm485 = vcmask 523264
        %v487 = vsel %vm485, %v427, 0
        %v490 = vsel %vm485, %v428, 0
        %v493 = vsel %vm485, %v429, 0
        %v496 = vsel %vm485, %v430, 0
        %v499 = vsel %vm485, %v431, 0
        %v502 = vsel %vm485, %v432, 0
        %v505 = vsel %vm485, %v433, 0
        %v508 = vsel %vm485, %v434, 0
        %v511 = vsel %vm485, %v435, 0
        %v514 = vsel %vm485, %v436, 0
        %v517 = vsel %vm485, %v437, 0
        %v520 = vsel %vm485, %v438, 0
        %v523 = vsel %vm485, %v439, 0
        %v526 = vsel %vm485, %v440, 0
        %v529 = vsel %vm485, %v441, 0
        %v532 = vsel %vm485, %v442, 0
        %534 = vmatpush.msra.mxu0 0.0
        %535 = vmatpush.msra.mxu0 0.0
        %536 = vmatpush.msra.mxu0 0.0
        %537 = vmatpush.msra.mxu0 0.0
        %538 = vmatpush.msra.mxu0 0.0
        %539 = vmatpush.msra.mxu0 0.0
        %540 = vmatpush.msra.mxu0 0.0
        %541 = vmatpush.msra.mxu0 0.0
        %542 = vmatpush.msra.mxu0 %v471
        %543 = vmatpush.msra.mxu0 %v467
        %544 = vmatpush.msra.mxu0 %v463
        %545 = vmatpush.msra.mxu0 %v459
        %546 = vmatpush.msra.mxu0 %v455
        %547 = vmatpush.msra.mxu0 %v451
        %548 = vmatpush.msra.mxu0 %v447
        %549 = vmatpush.msra.mxu0 %v443
        %550 = vmatmul.f32.gmra.mxu0 %v487
        %v551 = vpop.f32.mrf.mxu0
        %v552 = vadd.f32 %v477, %v551
        %553 = vmatmul.f32.gmra.mxu0 %v490
        %v554 = vpop.f32.mrf.mxu0
        %v555 = vadd.f32 %v477, %v554
        %556 = vmatmul.f32.gmra.mxu0 %v493
        %v557 = vpop.f32.mrf.mxu0
        %v558 = vadd.f32 %v477, %v557
        %559 = vmatmul.f32.gmra.mxu0 %v496
        %v560 = vpop.f32.mrf.mxu0
        %v561 = vadd.f32 %v477, %v560
        %562 = vmatmul.f32.gmra.mxu0 %v499
        %v563 = vpop.f32.mrf.mxu0
        %v564 = vadd.f32 %v477, %v563
        %565 = vmatmul.f32.gmra.mxu0 %v502
        %v566 = vpop.f32.mrf.mxu0
        %v567 = vadd.f32 %v477, %v566
        %568 = vmatmul.f32.gmra.mxu0 %v505
        %v569 = vpop.f32.mrf.mxu0
        %v570 = vadd.f32 %v477, %v569
        %571 = vmatmul.f32.gmra.mxu0 %v508
        %v572 = vpop.f32.mrf.mxu0
        %v573 = vadd.f32 %v477, %v572
        %574 = vmatmul.f32.gmra.mxu0 %v511
        %v575 = vpop.f32.mrf.mxu0
        %v576 = vadd.f32 %v477, %v575
        %577 = vmatmul.f32.gmra.mxu0 %v514
        %v578 = vpop.f32.mrf.mxu0
        %v579 = vadd.f32 %v477, %v578
        %580 = vmatmul.f32.gmra.mxu0 %v517
        %v581 = vpop.f32.mrf.mxu0
        %v582 = vadd.f32 %v477, %v581
        %583 = vmatmul.f32.gmra.mxu0 %v520
        %v584 = vpop.f32.mrf.mxu0
        %v585 = vadd.f32 %v477, %v584
        %586 = vmatmul.f32.gmra.mxu0 %v523
        %v587 = vpop.f32.mrf.mxu0
        %v588 = vadd.f32 %v477, %v587
        %589 = vmatmul.f32.gmra.mxu0 %v526
        %v590 = vpop.f32.mrf.mxu0
        %v591 = vadd.f32 %v477, %v590
        %592 = vmatmul.f32.gmra.mxu0 %v529
        %v593 = vpop.f32.mrf.mxu0
        %v594 = vadd.f32 %v477, %v593
        %595 = vmatmul.f32.gmra.mxu0 %v532
        %v596 = vpop.f32.mrf.mxu0
        %v597 = vadd.f32 %v477, %v596
        %598 = vdwg.mxu0
        %599 = vmatpush.msra.mxu0 0.0
        %600 = vmatpush.msra.mxu0 0.0
        %601 = vmatpush.msra.mxu0 0.0
        %602 = vmatpush.msra.mxu0 0.0
        %603 = vmatpush.msra.mxu0 0.0
        %604 = vmatpush.msra.mxu0 0.0
        %605 = vmatpush.msra.mxu0 0.0
        %606 = vmatpush.msra.mxu0 0.0
        %607 = vmatpush.msra.mxu0 %v472
        %608 = vmatpush.msra.mxu0 %v468
        %609 = vmatpush.msra.mxu0 %v464
        %610 = vmatpush.msra.mxu0 %v460
        %611 = vmatpush.msra.mxu0 %v456
        %612 = vmatpush.msra.mxu0 %v452
        %613 = vmatpush.msra.mxu0 %v448
        %614 = vmatpush.msra.mxu0 %v444
        %615 = vmatmul.f32.gmra.mxu0 %v487
        %v616 = vpop.f32.mrf.mxu0
        %v617 = vadd.f32 %v478, %v616
        %618 = vmatmul.f32.gmra.mxu0 %v490
        %v619 = vpop.f32.mrf.mxu0
        %v620 = vadd.f32 %v478, %v619
        %621 = vmatmul.f32.gmra.mxu0 %v493
        %v622 = vpop.f32.mrf.mxu0
        %v623 = vadd.f32 %v478, %v622
        %624 = vmatmul.f32.gmra.mxu0 %v496
        %v625 = vpop.f32.mrf.mxu0
        %v626 = vadd.f32 %v478, %v625
        %627 = vmatmul.f32.gmra.mxu0 %v499
        %v628 = vpop.f32.mrf.mxu0
        %v629 = vadd.f32 %v478, %v628
        %630 = vmatmul.f32.gmra.mxu0 %v502
        %v631 = vpop.f32.mrf.mxu0
        %v632 = vadd.f32 %v478, %v631
        %633 = vmatmul.f32.gmra.mxu0 %v505
        %v634 = vpop.f32.mrf.mxu0
        %v635 = vadd.f32 %v478, %v634
        %636 = vmatmul.f32.gmra.mxu0 %v508
        %v637 = vpop.f32.mrf.mxu0
        %v638 = vadd.f32 %v478, %v637
        %639 = vmatmul.f32.gmra.mxu0 %v511
        %v640 = vpop.f32.mrf.mxu0
        %v641 = vadd.f32 %v478, %v640
        %642 = vmatmul.f32.gmra.mxu0 %v514
        %v643 = vpop.f32.mrf.mxu0
        %v644 = vadd.f32 %v478, %v643
        %645 = vmatmul.f32.gmra.mxu0 %v517
        %v646 = vpop.f32.mrf.mxu0
        %v647 = vadd.f32 %v478, %v646
        %648 = vmatmul.f32.gmra.mxu0 %v520
        %v649 = vpop.f32.mrf.mxu0
        %v650 = vadd.f32 %v478, %v649
        %651 = vmatmul.f32.gmra.mxu0 %v523
        %v652 = vpop.f32.mrf.mxu0
        %v653 = vadd.f32 %v478, %v652
        %654 = vmatmul.f32.gmra.mxu0 %v526
        %v655 = vpop.f32.mrf.mxu0
        %v656 = vadd.f32 %v478, %v655
        %657 = vmatmul.f32.gmra.mxu0 %v529
        %v658 = vpop.f32.mrf.mxu0
        %v659 = vadd.f32 %v478, %v658
        %660 = vmatmul.f32.gmra.mxu0 %v532
        %v661 = vpop.f32.mrf.mxu0
        %v662 = vadd.f32 %v478, %v661
        %663 = vdwg.mxu0
        %664 = vmatpush.msra.mxu0 0.0
        %665 = vmatpush.msra.mxu0 0.0
        %666 = vmatpush.msra.mxu0 0.0
        %667 = vmatpush.msra.mxu0 0.0
        %668 = vmatpush.msra.mxu0 0.0
        %669 = vmatpush.msra.mxu0 0.0
        %670 = vmatpush.msra.mxu0 0.0
        %671 = vmatpush.msra.mxu0 0.0
        %672 = vmatpush.msra.mxu0 %v473
        %673 = vmatpush.msra.mxu0 %v469
        %674 = vmatpush.msra.mxu0 %v465
        %675 = vmatpush.msra.mxu0 %v461
        %676 = vmatpush.msra.mxu0 %v457
        %677 = vmatpush.msra.mxu0 %v453
        %678 = vmatpush.msra.mxu0 %v449
        %679 = vmatpush.msra.mxu0 %v445
        %680 = vmatmul.f32.gmra.mxu0 %v487
        %v681 = vpop.f32.mrf.mxu0
        %v682 = vadd.f32 %v479, %v681
        %683 = vmatmul.f32.gmra.mxu0 %v490
        %v684 = vpop.f32.mrf.mxu0
        %v685 = vadd.f32 %v479, %v684
        %686 = vmatmul.f32.gmra.mxu0 %v493
        %v687 = vpop.f32.mrf.mxu0
        %v688 = vadd.f32 %v479, %v687
        %689 = vmatmul.f32.gmra.mxu0 %v496
        %v690 = vpop.f32.mrf.mxu0
        %v691 = vadd.f32 %v479, %v690
        %692 = vmatmul.f32.gmra.mxu0 %v499
        %v693 = vpop.f32.mrf.mxu0
        %v694 = vadd.f32 %v479, %v693
        %695 = vmatmul.f32.gmra.mxu0 %v502
        %v696 = vpop.f32.mrf.mxu0
        %v697 = vadd.f32 %v479, %v696
        %698 = vmatmul.f32.gmra.mxu0 %v505
        %v699 = vpop.f32.mrf.mxu0
        %v700 = vadd.f32 %v479, %v699
        %701 = vmatmul.f32.gmra.mxu0 %v508
        %v702 = vpop.f32.mrf.mxu0
        %v703 = vadd.f32 %v479, %v702
        %704 = vmatmul.f32.gmra.mxu0 %v511
        %v705 = vpop.f32.mrf.mxu0
        %v706 = vadd.f32 %v479, %v705
        %707 = vmatmul.f32.gmra.mxu0 %v514
        %v708 = vpop.f32.mrf.mxu0
        %v709 = vadd.f32 %v479, %v708
        %710 = vmatmul.f32.gmra.mxu0 %v517
        %v711 = vpop.f32.mrf.mxu0
        %v712 = vadd.f32 %v479, %v711
        %713 = vmatmul.f32.gmra.mxu0 %v520
        %v714 = vpop.f32.mrf.mxu0
        %v715 = vadd.f32 %v479, %v714
        %716 = vmatmul.f32.gmra.mxu0 %v523
        %v717 = vpop.f32.mrf.mxu0
        %v718 = vadd.f32 %v479, %v717
        %719 = vmatmul.f32.gmra.mxu0 %v526
        %v720 = vpop.f32.mrf.mxu0
        %v721 = vadd.f32 %v479, %v720
        %722 = vmatmul.f32.gmra.mxu0 %v529
        %v723 = vpop.f32.mrf.mxu0
        %v724 = vadd.f32 %v479, %v723
        %725 = vmatmul.f32.gmra.mxu0 %v532
        %v726 = vpop.f32.mrf.mxu0
        %v727 = vadd.f32 %v479, %v726
        %728 = vdwg.mxu0
        %729 = vmatpush.msra.mxu0 0.0
        %730 = vmatpush.msra.mxu0 0.0
        %731 = vmatpush.msra.mxu0 0.0
        %732 = vmatpush.msra.mxu0 0.0
        %733 = vmatpush.msra.mxu0 0.0
        %734 = vmatpush.msra.mxu0 0.0
        %735 = vmatpush.msra.mxu0 0.0
        %736 = vmatpush.msra.mxu0 0.0
        %737 = vmatpush.msra.mxu0 %v474
        %738 = vmatpush.msra.mxu0 %v470
        %739 = vmatpush.msra.mxu0 %v466
        %740 = vmatpush.msra.mxu0 %v462
        %741 = vmatpush.msra.mxu0 %v458
        %742 = vmatpush.msra.mxu0 %v454
        %743 = vmatpush.msra.mxu0 %v450
        %744 = vmatpush.msra.mxu0 %v446
        %745 = vmatmul.f32.gmra.mxu0 %v487
        %v746 = vpop.f32.mrf.mxu0
        %v747 = vadd.f32 %v480, %v746
        %748 = vmatmul.f32.gmra.mxu0 %v490
        %v749 = vpop.f32.mrf.mxu0
        %v750 = vadd.f32 %v480, %v749
        %751 = vmatmul.f32.gmra.mxu0 %v493
        %v752 = vpop.f32.mrf.mxu0
        %v753 = vadd.f32 %v480, %v752
        %754 = vmatmul.f32.gmra.mxu0 %v496
        %v755 = vpop.f32.mrf.mxu0
        %v756 = vadd.f32 %v480, %v755
        %757 = vmatmul.f32.gmra.mxu0 %v499
        %v758 = vpop.f32.mrf.mxu0
        %v759 = vadd.f32 %v480, %v758
        %760 = vmatmul.f32.gmra.mxu0 %v502
        %v761 = vpop.f32.mrf.mxu0
        %v762 = vadd.f32 %v480, %v761
        %763 = vmatmul.f32.gmra.mxu0 %v505
        %v764 = vpop.f32.mrf.mxu0
        %v765 = vadd.f32 %v480, %v764
        %766 = vmatmul.f32.gmra.mxu0 %v508
        %v767 = vpop.f32.mrf.mxu0
        %v768 = vadd.f32 %v480, %v767
        %769 = vmatmul.f32.gmra.mxu0 %v511
        %v770 = vpop.f32.mrf.mxu0
        %v771 = vadd.f32 %v480, %v770
        %772 = vmatmul.f32.gmra.mxu0 %v514
        %v773 = vpop.f32.mrf.mxu0
        %v774 = vadd.f32 %v480, %v773
        %775 = vmatmul.f32.gmra.mxu0 %v517
        %v776 = vpop.f32.mrf.mxu0
        %v777 = vadd.f32 %v480, %v776
        %778 = vmatmul.f32.gmra.mxu0 %v520
        %v779 = vpop.f32.mrf.mxu0
        %v780 = vadd.f32 %v480, %v779
        %781 = vmatmul.f32.gmra.mxu0 %v523
        %v782 = vpop.f32.mrf.mxu0
        %v783 = vadd.f32 %v480, %v782
        %784 = vmatmul.f32.gmra.mxu0 %v526
        %v785 = vpop.f32.mrf.mxu0
        %v786 = vadd.f32 %v480, %v785
        %787 = vmatmul.f32.gmra.mxu0 %v529
        %v788 = vpop.f32.mrf.mxu0
        %v789 = vadd.f32 %v480, %v788
        %790 = vmatmul.f32.gmra.mxu0 %v532
        %v791 = vpop.f32.mrf.mxu0
        %v792 = vadd.f32 %v480, %v791
        %793 = vdwg.mxu0
        %v794 = vld [vmem:[%s3] sm:$0xff]
        %v795 = vld [vmem:[%s3 + $0x8] sm:$0xff]
        %v796 = vld [vmem:[%s3 + $0x10] sm:$0xff]
        %v797 = vld [vmem:[%s3 + $0x18] sm:$0xff]
        %v798 = vld [vmem:[%s3 + $0x20] sm:$0xff]
        %v799 = vld [vmem:[%s3 + $0x28] sm:$0xff]
        %v800 = vld [vmem:[%s3 + $0x30] sm:$0xff]
        %v801 = vld [vmem:[%s3 + $0x38] sm:$0xff]
        %v802 = vld [vmem:[%s3 + $0x40] sm:$0xff]
        %v803 = vld [vmem:[%s3 + $0x48] sm:$0xff]
        %v804 = vld [vmem:[%s3 + $0x50] sm:$0xff]
        %v805 = vld [vmem:[%s3 + $0x58] sm:$0xff]
        %v806 = vld [vmem:[%s3 + $0x60] sm:$0xff]
        %v807 = vld [vmem:[%s3 + $0x68] sm:$0xff]
        %v808 = vld [vmem:[%s3 + $0x70] sm:$0xff]
        %v809 = vld [vmem:[%s3 + $0x78] sm:$0xff]
        %v810 = vld [vmem:[%s3 + $0x80] sm:$0xff]
        %v811 = vld [vmem:[%s3 + $0x88] sm:$0xff]
        %v812 = vld [vmem:[%s3 + $0x90] sm:$0xff]
        %v813 = vld [vmem:[%s3 + $0x98] sm:$0xff]
        %v814 = vld [vmem:[%s3 + $0xa0] sm:$0xff]
        %v815 = vld [vmem:[%s3 + $0xa8] sm:$0xff]
        %v816 = vld [vmem:[%s3 + $0xb0] sm:$0xff]
        %v817 = vld [vmem:[%s3 + $0xb8] sm:$0xff]
        %v818 = vld [vmem:[%s3 + $0xc0] sm:$0xff]
        %v819 = vld [vmem:[%s3 + $0xc8] sm:$0xff]
        %v820 = vld [vmem:[%s3 + $0xd0] sm:$0xff]
        %v821 = vld [vmem:[%s3 + $0xd8] sm:$0xff]
        %v822 = vld [vmem:[%s3 + $0xe0] sm:$0xff]
        %v823 = vld [vmem:[%s3 + $0xe8] sm:$0xff]
        %v824 = vld [vmem:[%s3 + $0xf0] sm:$0xff]
        %v825 = vld [vmem:[%s3 + $0xf8] sm:$0xff]
        %v826 = vld [vmem:[%s4] sm:$0xf]
        %v828 = vperm.slane %v826, 0
        %v829 = vperm.slane %v826, 1
        %v830 = vperm.slane %v826, 2
        %v831 = vperm.slane %v826, 3
        %836 = vmatpush.msra.mxu0 0.0
        %837 = vmatpush.msra.mxu0 0.0
        %838 = vmatpush.msra.mxu0 0.0
        %839 = vmatpush.msra.mxu0 0.0
        %840 = vmatpush.msra.mxu0 0.0
        %841 = vmatpush.msra.mxu0 0.0
        %842 = vmatpush.msra.mxu0 0.0
        %843 = vmatpush.msra.mxu0 0.0
        %844 = vmatpush.msra.mxu0 %v822
        %845 = vmatpush.msra.mxu0 %v818
        %846 = vmatpush.msra.mxu0 %v814
        %847 = vmatpush.msra.mxu0 %v810
        %848 = vmatpush.msra.mxu0 %v806
        %849 = vmatpush.msra.mxu0 %v802
        %850 = vmatpush.msra.mxu0 %v798
        %851 = vmatpush.msra.mxu0 %v794
        %852 = vmatmul.f32.gmra.mxu0 %v487
        %v853 = vpop.f32.mrf.mxu0
        %v854 = vadd.f32 %v828, %v853
        %855 = vmatmul.f32.gmra.mxu0 %v490
        %v856 = vpop.f32.mrf.mxu0
        %v857 = vadd.f32 %v828, %v856
        %858 = vmatmul.f32.gmra.mxu0 %v493
        %v859 = vpop.f32.mrf.mxu0
        %v860 = vadd.f32 %v828, %v859
        %861 = vmatmul.f32.gmra.mxu0 %v496
        %v862 = vpop.f32.mrf.mxu0
        %v863 = vadd.f32 %v828, %v862
        %864 = vmatmul.f32.gmra.mxu0 %v499
        %v865 = vpop.f32.mrf.mxu0
        %v866 = vadd.f32 %v828, %v865
        %867 = vmatmul.f32.gmra.mxu0 %v502
        %v868 = vpop.f32.mrf.mxu0
        %v869 = vadd.f32 %v828, %v868
        %870 = vmatmul.f32.gmra.mxu0 %v505
        %v871 = vpop.f32.mrf.mxu0
        %v872 = vadd.f32 %v828, %v871
        %873 = vmatmul.f32.gmra.mxu0 %v508
        %v874 = vpop.f32.mrf.mxu0
        %v875 = vadd.f32 %v828, %v874
        %876 = vmatmul.f32.gmra.mxu0 %v511
        %v877 = vpop.f32.mrf.mxu0
        %v878 = vadd.f32 %v828, %v877
        %879 = vmatmul.f32.gmra.mxu0 %v514
        %v880 = vpop.f32.mrf.mxu0
        %v881 = vadd.f32 %v828, %v880
        %882 = vmatmul.f32.gmra.mxu0 %v517
        %v883 = vpop.f32.mrf.mxu0
        %v884 = vadd.f32 %v828, %v883
        %885 = vmatmul.f32.gmra.mxu0 %v520
        %v886 = vpop.f32.mrf.mxu0
        %v887 = vadd.f32 %v828, %v886
        %888 = vmatmul.f32.gmra.mxu0 %v523
        %v889 = vpop.f32.mrf.mxu0
        %v890 = vadd.f32 %v828, %v889
        %891 = vmatmul.f32.gmra.mxu0 %v526
        %v892 = vpop.f32.mrf.mxu0
        %v893 = vadd.f32 %v828, %v892
        %894 = vmatmul.f32.gmra.mxu0 %v529
        %v895 = vpop.f32.mrf.mxu0
        %v896 = vadd.f32 %v828, %v895
        %897 = vmatmul.f32.gmra.mxu0 %v532
        %v898 = vpop.f32.mrf.mxu0
        %v899 = vadd.f32 %v828, %v898
        %900 = vdwg.mxu0
        %901 = vmatpush.msra.mxu0 0.0
        %902 = vmatpush.msra.mxu0 0.0
        %903 = vmatpush.msra.mxu0 0.0
        %904 = vmatpush.msra.mxu0 0.0
        %905 = vmatpush.msra.mxu0 0.0
        %906 = vmatpush.msra.mxu0 0.0
        %907 = vmatpush.msra.mxu0 0.0
        %908 = vmatpush.msra.mxu0 0.0
        %909 = vmatpush.msra.mxu0 %v823
        %910 = vmatpush.msra.mxu0 %v819
        %911 = vmatpush.msra.mxu0 %v815
        %912 = vmatpush.msra.mxu0 %v811
        %913 = vmatpush.msra.mxu0 %v807
        %914 = vmatpush.msra.mxu0 %v803
        %915 = vmatpush.msra.mxu0 %v799
        %916 = vmatpush.msra.mxu0 %v795
        %917 = vmatmul.f32.gmra.mxu0 %v487
        %v918 = vpop.f32.mrf.mxu0
        %v919 = vadd.f32 %v829, %v918
        %920 = vmatmul.f32.gmra.mxu0 %v490
        %v921 = vpop.f32.mrf.mxu0
        %v922 = vadd.f32 %v829, %v921
        %923 = vmatmul.f32.gmra.mxu0 %v493
        %v924 = vpop.f32.mrf.mxu0
        %v925 = vadd.f32 %v829, %v924
        %926 = vmatmul.f32.gmra.mxu0 %v496
        %v927 = vpop.f32.mrf.mxu0
        %v928 = vadd.f32 %v829, %v927
        %929 = vmatmul.f32.gmra.mxu0 %v499
        %v930 = vpop.f32.mrf.mxu0
        %v931 = vadd.f32 %v829, %v930
        %932 = vmatmul.f32.gmra.mxu0 %v502
        %v933 = vpop.f32.mrf.mxu0
        %v934 = vadd.f32 %v829, %v933
        %935 = vmatmul.f32.gmra.mxu0 %v505
        %v936 = vpop.f32.mrf.mxu0
        %v937 = vadd.f32 %v829, %v936
        %938 = vmatmul.f32.gmra.mxu0 %v508
        %v939 = vpop.f32.mrf.mxu0
        %v940 = vadd.f32 %v829, %v939
        %941 = vmatmul.f32.gmra.mxu0 %v511
        %v942 = vpop.f32.mrf.mxu0
        %v943 = vadd.f32 %v829, %v942
        %944 = vmatmul.f32.gmra.mxu0 %v514
        %v945 = vpop.f32.mrf.mxu0
        %v946 = vadd.f32 %v829, %v945
        %947 = vmatmul.f32.gmra.mxu0 %v517
        %v948 = vpop.f32.mrf.mxu0
        %v949 = vadd.f32 %v829, %v948
        %950 = vmatmul.f32.gmra.mxu0 %v520
        %v951 = vpop.f32.mrf.mxu0
        %v952 = vadd.f32 %v829, %v951
        %953 = vmatmul.f32.gmra.mxu0 %v523
        %v954 = vpop.f32.mrf.mxu0
        %v955 = vadd.f32 %v829, %v954
        %956 = vmatmul.f32.gmra.mxu0 %v526
        %v957 = vpop.f32.mrf.mxu0
        %v958 = vadd.f32 %v829, %v957
        %959 = vmatmul.f32.gmra.mxu0 %v529
        %v960 = vpop.f32.mrf.mxu0
        %v961 = vadd.f32 %v829, %v960
        %962 = vmatmul.f32.gmra.mxu0 %v532
        %v963 = vpop.f32.mrf.mxu0
        %v964 = vadd.f32 %v829, %v963
        %965 = vdwg.mxu0
        %966 = vmatpush.msra.mxu0 0.0
        %967 = vmatpush.msra.mxu0 0.0
        %968 = vmatpush.msra.mxu0 0.0
        %969 = vmatpush.msra.mxu0 0.0
        %970 = vmatpush.msra.mxu0 0.0
        %971 = vmatpush.msra.mxu0 0.0
        %972 = vmatpush.msra.mxu0 0.0
        %973 = vmatpush.msra.mxu0 0.0
        %974 = vmatpush.msra.mxu0 %v824
        %975 = vmatpush.msra.mxu0 %v820
        %976 = vmatpush.msra.mxu0 %v816
        %977 = vmatpush.msra.mxu0 %v812
        %978 = vmatpush.msra.mxu0 %v808
        %979 = vmatpush.msra.mxu0 %v804
        %980 = vmatpush.msra.mxu0 %v800
        %981 = vmatpush.msra.mxu0 %v796
        %982 = vmatmul.f32.gmra.mxu0 %v487
        %v983 = vpop.f32.mrf.mxu0
        %v984 = vadd.f32 %v830, %v983
        %985 = vmatmul.f32.gmra.mxu0 %v490
        %v986 = vpop.f32.mrf.mxu0
        %v987 = vadd.f32 %v830, %v986
        %988 = vmatmul.f32.gmra.mxu0 %v493
        %v989 = vpop.f32.mrf.mxu0
        %v990 = vadd.f32 %v830, %v989
        %991 = vmatmul.f32.gmra.mxu0 %v496
        %v992 = vpop.f32.mrf.mxu0
        %v993 = vadd.f32 %v830, %v992
        %994 = vmatmul.f32.gmra.mxu0 %v499
        %v995 = vpop.f32.mrf.mxu0
        %v996 = vadd.f32 %v830, %v995
        %997 = vmatmul.f32.gmra.mxu0 %v502
        %v998 = vpop.f32.mrf.mxu0
        %v999 = vadd.f32 %v830, %v998
        %1000 = vmatmul.f32.gmra.mxu0 %v505
        %v1001 = vpop.f32.mrf.mxu0
        %v1002 = vadd.f32 %v830, %v1001
        %1003 = vmatmul.f32.gmra.mxu0 %v508
        %v1004 = vpop.f32.mrf.mxu0
        %v1005 = vadd.f32 %v830, %v1004
        %1006 = vmatmul.f32.gmra.mxu0 %v511
        %v1007 = vpop.f32.mrf.mxu0
        %v1008 = vadd.f32 %v830, %v1007
        %1009 = vmatmul.f32.gmra.mxu0 %v514
        %v1010 = vpop.f32.mrf.mxu0
        %v1011 = vadd.f32 %v830, %v1010
        %1012 = vmatmul.f32.gmra.mxu0 %v517
        %v1013 = vpop.f32.mrf.mxu0
        %v1014 = vadd.f32 %v830, %v1013
        %1015 = vmatmul.f32.gmra.mxu0 %v520
        %v1016 = vpop.f32.mrf.mxu0
        %v1017 = vadd.f32 %v830, %v1016
        %1018 = vmatmul.f32.gmra.mxu0 %v523
        %v1019 = vpop.f32.mrf.mxu0
        %v1020 = vadd.f32 %v830, %v1019
        %1021 = vmatmul.f32.gmra.mxu0 %v526
        %v1022 = vpop.f32.mrf.mxu0
        %v1023 = vadd.f32 %v830, %v1022
        %1024 = vmatmul.f32.gmra.mxu0 %v529
        %v1025 = vpop.f32.mrf.mxu0
        %v1026 = vadd.f32 %v830, %v1025
        %1027 = vmatmul.f32.gmra.mxu0 %v532
        %v1028 = vpop.f32.mrf.mxu0
        %v1029 = vadd.f32 %v830, %v1028
        %1030 = vdwg.mxu0
        %1031 = vmatpush.msra.mxu0 0.0
        %1032 = vmatpush.msra.mxu0 0.0
        %1033 = vmatpush.msra.mxu0 0.0
        %1034 = vmatpush.msra.mxu0 0.0
        %1035 = vmatpush.msra.mxu0 0.0
        %1036 = vmatpush.msra.mxu0 0.0
        %1037 = vmatpush.msra.mxu0 0.0
        %1038 = vmatpush.msra.mxu0 0.0
        %1039 = vmatpush.msra.mxu0 %v825
        %1040 = vmatpush.msra.mxu0 %v821
        %1041 = vmatpush.msra.mxu0 %v817
        %1042 = vmatpush.msra.mxu0 %v813
        %1043 = vmatpush.msra.mxu0 %v809
        %1044 = vmatpush.msra.mxu0 %v805
        %1045 = vmatpush.msra.mxu0 %v801
        %1046 = vmatpush.msra.mxu0 %v797
        %1047 = vmatmul.f32.gmra.mxu0 %v487
        %v1048 = vpop.f32.mrf.mxu0
        %v1049 = vadd.f32 %v831, %v1048
        %1050 = vmatmul.f32.gmra.mxu0 %v490
        %v1051 = vpop.f32.mrf.mxu0
        %v1052 = vadd.f32 %v831, %v1051
        %1053 = vmatmul.f32.gmra.mxu0 %v493
        %v1054 = vpop.f32.mrf.mxu0
        %v1055 = vadd.f32 %v831, %v1054
        %1056 = vmatmul.f32.gmra.mxu0 %v496
        %v1057 = vpop.f32.mrf.mxu0
        %v1058 = vadd.f32 %v831, %v1057
        %1059 = vmatmul.f32.gmra.mxu0 %v499
        %v1060 = vpop.f32.mrf.mxu0
        %v1061 = vadd.f32 %v831, %v1060
        %1062 = vmatmul.f32.gmra.mxu0 %v502
        %v1063 = vpop.f32.mrf.mxu0
        %v1064 = vadd.f32 %v831, %v1063
        %1065 = vmatmul.f32.gmra.mxu0 %v505
        %v1066 = vpop.f32.mrf.mxu0
        %v1067 = vadd.f32 %v831, %v1066
        %1068 = vmatmul.f32.gmra.mxu0 %v508
        %v1069 = vpop.f32.mrf.mxu0
        %v1070 = vadd.f32 %v831, %v1069
        %1071 = vmatmul.f32.gmra.mxu0 %v511
        %v1072 = vpop.f32.mrf.mxu0
        %v1073 = vadd.f32 %v831, %v1072
        %1074 = vmatmul.f32.gmra.mxu0 %v514
        %v1075 = vpop.f32.mrf.mxu0
        %v1076 = vadd.f32 %v831, %v1075
        %1077 = vmatmul.f32.gmra.mxu0 %v517
        %v1078 = vpop.f32.mrf.mxu0
        %v1079 = vadd.f32 %v831, %v1078
        %1080 = vmatmul.f32.gmra.mxu0 %v520
        %v1081 = vpop.f32.mrf.mxu0
        %v1082 = vadd.f32 %v831, %v1081
        %1083 = vmatmul.f32.gmra.mxu0 %v523
        %v1084 = vpop.f32.mrf.mxu0
        %v1085 = vadd.f32 %v831, %v1084
        %1086 = vmatmul.f32.gmra.mxu0 %v526
        %v1087 = vpop.f32.mrf.mxu0
        %v1088 = vadd.f32 %v831, %v1087
        %1089 = vmatmul.f32.gmra.mxu0 %v529
        %v1090 = vpop.f32.mrf.mxu0
        %v1091 = vadd.f32 %v831, %v1090
        %1092 = vmatmul.f32.gmra.mxu0 %v532
        %v1093 = vpop.f32.mrf.mxu0
        %v1094 = vadd.f32 %v831, %v1093
        %1095 = vdwg.mxu0
        %v1096 = vld [vmem:[%s5] sm:$0x1]
        %v1097 = vld [vmem:[%s6] sm:$0x1]
        %1098 = vadd.xlane.f32.xlu0 %v552
        %v1099 = vpop.xlane.xlu0 %1098
        %1100 = vadd.xlane.f32.xlu0 %v555
        %v1101 = vpop.xlane.xlu0 %1100
        %1102 = vadd.xlane.f32.xlu0 %v558
        %v1103 = vpop.xlane.xlu0 %1102
        %1104 = vadd.xlane.f32.xlu0 %v561
        %v1105 = vpop.xlane.xlu0 %1104
        %1106 = vadd.xlane.f32.xlu0 %v564
        %v1107 = vpop.xlane.xlu0 %1106
        %1108 = vadd.xlane.f32.xlu0 %v567
        %v1109 = vpop.xlane.xlu0 %1108
        %1110 = vadd.xlane.f32.xlu0 %v570
        %v1111 = vpop.xlane.xlu0 %1110
        %1112 = vadd.xlane.f32.xlu0 %v573
        %v1113 = vpop.xlane.xlu0 %1112
        %1114 = vadd.xlane.f32.xlu0 %v576
        %v1115 = vpop.xlane.xlu0 %1114
        %1116 = vadd.xlane.f32.xlu0 %v579
        %v1117 = vpop.xlane.xlu0 %1116
        %1118 = vadd.xlane.f32.xlu0 %v582
        %v1119 = vpop.xlane.xlu0 %1118
        %1120 = vadd.xlane.f32.xlu0 %v585
        %v1121 = vpop.xlane.xlu0 %1120
        %1122 = vadd.xlane.f32.xlu0 %v588
        %v1123 = vpop.xlane.xlu0 %1122
        %1124 = vadd.xlane.f32.xlu0 %v591
        %v1125 = vpop.xlane.xlu0 %1124
        %1126 = vadd.xlane.f32.xlu0 %v594
        %v1127 = vpop.xlane.xlu0 %1126
        %1128 = vadd.xlane.f32.xlu0 %v597
        %v1129 = vpop.xlane.xlu0 %1128
        %v1130 = vrcp.pop 128.0
        %v1131 = vmul.f32 128.0, %v1130
        %v1132 = vsub.f32 1.0, %v1131
        %v1133 = vmul.f32 %v1130, %v1132
        %v1134 = vadd.f32 %v1130, %v1133
        %vm1135 = vweird.f32 %v1130
        %v1136 = vsel %vm1135, %v1130, %v1134
        %v1137 = vmul.f32 %v1099, %v1136
        %v1138 = vmul.f32 %v1101, %v1136
        %v1139 = vmul.f32 %v1103, %v1136
        %v1140 = vmul.f32 %v1105, %v1136
        %v1141 = vmul.f32 %v1107, %v1136
        %v1142 = vmul.f32 %v1109, %v1136
        %v1143 = vmul.f32 %v1111, %v1136
        %v1144 = vmul.f32 %v1113, %v1136
        %v1145 = vmul.f32 %v1115, %v1136
        %v1146 = vmul.f32 %v1117, %v1136
        %v1147 = vmul.f32 %v1119, %v1136
        %v1148 = vmul.f32 %v1121, %v1136
        %v1149 = vmul.f32 %v1123, %v1136
        %v1150 = vmul.f32 %v1125, %v1136
        %v1151 = vmul.f32 %v1127, %v1136
        %v1152 = vmul.f32 %v1129, %v1136
        %v1153 = vsub.f32 %v552, %v1137
        %v1154 = vsub.f32 %v555, %v1138
        %v1155 = vsub.f32 %v558, %v1139
        %v1156 = vsub.f32 %v561, %v1140
        %v1157 = vsub.f32 %v564, %v1141
        %v1158 = vsub.f32 %v567, %v1142
        %v1159 = vsub.f32 %v570, %v1143
        %v1160 = vsub.f32 %v573, %v1144
        %v1161 = vsub.f32 %v576, %v1145
        %v1162 = vsub.f32 %v579, %v1146
        %v1163 = vsub.f32 %v582, %v1147
        %v1164 = vsub.f32 %v585, %v1148
        %v1165 = vsub.f32 %v588, %v1149
        %v1166 = vsub.f32 %v591, %v1150
        %v1167 = vsub.f32 %v594, %v1151
        %v1168 = vsub.f32 %v597, %v1152
        %v1169 = vmul.f32 %v1153, %v1153
        %v1170 = vmul.f32 %v1154, %v1154
        %v1171 = vmul.f32 %v1155, %v1155
        %v1172 = vmul.f32 %v1156, %v1156
        %v1173 = vmul.f32 %v1157, %v1157
        %v1174 = vmul.f32 %v1158, %v1158
        %v1175 = vmul.f32 %v1159, %v1159
        %v1176 = vmul.f32 %v1160, %v1160
        %v1177 = vmul.f32 %v1161, %v1161
        %v1178 = vmul.f32 %v1162, %v1162
        %v1179 = vmul.f32 %v1163, %v1163
        %v1180 = vmul.f32 %v1164, %v1164
        %v1181 = vmul.f32 %v1165, %v1165
        %v1182 = vmul.f32 %v1166, %v1166
        %v1183 = vmul.f32 %v1167, %v1167
        %v1184 = vmul.f32 %v1168, %v1168
        %1185 = vadd.xlane.f32.xlu0 %v1169
        %v1186 = vpop.xlane.xlu0 %1185
        %1187 = vadd.xlane.f32.xlu0 %v1170
        %v1188 = vpop.xlane.xlu0 %1187
        %1189 = vadd.xlane.f32.xlu0 %v1171
        %v1190 = vpop.xlane.xlu0 %1189
        %1191 = vadd.xlane.f32.xlu0 %v1172
        %v1192 = vpop.xlane.xlu0 %1191
        %1193 = vadd.xlane.f32.xlu0 %v1173
        %v1194 = vpop.xlane.xlu0 %1193
        %1195 = vadd.xlane.f32.xlu0 %v1174
        %v1196 = vpop.xlane.xlu0 %1195
        %1197 = vadd.xlane.f32.xlu0 %v1175
        %v1198 = vpop.xlane.xlu0 %1197
        %1199 = vadd.xlane.f32.xlu0 %v1176
        %v1200 = vpop.xlane.xlu0 %1199
        %1201 = vadd.xlane.f32.xlu0 %v1177
        %v1202 = vpop.xlane.xlu0 %1201
        %1203 = vadd.xlane.f32.xlu0 %v1178
        %v1204 = vpop.xlane.xlu0 %1203
        %1205 = vadd.xlane.f32.xlu0 %v1179
        %v1206 = vpop.xlane.xlu0 %1205
        %1207 = vadd.xlane.f32.xlu0 %v1180
        %v1208 = vpop.xlane.xlu0 %1207
        %1209 = vadd.xlane.f32.xlu0 %v1181
        %v1210 = vpop.xlane.xlu0 %1209
        %1211 = vadd.xlane.f32.xlu0 %v1182
        %v1212 = vpop.xlane.xlu0 %1211
        %1213 = vadd.xlane.f32.xlu0 %v1183
        %v1214 = vpop.xlane.xlu0 %1213
        %1215 = vadd.xlane.f32.xlu0 %v1184
        %v1216 = vpop.xlane.xlu0 %1215
        %v1217 = vmul.f32 %v1186, %v1136
        %v1218 = vmul.f32 %v1188, %v1136
        %v1219 = vmul.f32 %v1190, %v1136
        %v1220 = vmul.f32 %v1192, %v1136
        %v1221 = vmul.f32 %v1194, %v1136
        %v1222 = vmul.f32 %v1196, %v1136
        %v1223 = vmul.f32 %v1198, %v1136
        %v1224 = vmul.f32 %v1200, %v1136
        %v1225 = vmul.f32 %v1202, %v1136
        %v1226 = vmul.f32 %v1204, %v1136
        %v1227 = vmul.f32 %v1206, %v1136
        %v1228 = vmul.f32 %v1208, %v1136
        %v1229 = vmul.f32 %v1210, %v1136
        %v1230 = vmul.f32 %v1212, %v1136
        %v1231 = vmul.f32 %v1214, %v1136
        %v1232 = vmul.f32 %v1216, %v1136
        %v1233 = vadd.f32 %v1217, 1e-05
        %v1234 = vadd.f32 %v1218, 1e-05
        %v1235 = vadd.f32 %v1219, 1e-05
        %v1236 = vadd.f32 %v1220, 1e-05
        %v1237 = vadd.f32 %v1221, 1e-05
        %v1238 = vadd.f32 %v1222, 1e-05
        %v1239 = vadd.f32 %v1223, 1e-05
        %v1240 = vadd.f32 %v1224, 1e-05
        %v1241 = vadd.f32 %v1225, 1e-05
        %v1242 = vadd.f32 %v1226, 1e-05
        %v1243 = vadd.f32 %v1227, 1e-05
        %v1244 = vadd.f32 %v1228, 1e-05
        %v1245 = vadd.f32 %v1229, 1e-05
        %v1246 = vadd.f32 %v1230, 1e-05
        %v1247 = vadd.f32 %v1231, 1e-05
        %v1248 = vadd.f32 %v1232, 1e-05
        %v1249 = vrsqrt.pop %v1233
        %v1250 = vmul.f32 %v1249, %v1233
        %v1251 = vmul.f32 %v1250, %v1249
        %v1252 = vmul.f32 0.5, %v1251
        %v1253 = vsub.f32 1.5, %v1252
        %v1254 = vmul.f32 %v1249, %v1253
        %vm1255 = vweird.f32 %v1233
        %vm1256 = vweird.f32 %v1249
        %vm1257 = vmor %vm1255, %vm1256
        %v1258 = vsel %vm1257, %v1249, %v1254
        %v1259 = vrsqrt.pop %v1234
        %v1260 = vmul.f32 %v1259, %v1234
        %v1261 = vmul.f32 %v1260, %v1259
        %v1262 = vmul.f32 0.5, %v1261
        %v1263 = vsub.f32 1.5, %v1262
        %v1264 = vmul.f32 %v1259, %v1263
        %vm1265 = vweird.f32 %v1234
        %vm1266 = vweird.f32 %v1259
        %vm1267 = vmor %vm1265, %vm1266
        %v1268 = vsel %vm1267, %v1259, %v1264
        %v1269 = vrsqrt.pop %v1235
        %v1270 = vmul.f32 %v1269, %v1235
        %v1271 = vmul.f32 %v1270, %v1269
        %v1272 = vmul.f32 0.5, %v1271
        %v1273 = vsub.f32 1.5, %v1272
        %v1274 = vmul.f32 %v1269, %v1273
        %vm1275 = vweird.f32 %v1235
        %vm1276 = vweird.f32 %v1269
        %vm1277 = vmor %vm1275, %vm1276
        %v1278 = vsel %vm1277, %v1269, %v1274
        %v1279 = vrsqrt.pop %v1236
        %v1280 = vmul.f32 %v1279, %v1236
        %v1281 = vmul.f32 %v1280, %v1279
        %v1282 = vmul.f32 0.5, %v1281
        %v1283 = vsub.f32 1.5, %v1282
        %v1284 = vmul.f32 %v1279, %v1283
        %vm1285 = vweird.f32 %v1236
        %vm1286 = vweird.f32 %v1279
        %vm1287 = vmor %vm1285, %vm1286
        %v1288 = vsel %vm1287, %v1279, %v1284
        %v1289 = vrsqrt.pop %v1237
        %v1290 = vmul.f32 %v1289, %v1237
        %v1291 = vmul.f32 %v1290, %v1289
        %v1292 = vmul.f32 0.5, %v1291
        %v1293 = vsub.f32 1.5, %v1292
        %v1294 = vmul.f32 %v1289, %v1293
        %vm1295 = vweird.f32 %v1237
        %vm1296 = vweird.f32 %v1289
        %vm1297 = vmor %vm1295, %vm1296
        %v1298 = vsel %vm1297, %v1289, %v1294
        %v1299 = vrsqrt.pop %v1238
        %v1300 = vmul.f32 %v1299, %v1238
        %v1301 = vmul.f32 %v1300, %v1299
        %v1302 = vmul.f32 0.5, %v1301
        %v1303 = vsub.f32 1.5, %v1302
        %v1304 = vmul.f32 %v1299, %v1303
        %vm1305 = vweird.f32 %v1238
        %vm1306 = vweird.f32 %v1299
        %vm1307 = vmor %vm1305, %vm1306
        %v1308 = vsel %vm1307, %v1299, %v1304
        %v1309 = vrsqrt.pop %v1239
        %v1310 = vmul.f32 %v1309, %v1239
        %v1311 = vmul.f32 %v1310, %v1309
        %v1312 = vmul.f32 0.5, %v1311
        %v1313 = vsub.f32 1.5, %v1312
        %v1314 = vmul.f32 %v1309, %v1313
        %vm1315 = vweird.f32 %v1239
        %vm1316 = vweird.f32 %v1309
        %vm1317 = vmor %vm1315, %vm1316
        %v1318 = vsel %vm1317, %v1309, %v1314
        %v1319 = vrsqrt.pop %v1240
        %v1320 = vmul.f32 %v1319, %v1240
        %v1321 = vmul.f32 %v1320, %v1319
        %v1322 = vmul.f32 0.5, %v1321
        %v1323 = vsub.f32 1.5, %v1322
        %v1324 = vmul.f32 %v1319, %v1323
        %vm1325 = vweird.f32 %v1240
        %vm1326 = vweird.f32 %v1319
        %vm1327 = vmor %vm1325, %vm1326
        %v1328 = vsel %vm1327, %v1319, %v1324
        %v1329 = vrsqrt.pop %v1241
        %v1330 = vmul.f32 %v1329, %v1241
        %v1331 = vmul.f32 %v1330, %v1329
        %v1332 = vmul.f32 0.5, %v1331
        %v1333 = vsub.f32 1.5, %v1332
        %v1334 = vmul.f32 %v1329, %v1333
        %vm1335 = vweird.f32 %v1241
        %vm1336 = vweird.f32 %v1329
        %vm1337 = vmor %vm1335, %vm1336
        %v1338 = vsel %vm1337, %v1329, %v1334
        %v1339 = vrsqrt.pop %v1242
        %v1340 = vmul.f32 %v1339, %v1242
        %v1341 = vmul.f32 %v1340, %v1339
        %v1342 = vmul.f32 0.5, %v1341
        %v1343 = vsub.f32 1.5, %v1342
        %v1344 = vmul.f32 %v1339, %v1343
        %vm1345 = vweird.f32 %v1242
        %vm1346 = vweird.f32 %v1339
        %vm1347 = vmor %vm1345, %vm1346
        %v1348 = vsel %vm1347, %v1339, %v1344
        %v1349 = vrsqrt.pop %v1243
        %v1350 = vmul.f32 %v1349, %v1243
        %v1351 = vmul.f32 %v1350, %v1349
        %v1352 = vmul.f32 0.5, %v1351
        %v1353 = vsub.f32 1.5, %v1352
        %v1354 = vmul.f32 %v1349, %v1353
        %vm1355 = vweird.f32 %v1243
        %vm1356 = vweird.f32 %v1349
        %vm1357 = vmor %vm1355, %vm1356
        %v1358 = vsel %vm1357, %v1349, %v1354
        %v1359 = vrsqrt.pop %v1244
        %v1360 = vmul.f32 %v1359, %v1244
        %v1361 = vmul.f32 %v1360, %v1359
        %v1362 = vmul.f32 0.5, %v1361
        %v1363 = vsub.f32 1.5, %v1362
        %v1364 = vmul.f32 %v1359, %v1363
        %vm1365 = vweird.f32 %v1244
        %vm1366 = vweird.f32 %v1359
        %vm1367 = vmor %vm1365, %vm1366
        %v1368 = vsel %vm1367, %v1359, %v1364
        %v1369 = vrsqrt.pop %v1245
        %v1370 = vmul.f32 %v1369, %v1245
        %v1371 = vmul.f32 %v1370, %v1369
        %v1372 = vmul.f32 0.5, %v1371
        %v1373 = vsub.f32 1.5, %v1372
        %v1374 = vmul.f32 %v1369, %v1373
        %vm1375 = vweird.f32 %v1245
        %vm1376 = vweird.f32 %v1369
        %vm1377 = vmor %vm1375, %vm1376
        %v1378 = vsel %vm1377, %v1369, %v1374
        %v1379 = vrsqrt.pop %v1246
        %v1380 = vmul.f32 %v1379, %v1246
        %v1381 = vmul.f32 %v1380, %v1379
        %v1382 = vmul.f32 0.5, %v1381
        %v1383 = vsub.f32 1.5, %v1382
        %v1384 = vmul.f32 %v1379, %v1383
        %vm1385 = vweird.f32 %v1246
        %vm1386 = vweird.f32 %v1379
        %vm1387 = vmor %vm1385, %vm1386
        %v1388 = vsel %vm1387, %v1379, %v1384
        %v1389 = vrsqrt.pop %v1247
        %v1390 = vmul.f32 %v1389, %v1247
        %v1391 = vmul.f32 %v1390, %v1389
        %v1392 = vmul.f32 0.5, %v1391
        %v1393 = vsub.f32 1.5, %v1392
        %v1394 = vmul.f32 %v1389, %v1393
        %vm1395 = vweird.f32 %v1247
        %vm1396 = vweird.f32 %v1389
        %vm1397 = vmor %vm1395, %vm1396
        %v1398 = vsel %vm1397, %v1389, %v1394
        %v1399 = vrsqrt.pop %v1248
        %v1400 = vmul.f32 %v1399, %v1248
        %v1401 = vmul.f32 %v1400, %v1399
        %v1402 = vmul.f32 0.5, %v1401
        %v1403 = vsub.f32 1.5, %v1402
        %v1404 = vmul.f32 %v1399, %v1403
        %vm1405 = vweird.f32 %v1248
        %vm1406 = vweird.f32 %v1399
        %vm1407 = vmor %vm1405, %vm1406
        %v1408 = vsel %vm1407, %v1399, %v1404
        %v1409 = vmul.f32 %v1153, %v1258
        %v1410 = vmul.f32 %v1154, %v1268
        %v1411 = vmul.f32 %v1155, %v1278
        %v1412 = vmul.f32 %v1156, %v1288
        %v1413 = vmul.f32 %v1157, %v1298
        %v1414 = vmul.f32 %v1158, %v1308
        %v1415 = vmul.f32 %v1159, %v1318
        %v1416 = vmul.f32 %v1160, %v1328
        %v1417 = vmul.f32 %v1161, %v1338
        %v1418 = vmul.f32 %v1162, %v1348
        %v1419 = vmul.f32 %v1163, %v1358
        %v1420 = vmul.f32 %v1164, %v1368
        %v1421 = vmul.f32 %v1165, %v1378
        %v1422 = vmul.f32 %v1166, %v1388
        %v1423 = vmul.f32 %v1167, %v1398
        %v1424 = vmul.f32 %v1168, %v1408
        %v1425 = vperm.slane %v1096, 0
        %v1426 = vmul.f32 %v1409, %v1425
        %v1427 = vmul.f32 %v1410, %v1425
        %v1428 = vmul.f32 %v1411, %v1425
        %v1429 = vmul.f32 %v1412, %v1425
        %v1430 = vmul.f32 %v1413, %v1425
        %v1431 = vmul.f32 %v1414, %v1425
        %v1432 = vmul.f32 %v1415, %v1425
        %v1433 = vmul.f32 %v1416, %v1425
        %v1434 = vmul.f32 %v1417, %v1425
        %v1435 = vmul.f32 %v1418, %v1425
        %v1436 = vmul.f32 %v1419, %v1425
        %v1437 = vmul.f32 %v1420, %v1425
        %v1438 = vmul.f32 %v1421, %v1425
        %v1439 = vmul.f32 %v1422, %v1425
        %v1440 = vmul.f32 %v1423, %v1425
        %v1441 = vmul.f32 %v1424, %v1425
        %v1442 = vperm.slane %v1097, 0
        %v1443 = vadd.f32 %v1426, %v1442
        %v1444 = vadd.f32 %v1427, %v1442
        %v1445 = vadd.f32 %v1428, %v1442
        %v1446 = vadd.f32 %v1429, %v1442
        %v1447 = vadd.f32 %v1430, %v1442
        %v1448 = vadd.f32 %v1431, %v1442
        %v1449 = vadd.f32 %v1432, %v1442
        %v1450 = vadd.f32 %v1433, %v1442
        %v1451 = vadd.f32 %v1434, %v1442
        %v1452 = vadd.f32 %v1435, %v1442
        %v1453 = vadd.f32 %v1436, %v1442
        %v1454 = vadd.f32 %v1437, %v1442
        %v1455 = vadd.f32 %v1438, %v1442
        %v1456 = vadd.f32 %v1439, %v1442
        %v1457 = vadd.f32 %v1440, %v1442
        %v1458 = vadd.f32 %v1441, %v1442
        %v1459 = vld [vmem:[%s7] sm:$0x1]
        %v1460 = vld [vmem:[%s8] sm:$0x1]
        %1461 = vadd.xlane.f32.xlu0 %v854
        %v1462 = vpop.xlane.xlu0 %1461
        %1463 = vadd.xlane.f32.xlu0 %v857
        %v1464 = vpop.xlane.xlu0 %1463
        %1465 = vadd.xlane.f32.xlu0 %v860
        %v1466 = vpop.xlane.xlu0 %1465
        %1467 = vadd.xlane.f32.xlu0 %v863
        %v1468 = vpop.xlane.xlu0 %1467
        %1469 = vadd.xlane.f32.xlu0 %v866
        %v1470 = vpop.xlane.xlu0 %1469
        %1471 = vadd.xlane.f32.xlu0 %v869
        %v1472 = vpop.xlane.xlu0 %1471
        %1473 = vadd.xlane.f32.xlu0 %v872
        %v1474 = vpop.xlane.xlu0 %1473
        %1475 = vadd.xlane.f32.xlu0 %v875
        %v1476 = vpop.xlane.xlu0 %1475
        %1477 = vadd.xlane.f32.xlu0 %v878
        %v1478 = vpop.xlane.xlu0 %1477
        %1479 = vadd.xlane.f32.xlu0 %v881
        %v1480 = vpop.xlane.xlu0 %1479
        %1481 = vadd.xlane.f32.xlu0 %v884
        %v1482 = vpop.xlane.xlu0 %1481
        %1483 = vadd.xlane.f32.xlu0 %v887
        %v1484 = vpop.xlane.xlu0 %1483
        %1485 = vadd.xlane.f32.xlu0 %v890
        %v1486 = vpop.xlane.xlu0 %1485
        %1487 = vadd.xlane.f32.xlu0 %v893
        %v1488 = vpop.xlane.xlu0 %1487
        %1489 = vadd.xlane.f32.xlu0 %v896
        %v1490 = vpop.xlane.xlu0 %1489
        %1491 = vadd.xlane.f32.xlu0 %v899
        %v1492 = vpop.xlane.xlu0 %1491
        %v1493 = vmul.f32 %v1462, %v1136
        %v1494 = vmul.f32 %v1464, %v1136
        %v1495 = vmul.f32 %v1466, %v1136
        %v1496 = vmul.f32 %v1468, %v1136
        %v1497 = vmul.f32 %v1470, %v1136
        %v1498 = vmul.f32 %v1472, %v1136
        %v1499 = vmul.f32 %v1474, %v1136
        %v1500 = vmul.f32 %v1476, %v1136
        %v1501 = vmul.f32 %v1478, %v1136
        %v1502 = vmul.f32 %v1480, %v1136
        %v1503 = vmul.f32 %v1482, %v1136
        %v1504 = vmul.f32 %v1484, %v1136
        %v1505 = vmul.f32 %v1486, %v1136
        %v1506 = vmul.f32 %v1488, %v1136
        %v1507 = vmul.f32 %v1490, %v1136
        %v1508 = vmul.f32 %v1492, %v1136
        %v1509 = vsub.f32 %v854, %v1493
        %v1510 = vsub.f32 %v857, %v1494
        %v1511 = vsub.f32 %v860, %v1495
        %v1512 = vsub.f32 %v863, %v1496
        %v1513 = vsub.f32 %v866, %v1497
        %v1514 = vsub.f32 %v869, %v1498
        %v1515 = vsub.f32 %v872, %v1499
        %v1516 = vsub.f32 %v875, %v1500
        %v1517 = vsub.f32 %v878, %v1501
        %v1518 = vsub.f32 %v881, %v1502
        %v1519 = vsub.f32 %v884, %v1503
        %v1520 = vsub.f32 %v887, %v1504
        %v1521 = vsub.f32 %v890, %v1505
        %v1522 = vsub.f32 %v893, %v1506
        %v1523 = vsub.f32 %v896, %v1507
        %v1524 = vsub.f32 %v899, %v1508
        %v1525 = vmul.f32 %v1509, %v1509
        %v1526 = vmul.f32 %v1510, %v1510
        %v1527 = vmul.f32 %v1511, %v1511
        %v1528 = vmul.f32 %v1512, %v1512
        %v1529 = vmul.f32 %v1513, %v1513
        %v1530 = vmul.f32 %v1514, %v1514
        %v1531 = vmul.f32 %v1515, %v1515
        %v1532 = vmul.f32 %v1516, %v1516
        %v1533 = vmul.f32 %v1517, %v1517
        %v1534 = vmul.f32 %v1518, %v1518
        %v1535 = vmul.f32 %v1519, %v1519
        %v1536 = vmul.f32 %v1520, %v1520
        %v1537 = vmul.f32 %v1521, %v1521
        %v1538 = vmul.f32 %v1522, %v1522
        %v1539 = vmul.f32 %v1523, %v1523
        %v1540 = vmul.f32 %v1524, %v1524
        %1541 = vadd.xlane.f32.xlu0 %v1525
        %v1542 = vpop.xlane.xlu0 %1541
        %1543 = vadd.xlane.f32.xlu0 %v1526
        %v1544 = vpop.xlane.xlu0 %1543
        %1545 = vadd.xlane.f32.xlu0 %v1527
        %v1546 = vpop.xlane.xlu0 %1545
        %1547 = vadd.xlane.f32.xlu0 %v1528
        %v1548 = vpop.xlane.xlu0 %1547
        %1549 = vadd.xlane.f32.xlu0 %v1529
        %v1550 = vpop.xlane.xlu0 %1549
        %1551 = vadd.xlane.f32.xlu0 %v1530
        %v1552 = vpop.xlane.xlu0 %1551
        %1553 = vadd.xlane.f32.xlu0 %v1531
        %v1554 = vpop.xlane.xlu0 %1553
        %1555 = vadd.xlane.f32.xlu0 %v1532
        %v1556 = vpop.xlane.xlu0 %1555
        %1557 = vadd.xlane.f32.xlu0 %v1533
        %v1558 = vpop.xlane.xlu0 %1557
        %1559 = vadd.xlane.f32.xlu0 %v1534
        %v1560 = vpop.xlane.xlu0 %1559
        %1561 = vadd.xlane.f32.xlu0 %v1535
        %v1562 = vpop.xlane.xlu0 %1561
        %1563 = vadd.xlane.f32.xlu0 %v1536
        %v1564 = vpop.xlane.xlu0 %1563
        %1565 = vadd.xlane.f32.xlu0 %v1537
        %v1566 = vpop.xlane.xlu0 %1565
        %1567 = vadd.xlane.f32.xlu0 %v1538
        %v1568 = vpop.xlane.xlu0 %1567
        %1569 = vadd.xlane.f32.xlu0 %v1539
        %v1570 = vpop.xlane.xlu0 %1569
        %1571 = vadd.xlane.f32.xlu0 %v1540
        %v1572 = vpop.xlane.xlu0 %1571
        %v1573 = vmul.f32 %v1542, %v1136
        %v1574 = vmul.f32 %v1544, %v1136
        %v1575 = vmul.f32 %v1546, %v1136
        %v1576 = vmul.f32 %v1548, %v1136
        %v1577 = vmul.f32 %v1550, %v1136
        %v1578 = vmul.f32 %v1552, %v1136
        %v1579 = vmul.f32 %v1554, %v1136
        %v1580 = vmul.f32 %v1556, %v1136
        %v1581 = vmul.f32 %v1558, %v1136
        %v1582 = vmul.f32 %v1560, %v1136
        %v1583 = vmul.f32 %v1562, %v1136
        %v1584 = vmul.f32 %v1564, %v1136
        %v1585 = vmul.f32 %v1566, %v1136
        %v1586 = vmul.f32 %v1568, %v1136
        %v1587 = vmul.f32 %v1570, %v1136
        %v1588 = vmul.f32 %v1572, %v1136
        %v1589 = vadd.f32 %v1573, 1e-05
        %v1590 = vadd.f32 %v1574, 1e-05
        %v1591 = vadd.f32 %v1575, 1e-05
        %v1592 = vadd.f32 %v1576, 1e-05
        %v1593 = vadd.f32 %v1577, 1e-05
        %v1594 = vadd.f32 %v1578, 1e-05
        %v1595 = vadd.f32 %v1579, 1e-05
        %v1596 = vadd.f32 %v1580, 1e-05
        %v1597 = vadd.f32 %v1581, 1e-05
        %v1598 = vadd.f32 %v1582, 1e-05
        %v1599 = vadd.f32 %v1583, 1e-05
        %v1600 = vadd.f32 %v1584, 1e-05
        %v1601 = vadd.f32 %v1585, 1e-05
        %v1602 = vadd.f32 %v1586, 1e-05
        %v1603 = vadd.f32 %v1587, 1e-05
        %v1604 = vadd.f32 %v1588, 1e-05
        %v1605 = vrsqrt.pop %v1589
        %v1606 = vmul.f32 %v1605, %v1589
        %v1607 = vmul.f32 %v1606, %v1605
        %v1608 = vmul.f32 0.5, %v1607
        %v1609 = vsub.f32 1.5, %v1608
        %v1610 = vmul.f32 %v1605, %v1609
        %vm1611 = vweird.f32 %v1589
        %vm1612 = vweird.f32 %v1605
        %vm1613 = vmor %vm1611, %vm1612
        %v1614 = vsel %vm1613, %v1605, %v1610
        %v1615 = vrsqrt.pop %v1590
        %v1616 = vmul.f32 %v1615, %v1590
        %v1617 = vmul.f32 %v1616, %v1615
        %v1618 = vmul.f32 0.5, %v1617
        %v1619 = vsub.f32 1.5, %v1618
        %v1620 = vmul.f32 %v1615, %v1619
        %vm1621 = vweird.f32 %v1590
        %vm1622 = vweird.f32 %v1615
        %vm1623 = vmor %vm1621, %vm1622
        %v1624 = vsel %vm1623, %v1615, %v1620
        %v1625 = vrsqrt.pop %v1591
        %v1626 = vmul.f32 %v1625, %v1591
        %v1627 = vmul.f32 %v1626, %v1625
        %v1628 = vmul.f32 0.5, %v1627
        %v1629 = vsub.f32 1.5, %v1628
        %v1630 = vmul.f32 %v1625, %v1629
        %vm1631 = vweird.f32 %v1591
        %vm1632 = vweird.f32 %v1625
        %vm1633 = vmor %vm1631, %vm1632
        %v1634 = vsel %vm1633, %v1625, %v1630
        %v1635 = vrsqrt.pop %v1592
        %v1636 = vmul.f32 %v1635, %v1592
        %v1637 = vmul.f32 %v1636, %v1635
        %v1638 = vmul.f32 0.5, %v1637
        %v1639 = vsub.f32 1.5, %v1638
        %v1640 = vmul.f32 %v1635, %v1639
        %vm1641 = vweird.f32 %v1592
        %vm1642 = vweird.f32 %v1635
        %vm1643 = vmor %vm1641, %vm1642
        %v1644 = vsel %vm1643, %v1635, %v1640
        %v1645 = vrsqrt.pop %v1593
        %v1646 = vmul.f32 %v1645, %v1593
        %v1647 = vmul.f32 %v1646, %v1645
        %v1648 = vmul.f32 0.5, %v1647
        %v1649 = vsub.f32 1.5, %v1648
        %v1650 = vmul.f32 %v1645, %v1649
        %vm1651 = vweird.f32 %v1593
        %vm1652 = vweird.f32 %v1645
        %vm1653 = vmor %vm1651, %vm1652
        %v1654 = vsel %vm1653, %v1645, %v1650
        %v1655 = vrsqrt.pop %v1594
        %v1656 = vmul.f32 %v1655, %v1594
        %v1657 = vmul.f32 %v1656, %v1655
        %v1658 = vmul.f32 0.5, %v1657
        %v1659 = vsub.f32 1.5, %v1658
        %v1660 = vmul.f32 %v1655, %v1659
        %vm1661 = vweird.f32 %v1594
        %vm1662 = vweird.f32 %v1655
        %vm1663 = vmor %vm1661, %vm1662
        %v1664 = vsel %vm1663, %v1655, %v1660
        %v1665 = vrsqrt.pop %v1595
        %v1666 = vmul.f32 %v1665, %v1595
        %v1667 = vmul.f32 %v1666, %v1665
        %v1668 = vmul.f32 0.5, %v1667
        %v1669 = vsub.f32 1.5, %v1668
        %v1670 = vmul.f32 %v1665, %v1669
        %vm1671 = vweird.f32 %v1595
        %vm1672 = vweird.f32 %v1665
        %vm1673 = vmor %vm1671, %vm1672
        %v1674 = vsel %vm1673, %v1665, %v1670
        %v1675 = vrsqrt.pop %v1596
        %v1676 = vmul.f32 %v1675, %v1596
        %v1677 = vmul.f32 %v1676, %v1675
        %v1678 = vmul.f32 0.5, %v1677
        %v1679 = vsub.f32 1.5, %v1678
        %v1680 = vmul.f32 %v1675, %v1679
        %vm1681 = vweird.f32 %v1596
        %vm1682 = vweird.f32 %v1675
        %vm1683 = vmor %vm1681, %vm1682
        %v1684 = vsel %vm1683, %v1675, %v1680
        %v1685 = vrsqrt.pop %v1597
        %v1686 = vmul.f32 %v1685, %v1597
        %v1687 = vmul.f32 %v1686, %v1685
        %v1688 = vmul.f32 0.5, %v1687
        %v1689 = vsub.f32 1.5, %v1688
        %v1690 = vmul.f32 %v1685, %v1689
        %vm1691 = vweird.f32 %v1597
        %vm1692 = vweird.f32 %v1685
        %vm1693 = vmor %vm1691, %vm1692
        %v1694 = vsel %vm1693, %v1685, %v1690
        %v1695 = vrsqrt.pop %v1598
        %v1696 = vmul.f32 %v1695, %v1598
        %v1697 = vmul.f32 %v1696, %v1695
        %v1698 = vmul.f32 0.5, %v1697
        %v1699 = vsub.f32 1.5, %v1698
        %v1700 = vmul.f32 %v1695, %v1699
        %vm1701 = vweird.f32 %v1598
        %vm1702 = vweird.f32 %v1695
        %vm1703 = vmor %vm1701, %vm1702
        %v1704 = vsel %vm1703, %v1695, %v1700
        %v1705 = vrsqrt.pop %v1599
        %v1706 = vmul.f32 %v1705, %v1599
        %v1707 = vmul.f32 %v1706, %v1705
        %v1708 = vmul.f32 0.5, %v1707
        %v1709 = vsub.f32 1.5, %v1708
        %v1710 = vmul.f32 %v1705, %v1709
        %vm1711 = vweird.f32 %v1599
        %vm1712 = vweird.f32 %v1705
        %vm1713 = vmor %vm1711, %vm1712
        %v1714 = vsel %vm1713, %v1705, %v1710
        %v1715 = vrsqrt.pop %v1600
        %v1716 = vmul.f32 %v1715, %v1600
        %v1717 = vmul.f32 %v1716, %v1715
        %v1718 = vmul.f32 0.5, %v1717
        %v1719 = vsub.f32 1.5, %v1718
        %v1720 = vmul.f32 %v1715, %v1719
        %vm1721 = vweird.f32 %v1600
        %vm1722 = vweird.f32 %v1715
        %vm1723 = vmor %vm1721, %vm1722
        %v1724 = vsel %vm1723, %v1715, %v1720
        %v1725 = vrsqrt.pop %v1601
        %v1726 = vmul.f32 %v1725, %v1601
        %v1727 = vmul.f32 %v1726, %v1725
        %v1728 = vmul.f32 0.5, %v1727
        %v1729 = vsub.f32 1.5, %v1728
        %v1730 = vmul.f32 %v1725, %v1729
        %vm1731 = vweird.f32 %v1601
        %vm1732 = vweird.f32 %v1725
        %vm1733 = vmor %vm1731, %vm1732
        %v1734 = vsel %vm1733, %v1725, %v1730
        %v1735 = vrsqrt.pop %v1602
        %v1736 = vmul.f32 %v1735, %v1602
        %v1737 = vmul.f32 %v1736, %v1735
        %v1738 = vmul.f32 0.5, %v1737
        %v1739 = vsub.f32 1.5, %v1738
        %v1740 = vmul.f32 %v1735, %v1739
        %vm1741 = vweird.f32 %v1602
        %vm1742 = vweird.f32 %v1735
        %vm1743 = vmor %vm1741, %vm1742
        %v1744 = vsel %vm1743, %v1735, %v1740
        %v1745 = vrsqrt.pop %v1603
        %v1746 = vmul.f32 %v1745, %v1603
        %v1747 = vmul.f32 %v1746, %v1745
        %v1748 = vmul.f32 0.5, %v1747
        %v1749 = vsub.f32 1.5, %v1748
        %v1750 = vmul.f32 %v1745, %v1749
        %vm1751 = vweird.f32 %v1603
        %vm1752 = vweird.f32 %v1745
        %vm1753 = vmor %vm1751, %vm1752
        %v1754 = vsel %vm1753, %v1745, %v1750
        %v1755 = vrsqrt.pop %v1604
        %v1756 = vmul.f32 %v1755, %v1604
        %v1757 = vmul.f32 %v1756, %v1755
        %v1758 = vmul.f32 0.5, %v1757
        %v1759 = vsub.f32 1.5, %v1758
        %v1760 = vmul.f32 %v1755, %v1759
        %vm1761 = vweird.f32 %v1604
        %vm1762 = vweird.f32 %v1755
        %vm1763 = vmor %vm1761, %vm1762
        %v1764 = vsel %vm1763, %v1755, %v1760
        %v1765 = vmul.f32 %v1509, %v1614
        %v1766 = vmul.f32 %v1510, %v1624
        %v1767 = vmul.f32 %v1511, %v1634
        %v1768 = vmul.f32 %v1512, %v1644
        %v1769 = vmul.f32 %v1513, %v1654
        %v1770 = vmul.f32 %v1514, %v1664
        %v1771 = vmul.f32 %v1515, %v1674
        %v1772 = vmul.f32 %v1516, %v1684
        %v1773 = vmul.f32 %v1517, %v1694
        %v1774 = vmul.f32 %v1518, %v1704
        %v1775 = vmul.f32 %v1519, %v1714
        %v1776 = vmul.f32 %v1520, %v1724
        %v1777 = vmul.f32 %v1521, %v1734
        %v1778 = vmul.f32 %v1522, %v1744
        %v1779 = vmul.f32 %v1523, %v1754
        %v1780 = vmul.f32 %v1524, %v1764
        %v1781 = vperm.slane %v1459, 0
        %v1782 = vmul.f32 %v1765, %v1781
        %v1783 = vmul.f32 %v1766, %v1781
        %v1784 = vmul.f32 %v1767, %v1781
        %v1785 = vmul.f32 %v1768, %v1781
        %v1786 = vmul.f32 %v1769, %v1781
        %v1787 = vmul.f32 %v1770, %v1781
        %v1788 = vmul.f32 %v1771, %v1781
        %v1789 = vmul.f32 %v1772, %v1781
        %v1790 = vmul.f32 %v1773, %v1781
        %v1791 = vmul.f32 %v1774, %v1781
        %v1792 = vmul.f32 %v1775, %v1781
        %v1793 = vmul.f32 %v1776, %v1781
        %v1794 = vmul.f32 %v1777, %v1781
        %v1795 = vmul.f32 %v1778, %v1781
        %v1796 = vmul.f32 %v1779, %v1781
        %v1797 = vmul.f32 %v1780, %v1781
        %v1798 = vperm.slane %v1460, 0
        %v1799 = vadd.f32 %v1782, %v1798
        %v1800 = vadd.f32 %v1783, %v1798
        %v1801 = vadd.f32 %v1784, %v1798
        %v1802 = vadd.f32 %v1785, %v1798
        %v1803 = vadd.f32 %v1786, %v1798
        %v1804 = vadd.f32 %v1787, %v1798
        %v1805 = vadd.f32 %v1788, %v1798
        %v1806 = vadd.f32 %v1789, %v1798
        %v1807 = vadd.f32 %v1790, %v1798
        %v1808 = vadd.f32 %v1791, %v1798
        %v1809 = vadd.f32 %v1792, %v1798
        %v1810 = vadd.f32 %v1793, %v1798
        %v1811 = vadd.f32 %v1794, %v1798
        %v1812 = vadd.f32 %v1795, %v1798
        %v1813 = vadd.f32 %v1796, %v1798
        %v1814 = vadd.f32 %v1797, %v1798
        %v1815 = vld [vmem:[%s348] sm:$0xff]
        %v1816 = vld [vmem:[%s348 + $0x8] sm:$0xff]
        %v1817 = vld [vmem:[%s348 + $0x10] sm:$0xff]
        %v1818 = vld [vmem:[%s348 + $0x18] sm:$0xff]
        %v1819 = vld [vmem:[%s348 + $0x20] sm:$0xff]
        %v1820 = vld [vmem:[%s348 + $0x28] sm:$0xff]
        %v1821 = vld [vmem:[%s348 + $0x30] sm:$0xff]
        %v1822 = vld [vmem:[%s348 + $0x38] sm:$0xff]
        %v1823 = vld [vmem:[%s348 + $0x40] sm:$0xff]
        %v1824 = vld [vmem:[%s348 + $0x48] sm:$0xff]
        %v1825 = vld [vmem:[%s348 + $0x50] sm:$0xff]
        %v1826 = vld [vmem:[%s348 + $0x58] sm:$0xff]
        %v1827 = vld [vmem:[%s348 + $0x60] sm:$0xff]
        %v1828 = vld [vmem:[%s348 + $0x68] sm:$0xff]
        %v1829 = vld [vmem:[%s348 + $0x70] sm:$0xff]
        %v1830 = vld [vmem:[%s348 + $0x78] sm:$0xff]
        %1831 = vxpose.xlu0.b32.start [1/16] %v1443, 128
        %1832 = vxpose.xlu0.b32.cont [2/16] %v1444, 128
        %1833 = vxpose.xlu0.b32.cont [3/16] %v1445, 128
        %1834 = vxpose.xlu0.b32.cont [4/16] %v1446, 128
        %1835 = vxpose.xlu0.b32.cont [5/16] %v1447, 128
        %1836 = vxpose.xlu0.b32.cont [6/16] %v1448, 128
        %1837 = vxpose.xlu0.b32.cont [7/16] %v1449, 128
        %1838 = vxpose.xlu0.b32.cont [8/16] %v1450, 128
        %1839 = vxpose.xlu0.b32.cont [9/16] %v1451, 128
        %1840 = vxpose.xlu0.b32.cont [10/16] %v1452, 128
        %1841 = vxpose.xlu0.b32.cont [11/16] %v1453, 128
        %1842 = vxpose.xlu0.b32.cont [12/16] %v1454, 128
        %1843 = vxpose.xlu0.b32.cont [13/16] %v1455, 128
        %1844 = vxpose.xlu0.b32.cont [14/16] %v1456, 128
        %1845 = vxpose.xlu0.b32.cont [15/16] %v1457, 128
        %1846 = vxpose.xlu0.b32.end [16/16] %v1458, 128
        %v1847 = vpop.trf.xlu0
        %v1848 = vpop.trf.xlu0
        %v1849 = vpop.trf.xlu0
        %v1850 = vpop.trf.xlu0
        %v1851 = vpop.trf.xlu0
        %v1852 = vpop.trf.xlu0
        %v1853 = vpop.trf.xlu0
        %v1854 = vpop.trf.xlu0
        %v1855 = vpop.trf.xlu0
        %v1856 = vpop.trf.xlu0
        %v1857 = vpop.trf.xlu0
        %v1858 = vpop.trf.xlu0
        %v1859 = vpop.trf.xlu0
        %v1860 = vpop.trf.xlu0
        %v1861 = vpop.trf.xlu0
        %v1862 = vpop.trf.xlu0
        %1863 = vmatpush.msra.mxu0 %v1814
        %1864 = vmatpush.msra.mxu0 %v1813
        %1865 = vmatpush.msra.mxu0 %v1812
        %1866 = vmatpush.msra.mxu0 %v1811
        %1867 = vmatpush.msra.mxu0 %v1810
        %1868 = vmatpush.msra.mxu0 %v1809
        %1869 = vmatpush.msra.mxu0 %v1808
        %1870 = vmatpush.msra.mxu0 %v1807
        %1871 = vmatpush.msra.mxu0 %v1806
        %1872 = vmatpush.msra.mxu0 %v1805
        %1873 = vmatpush.msra.mxu0 %v1804
        %1874 = vmatpush.msra.mxu0 %v1803
        %1875 = vmatpush.msra.mxu0 %v1802
        %1876 = vmatpush.msra.mxu0 %v1801
        %1877 = vmatpush.msra.mxu0 %v1800
        %1878 = vmatpush.msra.mxu0 %v1799
        %1879 = vmatmul.f32.gmra.mxu0 %v1847
        %v1880 = vpop.f32.mrf.mxu0
        %v1881 = vadd.f32 0.0, %v1880
        %1882 = vmatmul.f32.gmra.mxu0 %v1848
        %v1883 = vpop.f32.mrf.mxu0
        %v1884 = vadd.f32 0.0, %v1883
        %1885 = vmatmul.f32.gmra.mxu0 %v1849
        %v1886 = vpop.f32.mrf.mxu0
        %v1887 = vadd.f32 0.0, %v1886
        %1888 = vmatmul.f32.gmra.mxu0 %v1850
        %v1889 = vpop.f32.mrf.mxu0
        %v1890 = vadd.f32 0.0, %v1889
        %1891 = vmatmul.f32.gmra.mxu0 %v1851
        %v1892 = vpop.f32.mrf.mxu0
        %v1893 = vadd.f32 0.0, %v1892
        %1894 = vmatmul.f32.gmra.mxu0 %v1852
        %v1895 = vpop.f32.mrf.mxu0
        %v1896 = vadd.f32 0.0, %v1895
        %1897 = vmatmul.f32.gmra.mxu0 %v1853
        %v1898 = vpop.f32.mrf.mxu0
        %v1899 = vadd.f32 0.0, %v1898
        %1900 = vmatmul.f32.gmra.mxu0 %v1854
        %v1901 = vpop.f32.mrf.mxu0
        %v1902 = vadd.f32 0.0, %v1901
        %1903 = vmatmul.f32.gmra.mxu0 %v1855
        %v1904 = vpop.f32.mrf.mxu0
        %v1905 = vadd.f32 0.0, %v1904
        %1906 = vmatmul.f32.gmra.mxu0 %v1856
        %v1907 = vpop.f32.mrf.mxu0
        %v1908 = vadd.f32 0.0, %v1907
        %1909 = vmatmul.f32.gmra.mxu0 %v1857
        %v1910 = vpop.f32.mrf.mxu0
        %v1911 = vadd.f32 0.0, %v1910
        %1912 = vmatmul.f32.gmra.mxu0 %v1858
        %v1913 = vpop.f32.mrf.mxu0
        %v1914 = vadd.f32 0.0, %v1913
        %1915 = vmatmul.f32.gmra.mxu0 %v1859
        %v1916 = vpop.f32.mrf.mxu0
        %v1917 = vadd.f32 0.0, %v1916
        %1918 = vmatmul.f32.gmra.mxu0 %v1860
        %v1919 = vpop.f32.mrf.mxu0
        %v1920 = vadd.f32 0.0, %v1919
        %1921 = vmatmul.f32.gmra.mxu0 %v1861
        %v1922 = vpop.f32.mrf.mxu0
        %v1923 = vadd.f32 0.0, %v1922
        %1924 = vmatmul.f32.gmra.mxu0 %v1862
        %v1925 = vpop.f32.mrf.mxu0
        %v1926 = vadd.f32 0.0, %v1925
        %1927 = vdwg.mxu0
        %v1928 = vadd.f32 %v1815, %v1881
        %v1929 = vadd.f32 %v1816, %v1884
        %v1930 = vadd.f32 %v1817, %v1887
        %v1931 = vadd.f32 %v1818, %v1890
        %v1932 = vadd.f32 %v1819, %v1893
        %v1933 = vadd.f32 %v1820, %v1896
        %v1934 = vadd.f32 %v1821, %v1899
        %v1935 = vadd.f32 %v1822, %v1902
        %v1936 = vadd.f32 %v1823, %v1905
        %v1937 = vadd.f32 %v1824, %v1908
        %v1938 = vadd.f32 %v1825, %v1911
        %v1939 = vadd.f32 %v1826, %v1914
        %v1940 = vadd.f32 %v1827, %v1917
        %v1941 = vadd.f32 %v1828, %v1920
        %v1942 = vadd.f32 %v1829, %v1923
        %v1943 = vadd.f32 %v1830, %v1926
        %1944 = vst [vmem:[%s348] sm:$0xff] %v1928
        %1945 = vst [vmem:[%s348 + $0x8] sm:$0xff] %v1929
        %1946 = vst [vmem:[%s348 + $0x10] sm:$0xff] %v1930
        %1947 = vst [vmem:[%s348 + $0x18] sm:$0xff] %v1931
        %1948 = vst [vmem:[%s348 + $0x20] sm:$0xff] %v1932
        %1949 = vst [vmem:[%s348 + $0x28] sm:$0xff] %v1933
        %1950 = vst [vmem:[%s348 + $0x30] sm:$0xff] %v1934
        %1951 = vst [vmem:[%s348 + $0x38] sm:$0xff] %v1935
        %1952 = vst [vmem:[%s348 + $0x40] sm:$0xff] %v1936
        %1953 = vst [vmem:[%s348 + $0x48] sm:$0xff] %v1937
        %1954 = vst [vmem:[%s348 + $0x50] sm:$0xff] %v1938
        %1955 = vst [vmem:[%s348 + $0x58] sm:$0xff] %v1939
        %1956 = vst [vmem:[%s348 + $0x60] sm:$0xff] %v1940
        %1957 = vst [vmem:[%s348 + $0x68] sm:$0xff] %v1941
        %1958 = vst [vmem:[%s348 + $0x70] sm:$0xff] %v1942
        %1959 = vst [vmem:[%s348 + $0x78] sm:$0xff] %v1943
        %v1960 = vld [vmem:[%s5 + $0x1] sm:$0x1]
        %v1961 = vld [vmem:[%s6 + $0x1] sm:$0x1]
        %1962 = vadd.xlane.f32.xlu0 %v617
        %v1963 = vpop.xlane.xlu0 %1962
        %1964 = vadd.xlane.f32.xlu0 %v620
        %v1965 = vpop.xlane.xlu0 %1964
        %1966 = vadd.xlane.f32.xlu0 %v623
        %v1967 = vpop.xlane.xlu0 %1966
        %1968 = vadd.xlane.f32.xlu0 %v626
        %v1969 = vpop.xlane.xlu0 %1968
        %1970 = vadd.xlane.f32.xlu0 %v629
        %v1971 = vpop.xlane.xlu0 %1970
        %1972 = vadd.xlane.f32.xlu0 %v632
        %v1973 = vpop.xlane.xlu0 %1972
        %1974 = vadd.xlane.f32.xlu0 %v635
        %v1975 = vpop.xlane.xlu0 %1974
        %1976 = vadd.xlane.f32.xlu0 %v638
        %v1977 = vpop.xlane.xlu0 %1976
        %1978 = vadd.xlane.f32.xlu0 %v641
        %v1979 = vpop.xlane.xlu0 %1978
        %1980 = vadd.xlane.f32.xlu0 %v644
        %v1981 = vpop.xlane.xlu0 %1980
        %1982 = vadd.xlane.f32.xlu0 %v647
        %v1983 = vpop.xlane.xlu0 %1982
        %1984 = vadd.xlane.f32.xlu0 %v650
        %v1985 = vpop.xlane.xlu0 %1984
        %1986 = vadd.xlane.f32.xlu0 %v653
        %v1987 = vpop.xlane.xlu0 %1986
        %1988 = vadd.xlane.f32.xlu0 %v656
        %v1989 = vpop.xlane.xlu0 %1988
        %1990 = vadd.xlane.f32.xlu0 %v659
        %v1991 = vpop.xlane.xlu0 %1990
        %1992 = vadd.xlane.f32.xlu0 %v662
        %v1993 = vpop.xlane.xlu0 %1992
        %v1994 = vmul.f32 %v1963, %v1136
        %v1995 = vmul.f32 %v1965, %v1136
        %v1996 = vmul.f32 %v1967, %v1136
        %v1997 = vmul.f32 %v1969, %v1136
        %v1998 = vmul.f32 %v1971, %v1136
        %v1999 = vmul.f32 %v1973, %v1136
        %v2000 = vmul.f32 %v1975, %v1136
        %v2001 = vmul.f32 %v1977, %v1136
        %v2002 = vmul.f32 %v1979, %v1136
        %v2003 = vmul.f32 %v1981, %v1136
        %v2004 = vmul.f32 %v1983, %v1136
        %v2005 = vmul.f32 %v1985, %v1136
        %v2006 = vmul.f32 %v1987, %v1136
        %v2007 = vmul.f32 %v1989, %v1136
        %v2008 = vmul.f32 %v1991, %v1136
        %v2009 = vmul.f32 %v1993, %v1136
        %v2010 = vsub.f32 %v617, %v1994
        %v2011 = vsub.f32 %v620, %v1995
        %v2012 = vsub.f32 %v623, %v1996
        %v2013 = vsub.f32 %v626, %v1997
        %v2014 = vsub.f32 %v629, %v1998
        %v2015 = vsub.f32 %v632, %v1999
        %v2016 = vsub.f32 %v635, %v2000
        %v2017 = vsub.f32 %v638, %v2001
        %v2018 = vsub.f32 %v641, %v2002
        %v2019 = vsub.f32 %v644, %v2003
        %v2020 = vsub.f32 %v647, %v2004
        %v2021 = vsub.f32 %v650, %v2005
        %v2022 = vsub.f32 %v653, %v2006
        %v2023 = vsub.f32 %v656, %v2007
        %v2024 = vsub.f32 %v659, %v2008
        %v2025 = vsub.f32 %v662, %v2009
        %v2026 = vmul.f32 %v2010, %v2010
        %v2027 = vmul.f32 %v2011, %v2011
        %v2028 = vmul.f32 %v2012, %v2012
        %v2029 = vmul.f32 %v2013, %v2013
        %v2030 = vmul.f32 %v2014, %v2014
        %v2031 = vmul.f32 %v2015, %v2015
        %v2032 = vmul.f32 %v2016, %v2016
        %v2033 = vmul.f32 %v2017, %v2017
        %v2034 = vmul.f32 %v2018, %v2018
        %v2035 = vmul.f32 %v2019, %v2019
        %v2036 = vmul.f32 %v2020, %v2020
        %v2037 = vmul.f32 %v2021, %v2021
        %v2038 = vmul.f32 %v2022, %v2022
        %v2039 = vmul.f32 %v2023, %v2023
        %v2040 = vmul.f32 %v2024, %v2024
        %v2041 = vmul.f32 %v2025, %v2025
        %2042 = vadd.xlane.f32.xlu0 %v2026
        %v2043 = vpop.xlane.xlu0 %2042
        %2044 = vadd.xlane.f32.xlu0 %v2027
        %v2045 = vpop.xlane.xlu0 %2044
        %2046 = vadd.xlane.f32.xlu0 %v2028
        %v2047 = vpop.xlane.xlu0 %2046
        %2048 = vadd.xlane.f32.xlu0 %v2029
        %v2049 = vpop.xlane.xlu0 %2048
        %2050 = vadd.xlane.f32.xlu0 %v2030
        %v2051 = vpop.xlane.xlu0 %2050
        %2052 = vadd.xlane.f32.xlu0 %v2031
        %v2053 = vpop.xlane.xlu0 %2052
        %2054 = vadd.xlane.f32.xlu0 %v2032
        %v2055 = vpop.xlane.xlu0 %2054
        %2056 = vadd.xlane.f32.xlu0 %v2033
        %v2057 = vpop.xlane.xlu0 %2056
        %2058 = vadd.xlane.f32.xlu0 %v2034
        %v2059 = vpop.xlane.xlu0 %2058
        %2060 = vadd.xlane.f32.xlu0 %v2035
        %v2061 = vpop.xlane.xlu0 %2060
        %2062 = vadd.xlane.f32.xlu0 %v2036
        %v2063 = vpop.xlane.xlu0 %2062
        %2064 = vadd.xlane.f32.xlu0 %v2037
        %v2065 = vpop.xlane.xlu0 %2064
        %2066 = vadd.xlane.f32.xlu0 %v2038
        %v2067 = vpop.xlane.xlu0 %2066
        %2068 = vadd.xlane.f32.xlu0 %v2039
        %v2069 = vpop.xlane.xlu0 %2068
        %2070 = vadd.xlane.f32.xlu0 %v2040
        %v2071 = vpop.xlane.xlu0 %2070
        %2072 = vadd.xlane.f32.xlu0 %v2041
        %v2073 = vpop.xlane.xlu0 %2072
        %v2074 = vmul.f32 %v2043, %v1136
        %v2075 = vmul.f32 %v2045, %v1136
        %v2076 = vmul.f32 %v2047, %v1136
        %v2077 = vmul.f32 %v2049, %v1136
        %v2078 = vmul.f32 %v2051, %v1136
        %v2079 = vmul.f32 %v2053, %v1136
        %v2080 = vmul.f32 %v2055, %v1136
        %v2081 = vmul.f32 %v2057, %v1136
        %v2082 = vmul.f32 %v2059, %v1136
        %v2083 = vmul.f32 %v2061, %v1136
        %v2084 = vmul.f32 %v2063, %v1136
        %v2085 = vmul.f32 %v2065, %v1136
        %v2086 = vmul.f32 %v2067, %v1136
        %v2087 = vmul.f32 %v2069, %v1136
        %v2088 = vmul.f32 %v2071, %v1136
        %v2089 = vmul.f32 %v2073, %v1136
        %v2090 = vadd.f32 %v2074, 1e-05
        %v2091 = vadd.f32 %v2075, 1e-05
        %v2092 = vadd.f32 %v2076, 1e-05
        %v2093 = vadd.f32 %v2077, 1e-05
        %v2094 = vadd.f32 %v2078, 1e-05
        %v2095 = vadd.f32 %v2079, 1e-05
        %v2096 = vadd.f32 %v2080, 1e-05
        %v2097 = vadd.f32 %v2081, 1e-05
        %v2098 = vadd.f32 %v2082, 1e-05
        %v2099 = vadd.f32 %v2083, 1e-05
        %v2100 = vadd.f32 %v2084, 1e-05
        %v2101 = vadd.f32 %v2085, 1e-05
        %v2102 = vadd.f32 %v2086, 1e-05
        %v2103 = vadd.f32 %v2087, 1e-05
        %v2104 = vadd.f32 %v2088, 1e-05
        %v2105 = vadd.f32 %v2089, 1e-05
        %v2106 = vrsqrt.pop %v2090
        %v2107 = vmul.f32 %v2106, %v2090
        %v2108 = vmul.f32 %v2107, %v2106
        %v2109 = vmul.f32 0.5, %v2108
        %v2110 = vsub.f32 1.5, %v2109
        %v2111 = vmul.f32 %v2106, %v2110
        %vm2112 = vweird.f32 %v2090
        %vm2113 = vweird.f32 %v2106
        %vm2114 = vmor %vm2112, %vm2113
        %v2115 = vsel %vm2114, %v2106, %v2111
        %v2116 = vrsqrt.pop %v2091
        %v2117 = vmul.f32 %v2116, %v2091
        %v2118 = vmul.f32 %v2117, %v2116
        %v2119 = vmul.f32 0.5, %v2118
        %v2120 = vsub.f32 1.5, %v2119
        %v2121 = vmul.f32 %v2116, %v2120
        %vm2122 = vweird.f32 %v2091
        %vm2123 = vweird.f32 %v2116
        %vm2124 = vmor %vm2122, %vm2123
        %v2125 = vsel %vm2124, %v2116, %v2121
        %v2126 = vrsqrt.pop %v2092
        %v2127 = vmul.f32 %v2126, %v2092
        %v2128 = vmul.f32 %v2127, %v2126
        %v2129 = vmul.f32 0.5, %v2128
        %v2130 = vsub.f32 1.5, %v2129
        %v2131 = vmul.f32 %v2126, %v2130
        %vm2132 = vweird.f32 %v2092
        %vm2133 = vweird.f32 %v2126
        %vm2134 = vmor %vm2132, %vm2133
        %v2135 = vsel %vm2134, %v2126, %v2131
        %v2136 = vrsqrt.pop %v2093
        %v2137 = vmul.f32 %v2136, %v2093
        %v2138 = vmul.f32 %v2137, %v2136
        %v2139 = vmul.f32 0.5, %v2138
        %v2140 = vsub.f32 1.5, %v2139
        %v2141 = vmul.f32 %v2136, %v2140
        %vm2142 = vweird.f32 %v2093
        %vm2143 = vweird.f32 %v2136
        %vm2144 = vmor %vm2142, %vm2143
        %v2145 = vsel %vm2144, %v2136, %v2141
        %v2146 = vrsqrt.pop %v2094
        %v2147 = vmul.f32 %v2146, %v2094
        %v2148 = vmul.f32 %v2147, %v2146
        %v2149 = vmul.f32 0.5, %v2148
        %v2150 = vsub.f32 1.5, %v2149
        %v2151 = vmul.f32 %v2146, %v2150
        %vm2152 = vweird.f32 %v2094
        %vm2153 = vweird.f32 %v2146
        %vm2154 = vmor %vm2152, %vm2153
        %v2155 = vsel %vm2154, %v2146, %v2151
        %v2156 = vrsqrt.pop %v2095
        %v2157 = vmul.f32 %v2156, %v2095
        %v2158 = vmul.f32 %v2157, %v2156
        %v2159 = vmul.f32 0.5, %v2158
        %v2160 = vsub.f32 1.5, %v2159
        %v2161 = vmul.f32 %v2156, %v2160
        %vm2162 = vweird.f32 %v2095
        %vm2163 = vweird.f32 %v2156
        %vm2164 = vmor %vm2162, %vm2163
        %v2165 = vsel %vm2164, %v2156, %v2161
        %v2166 = vrsqrt.pop %v2096
        %v2167 = vmul.f32 %v2166, %v2096
        %v2168 = vmul.f32 %v2167, %v2166
        %v2169 = vmul.f32 0.5, %v2168
        %v2170 = vsub.f32 1.5, %v2169
        %v2171 = vmul.f32 %v2166, %v2170
        %vm2172 = vweird.f32 %v2096
        %vm2173 = vweird.f32 %v2166
        %vm2174 = vmor %vm2172, %vm2173
        %v2175 = vsel %vm2174, %v2166, %v2171
        %v2176 = vrsqrt.pop %v2097
        %v2177 = vmul.f32 %v2176, %v2097
        %v2178 = vmul.f32 %v2177, %v2176
        %v2179 = vmul.f32 0.5, %v2178
        %v2180 = vsub.f32 1.5, %v2179
        %v2181 = vmul.f32 %v2176, %v2180
        %vm2182 = vweird.f32 %v2097
        %vm2183 = vweird.f32 %v2176
        %vm2184 = vmor %vm2182, %vm2183
        %v2185 = vsel %vm2184, %v2176, %v2181
        %v2186 = vrsqrt.pop %v2098
        %v2187 = vmul.f32 %v2186, %v2098
        %v2188 = vmul.f32 %v2187, %v2186
        %v2189 = vmul.f32 0.5, %v2188
        %v2190 = vsub.f32 1.5, %v2189
        %v2191 = vmul.f32 %v2186, %v2190
        %vm2192 = vweird.f32 %v2098
        %vm2193 = vweird.f32 %v2186
        %vm2194 = vmor %vm2192, %vm2193
        %v2195 = vsel %vm2194, %v2186, %v2191
        %v2196 = vrsqrt.pop %v2099
        %v2197 = vmul.f32 %v2196, %v2099
        %v2198 = vmul.f32 %v2197, %v2196
        %v2199 = vmul.f32 0.5, %v2198
        %v2200 = vsub.f32 1.5, %v2199
        %v2201 = vmul.f32 %v2196, %v2200
        %vm2202 = vweird.f32 %v2099
        %vm2203 = vweird.f32 %v2196
        %vm2204 = vmor %vm2202, %vm2203
        %v2205 = vsel %vm2204, %v2196, %v2201
        %v2206 = vrsqrt.pop %v2100
        %v2207 = vmul.f32 %v2206, %v2100
        %v2208 = vmul.f32 %v2207, %v2206
        %v2209 = vmul.f32 0.5, %v2208
        %v2210 = vsub.f32 1.5, %v2209
        %v2211 = vmul.f32 %v2206, %v2210
        %vm2212 = vweird.f32 %v2100
        %vm2213 = vweird.f32 %v2206
        %vm2214 = vmor %vm2212, %vm2213
        %v2215 = vsel %vm2214, %v2206, %v2211
        %v2216 = vrsqrt.pop %v2101
        %v2217 = vmul.f32 %v2216, %v2101
        %v2218 = vmul.f32 %v2217, %v2216
        %v2219 = vmul.f32 0.5, %v2218
        %v2220 = vsub.f32 1.5, %v2219
        %v2221 = vmul.f32 %v2216, %v2220
        %vm2222 = vweird.f32 %v2101
        %vm2223 = vweird.f32 %v2216
        %vm2224 = vmor %vm2222, %vm2223
        %v2225 = vsel %vm2224, %v2216, %v2221
        %v2226 = vrsqrt.pop %v2102
        %v2227 = vmul.f32 %v2226, %v2102
        %v2228 = vmul.f32 %v2227, %v2226
        %v2229 = vmul.f32 0.5, %v2228
        %v2230 = vsub.f32 1.5, %v2229
        %v2231 = vmul.f32 %v2226, %v2230
        %vm2232 = vweird.f32 %v2102
        %vm2233 = vweird.f32 %v2226
        %vm2234 = vmor %vm2232, %vm2233
        %v2235 = vsel %vm2234, %v2226, %v2231
        %v2236 = vrsqrt.pop %v2103
        %v2237 = vmul.f32 %v2236, %v2103
        %v2238 = vmul.f32 %v2237, %v2236
        %v2239 = vmul.f32 0.5, %v2238
        %v2240 = vsub.f32 1.5, %v2239
        %v2241 = vmul.f32 %v2236, %v2240
        %vm2242 = vweird.f32 %v2103
        %vm2243 = vweird.f32 %v2236
        %vm2244 = vmor %vm2242, %vm2243
        %v2245 = vsel %vm2244, %v2236, %v2241
        %v2246 = vrsqrt.pop %v2104
        %v2247 = vmul.f32 %v2246, %v2104
        %v2248 = vmul.f32 %v2247, %v2246
        %v2249 = vmul.f32 0.5, %v2248
        %v2250 = vsub.f32 1.5, %v2249
        %v2251 = vmul.f32 %v2246, %v2250
        %vm2252 = vweird.f32 %v2104
        %vm2253 = vweird.f32 %v2246
        %vm2254 = vmor %vm2252, %vm2253
        %v2255 = vsel %vm2254, %v2246, %v2251
        %v2256 = vrsqrt.pop %v2105
        %v2257 = vmul.f32 %v2256, %v2105
        %v2258 = vmul.f32 %v2257, %v2256
        %v2259 = vmul.f32 0.5, %v2258
        %v2260 = vsub.f32 1.5, %v2259
        %v2261 = vmul.f32 %v2256, %v2260
        %vm2262 = vweird.f32 %v2105
        %vm2263 = vweird.f32 %v2256
        %vm2264 = vmor %vm2262, %vm2263
        %v2265 = vsel %vm2264, %v2256, %v2261
        %v2266 = vmul.f32 %v2010, %v2115
        %v2267 = vmul.f32 %v2011, %v2125
        %v2268 = vmul.f32 %v2012, %v2135
        %v2269 = vmul.f32 %v2013, %v2145
        %v2270 = vmul.f32 %v2014, %v2155
        %v2271 = vmul.f32 %v2015, %v2165
        %v2272 = vmul.f32 %v2016, %v2175
        %v2273 = vmul.f32 %v2017, %v2185
        %v2274 = vmul.f32 %v2018, %v2195
        %v2275 = vmul.f32 %v2019, %v2205
        %v2276 = vmul.f32 %v2020, %v2215
        %v2277 = vmul.f32 %v2021, %v2225
        %v2278 = vmul.f32 %v2022, %v2235
        %v2279 = vmul.f32 %v2023, %v2245
        %v2280 = vmul.f32 %v2024, %v2255
        %v2281 = vmul.f32 %v2025, %v2265
        %v2282 = vperm.slane %v1960, 0
        %v2283 = vmul.f32 %v2266, %v2282
        %v2284 = vmul.f32 %v2267, %v2282
        %v2285 = vmul.f32 %v2268, %v2282
        %v2286 = vmul.f32 %v2269, %v2282
        %v2287 = vmul.f32 %v2270, %v2282
        %v2288 = vmul.f32 %v2271, %v2282
        %v2289 = vmul.f32 %v2272, %v2282
        %v2290 = vmul.f32 %v2273, %v2282
        %v2291 = vmul.f32 %v2274, %v2282
        %v2292 = vmul.f32 %v2275, %v2282
        %v2293 = vmul.f32 %v2276, %v2282
        %v2294 = vmul.f32 %v2277, %v2282
        %v2295 = vmul.f32 %v2278, %v2282
        %v2296 = vmul.f32 %v2279, %v2282
        %v2297 = vmul.f32 %v2280, %v2282
        %v2298 = vmul.f32 %v2281, %v2282
        %v2299 = vperm.slane %v1961, 0
        %v2300 = vadd.f32 %v2283, %v2299
        %v2301 = vadd.f32 %v2284, %v2299
        %v2302 = vadd.f32 %v2285, %v2299
        %v2303 = vadd.f32 %v2286, %v2299
        %v2304 = vadd.f32 %v2287, %v2299
        %v2305 = vadd.f32 %v2288, %v2299
        %v2306 = vadd.f32 %v2289, %v2299
        %v2307 = vadd.f32 %v2290, %v2299
        %v2308 = vadd.f32 %v2291, %v2299
        %v2309 = vadd.f32 %v2292, %v2299
        %v2310 = vadd.f32 %v2293, %v2299
        %v2311 = vadd.f32 %v2294, %v2299
        %v2312 = vadd.f32 %v2295, %v2299
        %v2313 = vadd.f32 %v2296, %v2299
        %v2314 = vadd.f32 %v2297, %v2299
        %v2315 = vadd.f32 %v2298, %v2299
        %v2316 = vld [vmem:[%s7 + $0x1] sm:$0x1]
        %v2317 = vld [vmem:[%s8 + $0x1] sm:$0x1]
        %2318 = vadd.xlane.f32.xlu0 %v919
        %v2319 = vpop.xlane.xlu0 %2318
        %2320 = vadd.xlane.f32.xlu0 %v922
        %v2321 = vpop.xlane.xlu0 %2320
        %2322 = vadd.xlane.f32.xlu0 %v925
        %v2323 = vpop.xlane.xlu0 %2322
        %2324 = vadd.xlane.f32.xlu0 %v928
        %v2325 = vpop.xlane.xlu0 %2324
        %2326 = vadd.xlane.f32.xlu0 %v931
        %v2327 = vpop.xlane.xlu0 %2326
        %2328 = vadd.xlane.f32.xlu0 %v934
        %v2329 = vpop.xlane.xlu0 %2328
        %2330 = vadd.xlane.f32.xlu0 %v937
        %v2331 = vpop.xlane.xlu0 %2330
        %2332 = vadd.xlane.f32.xlu0 %v940
        %v2333 = vpop.xlane.xlu0 %2332
        %2334 = vadd.xlane.f32.xlu0 %v943
        %v2335 = vpop.xlane.xlu0 %2334
        %2336 = vadd.xlane.f32.xlu0 %v946
        %v2337 = vpop.xlane.xlu0 %2336
        %2338 = vadd.xlane.f32.xlu0 %v949
        %v2339 = vpop.xlane.xlu0 %2338
        %2340 = vadd.xlane.f32.xlu0 %v952
        %v2341 = vpop.xlane.xlu0 %2340
        %2342 = vadd.xlane.f32.xlu0 %v955
        %v2343 = vpop.xlane.xlu0 %2342
        %2344 = vadd.xlane.f32.xlu0 %v958
        %v2345 = vpop.xlane.xlu0 %2344
        %2346 = vadd.xlane.f32.xlu0 %v961
        %v2347 = vpop.xlane.xlu0 %2346
        %2348 = vadd.xlane.f32.xlu0 %v964
        %v2349 = vpop.xlane.xlu0 %2348
        %v2350 = vmul.f32 %v2319, %v1136
        %v2351 = vmul.f32 %v2321, %v1136
        %v2352 = vmul.f32 %v2323, %v1136
        %v2353 = vmul.f32 %v2325, %v1136
        %v2354 = vmul.f32 %v2327, %v1136
        %v2355 = vmul.f32 %v2329, %v1136
        %v2356 = vmul.f32 %v2331, %v1136
        %v2357 = vmul.f32 %v2333, %v1136
        %v2358 = vmul.f32 %v2335, %v1136
        %v2359 = vmul.f32 %v2337, %v1136
        %v2360 = vmul.f32 %v2339, %v1136
        %v2361 = vmul.f32 %v2341, %v1136
        %v2362 = vmul.f32 %v2343, %v1136
        %v2363 = vmul.f32 %v2345, %v1136
        %v2364 = vmul.f32 %v2347, %v1136
        %v2365 = vmul.f32 %v2349, %v1136
        %v2366 = vsub.f32 %v919, %v2350
        %v2367 = vsub.f32 %v922, %v2351
        %v2368 = vsub.f32 %v925, %v2352
        %v2369 = vsub.f32 %v928, %v2353
        %v2370 = vsub.f32 %v931, %v2354
        %v2371 = vsub.f32 %v934, %v2355
        %v2372 = vsub.f32 %v937, %v2356
        %v2373 = vsub.f32 %v940, %v2357
        %v2374 = vsub.f32 %v943, %v2358
        %v2375 = vsub.f32 %v946, %v2359
        %v2376 = vsub.f32 %v949, %v2360
        %v2377 = vsub.f32 %v952, %v2361
        %v2378 = vsub.f32 %v955, %v2362
        %v2379 = vsub.f32 %v958, %v2363
        %v2380 = vsub.f32 %v961, %v2364
        %v2381 = vsub.f32 %v964, %v2365
        %v2382 = vmul.f32 %v2366, %v2366
        %v2383 = vmul.f32 %v2367, %v2367
        %v2384 = vmul.f32 %v2368, %v2368
        %v2385 = vmul.f32 %v2369, %v2369
        %v2386 = vmul.f32 %v2370, %v2370
        %v2387 = vmul.f32 %v2371, %v2371
        %v2388 = vmul.f32 %v2372, %v2372
        %v2389 = vmul.f32 %v2373, %v2373
        %v2390 = vmul.f32 %v2374, %v2374
        %v2391 = vmul.f32 %v2375, %v2375
        %v2392 = vmul.f32 %v2376, %v2376
        %v2393 = vmul.f32 %v2377, %v2377
        %v2394 = vmul.f32 %v2378, %v2378
        %v2395 = vmul.f32 %v2379, %v2379
        %v2396 = vmul.f32 %v2380, %v2380
        %v2397 = vmul.f32 %v2381, %v2381
        %2398 = vadd.xlane.f32.xlu0 %v2382
        %v2399 = vpop.xlane.xlu0 %2398
        %2400 = vadd.xlane.f32.xlu0 %v2383
        %v2401 = vpop.xlane.xlu0 %2400
        %2402 = vadd.xlane.f32.xlu0 %v2384
        %v2403 = vpop.xlane.xlu0 %2402
        %2404 = vadd.xlane.f32.xlu0 %v2385
        %v2405 = vpop.xlane.xlu0 %2404
        %2406 = vadd.xlane.f32.xlu0 %v2386
        %v2407 = vpop.xlane.xlu0 %2406
        %2408 = vadd.xlane.f32.xlu0 %v2387
        %v2409 = vpop.xlane.xlu0 %2408
        %2410 = vadd.xlane.f32.xlu0 %v2388
        %v2411 = vpop.xlane.xlu0 %2410
        %2412 = vadd.xlane.f32.xlu0 %v2389
        %v2413 = vpop.xlane.xlu0 %2412
        %2414 = vadd.xlane.f32.xlu0 %v2390
        %v2415 = vpop.xlane.xlu0 %2414
        %2416 = vadd.xlane.f32.xlu0 %v2391
        %v2417 = vpop.xlane.xlu0 %2416
        %2418 = vadd.xlane.f32.xlu0 %v2392
        %v2419 = vpop.xlane.xlu0 %2418
        %2420 = vadd.xlane.f32.xlu0 %v2393
        %v2421 = vpop.xlane.xlu0 %2420
        %2422 = vadd.xlane.f32.xlu0 %v2394
        %v2423 = vpop.xlane.xlu0 %2422
        %2424 = vadd.xlane.f32.xlu0 %v2395
        %v2425 = vpop.xlane.xlu0 %2424
        %2426 = vadd.xlane.f32.xlu0 %v2396
        %v2427 = vpop.xlane.xlu0 %2426
        %2428 = vadd.xlane.f32.xlu0 %v2397
        %v2429 = vpop.xlane.xlu0 %2428
        %v2430 = vmul.f32 %v2399, %v1136
        %v2431 = vmul.f32 %v2401, %v1136
        %v2432 = vmul.f32 %v2403, %v1136
        %v2433 = vmul.f32 %v2405, %v1136
        %v2434 = vmul.f32 %v2407, %v1136
        %v2435 = vmul.f32 %v2409, %v1136
        %v2436 = vmul.f32 %v2411, %v1136
        %v2437 = vmul.f32 %v2413, %v1136
        %v2438 = vmul.f32 %v2415, %v1136
        %v2439 = vmul.f32 %v2417, %v1136
        %v2440 = vmul.f32 %v2419, %v1136
        %v2441 = vmul.f32 %v2421, %v1136
        %v2442 = vmul.f32 %v2423, %v1136
        %v2443 = vmul.f32 %v2425, %v1136
        %v2444 = vmul.f32 %v2427, %v1136
        %v2445 = vmul.f32 %v2429, %v1136
        %v2446 = vadd.f32 %v2430, 1e-05
        %v2447 = vadd.f32 %v2431, 1e-05
        %v2448 = vadd.f32 %v2432, 1e-05
        %v2449 = vadd.f32 %v2433, 1e-05
        %v2450 = vadd.f32 %v2434, 1e-05
        %v2451 = vadd.f32 %v2435, 1e-05
        %v2452 = vadd.f32 %v2436, 1e-05
        %v2453 = vadd.f32 %v2437, 1e-05
        %v2454 = vadd.f32 %v2438, 1e-05
        %v2455 = vadd.f32 %v2439, 1e-05
        %v2456 = vadd.f32 %v2440, 1e-05
        %v2457 = vadd.f32 %v2441, 1e-05
        %v2458 = vadd.f32 %v2442, 1e-05
        %v2459 = vadd.f32 %v2443, 1e-05
        %v2460 = vadd.f32 %v2444, 1e-05
        %v2461 = vadd.f32 %v2445, 1e-05
        %v2462 = vrsqrt.pop %v2446
        %v2463 = vmul.f32 %v2462, %v2446
        %v2464 = vmul.f32 %v2463, %v2462
        %v2465 = vmul.f32 0.5, %v2464
        %v2466 = vsub.f32 1.5, %v2465
        %v2467 = vmul.f32 %v2462, %v2466
        %vm2468 = vweird.f32 %v2446
        %vm2469 = vweird.f32 %v2462
        %vm2470 = vmor %vm2468, %vm2469
        %v2471 = vsel %vm2470, %v2462, %v2467
        %v2472 = vrsqrt.pop %v2447
        %v2473 = vmul.f32 %v2472, %v2447
        %v2474 = vmul.f32 %v2473, %v2472
        %v2475 = vmul.f32 0.5, %v2474
        %v2476 = vsub.f32 1.5, %v2475
        %v2477 = vmul.f32 %v2472, %v2476
        %vm2478 = vweird.f32 %v2447
        %vm2479 = vweird.f32 %v2472
        %vm2480 = vmor %vm2478, %vm2479
        %v2481 = vsel %vm2480, %v2472, %v2477
        %v2482 = vrsqrt.pop %v2448
        %v2483 = vmul.f32 %v2482, %v2448
        %v2484 = vmul.f32 %v2483, %v2482
        %v2485 = vmul.f32 0.5, %v2484
        %v2486 = vsub.f32 1.5, %v2485
        %v2487 = vmul.f32 %v2482, %v2486
        %vm2488 = vweird.f32 %v2448
        %vm2489 = vweird.f32 %v2482
        %vm2490 = vmor %vm2488, %vm2489
        %v2491 = vsel %vm2490, %v2482, %v2487
        %v2492 = vrsqrt.pop %v2449
        %v2493 = vmul.f32 %v2492, %v2449
        %v2494 = vmul.f32 %v2493, %v2492
        %v2495 = vmul.f32 0.5, %v2494
        %v2496 = vsub.f32 1.5, %v2495
        %v2497 = vmul.f32 %v2492, %v2496
        %vm2498 = vweird.f32 %v2449
        %vm2499 = vweird.f32 %v2492
        %vm2500 = vmor %vm2498, %vm2499
        %v2501 = vsel %vm2500, %v2492, %v2497
        %v2502 = vrsqrt.pop %v2450
        %v2503 = vmul.f32 %v2502, %v2450
        %v2504 = vmul.f32 %v2503, %v2502
        %v2505 = vmul.f32 0.5, %v2504
        %v2506 = vsub.f32 1.5, %v2505
        %v2507 = vmul.f32 %v2502, %v2506
        %vm2508 = vweird.f32 %v2450
        %vm2509 = vweird.f32 %v2502
        %vm2510 = vmor %vm2508, %vm2509
        %v2511 = vsel %vm2510, %v2502, %v2507
        %v2512 = vrsqrt.pop %v2451
        %v2513 = vmul.f32 %v2512, %v2451
        %v2514 = vmul.f32 %v2513, %v2512
        %v2515 = vmul.f32 0.5, %v2514
        %v2516 = vsub.f32 1.5, %v2515
        %v2517 = vmul.f32 %v2512, %v2516
        %vm2518 = vweird.f32 %v2451
        %vm2519 = vweird.f32 %v2512
        %vm2520 = vmor %vm2518, %vm2519
        %v2521 = vsel %vm2520, %v2512, %v2517
        %v2522 = vrsqrt.pop %v2452
        %v2523 = vmul.f32 %v2522, %v2452
        %v2524 = vmul.f32 %v2523, %v2522
        %v2525 = vmul.f32 0.5, %v2524
        %v2526 = vsub.f32 1.5, %v2525
        %v2527 = vmul.f32 %v2522, %v2526
        %vm2528 = vweird.f32 %v2452
        %vm2529 = vweird.f32 %v2522
        %vm2530 = vmor %vm2528, %vm2529
        %v2531 = vsel %vm2530, %v2522, %v2527
        %v2532 = vrsqrt.pop %v2453
        %v2533 = vmul.f32 %v2532, %v2453
        %v2534 = vmul.f32 %v2533, %v2532
        %v2535 = vmul.f32 0.5, %v2534
        %v2536 = vsub.f32 1.5, %v2535
        %v2537 = vmul.f32 %v2532, %v2536
        %vm2538 = vweird.f32 %v2453
        %vm2539 = vweird.f32 %v2532
        %vm2540 = vmor %vm2538, %vm2539
        %v2541 = vsel %vm2540, %v2532, %v2537
        %v2542 = vrsqrt.pop %v2454
        %v2543 = vmul.f32 %v2542, %v2454
        %v2544 = vmul.f32 %v2543, %v2542
        %v2545 = vmul.f32 0.5, %v2544
        %v2546 = vsub.f32 1.5, %v2545
        %v2547 = vmul.f32 %v2542, %v2546
        %vm2548 = vweird.f32 %v2454
        %vm2549 = vweird.f32 %v2542
        %vm2550 = vmor %vm2548, %vm2549
        %v2551 = vsel %vm2550, %v2542, %v2547
        %v2552 = vrsqrt.pop %v2455
        %v2553 = vmul.f32 %v2552, %v2455
        %v2554 = vmul.f32 %v2553, %v2552
        %v2555 = vmul.f32 0.5, %v2554
        %v2556 = vsub.f32 1.5, %v2555
        %v2557 = vmul.f32 %v2552, %v2556
        %vm2558 = vweird.f32 %v2455
        %vm2559 = vweird.f32 %v2552
        %vm2560 = vmor %vm2558, %vm2559
        %v2561 = vsel %vm2560, %v2552, %v2557
        %v2562 = vrsqrt.pop %v2456
        %v2563 = vmul.f32 %v2562, %v2456
        %v2564 = vmul.f32 %v2563, %v2562
        %v2565 = vmul.f32 0.5, %v2564
        %v2566 = vsub.f32 1.5, %v2565
        %v2567 = vmul.f32 %v2562, %v2566
        %vm2568 = vweird.f32 %v2456
        %vm2569 = vweird.f32 %v2562
        %vm2570 = vmor %vm2568, %vm2569
        %v2571 = vsel %vm2570, %v2562, %v2567
        %v2572 = vrsqrt.pop %v2457
        %v2573 = vmul.f32 %v2572, %v2457
        %v2574 = vmul.f32 %v2573, %v2572
        %v2575 = vmul.f32 0.5, %v2574
        %v2576 = vsub.f32 1.5, %v2575
        %v2577 = vmul.f32 %v2572, %v2576
        %vm2578 = vweird.f32 %v2457
        %vm2579 = vweird.f32 %v2572
        %vm2580 = vmor %vm2578, %vm2579
        %v2581 = vsel %vm2580, %v2572, %v2577
        %v2582 = vrsqrt.pop %v2458
        %v2583 = vmul.f32 %v2582, %v2458
        %v2584 = vmul.f32 %v2583, %v2582
        %v2585 = vmul.f32 0.5, %v2584
        %v2586 = vsub.f32 1.5, %v2585
        %v2587 = vmul.f32 %v2582, %v2586
        %vm2588 = vweird.f32 %v2458
        %vm2589 = vweird.f32 %v2582
        %vm2590 = vmor %vm2588, %vm2589
        %v2591 = vsel %vm2590, %v2582, %v2587
        %v2592 = vrsqrt.pop %v2459
        %v2593 = vmul.f32 %v2592, %v2459
        %v2594 = vmul.f32 %v2593, %v2592
        %v2595 = vmul.f32 0.5, %v2594
        %v2596 = vsub.f32 1.5, %v2595
        %v2597 = vmul.f32 %v2592, %v2596
        %vm2598 = vweird.f32 %v2459
        %vm2599 = vweird.f32 %v2592
        %vm2600 = vmor %vm2598, %vm2599
        %v2601 = vsel %vm2600, %v2592, %v2597
        %v2602 = vrsqrt.pop %v2460
        %v2603 = vmul.f32 %v2602, %v2460
        %v2604 = vmul.f32 %v2603, %v2602
        %v2605 = vmul.f32 0.5, %v2604
        %v2606 = vsub.f32 1.5, %v2605
        %v2607 = vmul.f32 %v2602, %v2606
        %vm2608 = vweird.f32 %v2460
        %vm2609 = vweird.f32 %v2602
        %vm2610 = vmor %vm2608, %vm2609
        %v2611 = vsel %vm2610, %v2602, %v2607
        %v2612 = vrsqrt.pop %v2461
        %v2613 = vmul.f32 %v2612, %v2461
        %v2614 = vmul.f32 %v2613, %v2612
        %v2615 = vmul.f32 0.5, %v2614
        %v2616 = vsub.f32 1.5, %v2615
        %v2617 = vmul.f32 %v2612, %v2616
        %vm2618 = vweird.f32 %v2461
        %vm2619 = vweird.f32 %v2612
        %vm2620 = vmor %vm2618, %vm2619
        %v2621 = vsel %vm2620, %v2612, %v2617
        %v2622 = vmul.f32 %v2366, %v2471
        %v2623 = vmul.f32 %v2367, %v2481
        %v2624 = vmul.f32 %v2368, %v2491
        %v2625 = vmul.f32 %v2369, %v2501
        %v2626 = vmul.f32 %v2370, %v2511
        %v2627 = vmul.f32 %v2371, %v2521
        %v2628 = vmul.f32 %v2372, %v2531
        %v2629 = vmul.f32 %v2373, %v2541
        %v2630 = vmul.f32 %v2374, %v2551
        %v2631 = vmul.f32 %v2375, %v2561
        %v2632 = vmul.f32 %v2376, %v2571
        %v2633 = vmul.f32 %v2377, %v2581
        %v2634 = vmul.f32 %v2378, %v2591
        %v2635 = vmul.f32 %v2379, %v2601
        %v2636 = vmul.f32 %v2380, %v2611
        %v2637 = vmul.f32 %v2381, %v2621
        %v2638 = vperm.slane %v2316, 0
        %v2639 = vmul.f32 %v2622, %v2638
        %v2640 = vmul.f32 %v2623, %v2638
        %v2641 = vmul.f32 %v2624, %v2638
        %v2642 = vmul.f32 %v2625, %v2638
        %v2643 = vmul.f32 %v2626, %v2638
        %v2644 = vmul.f32 %v2627, %v2638
        %v2645 = vmul.f32 %v2628, %v2638
        %v2646 = vmul.f32 %v2629, %v2638
        %v2647 = vmul.f32 %v2630, %v2638
        %v2648 = vmul.f32 %v2631, %v2638
        %v2649 = vmul.f32 %v2632, %v2638
        %v2650 = vmul.f32 %v2633, %v2638
        %v2651 = vmul.f32 %v2634, %v2638
        %v2652 = vmul.f32 %v2635, %v2638
        %v2653 = vmul.f32 %v2636, %v2638
        %v2654 = vmul.f32 %v2637, %v2638
        %v2655 = vperm.slane %v2317, 0
        %v2656 = vadd.f32 %v2639, %v2655
        %v2657 = vadd.f32 %v2640, %v2655
        %v2658 = vadd.f32 %v2641, %v2655
        %v2659 = vadd.f32 %v2642, %v2655
        %v2660 = vadd.f32 %v2643, %v2655
        %v2661 = vadd.f32 %v2644, %v2655
        %v2662 = vadd.f32 %v2645, %v2655
        %v2663 = vadd.f32 %v2646, %v2655
        %v2664 = vadd.f32 %v2647, %v2655
        %v2665 = vadd.f32 %v2648, %v2655
        %v2666 = vadd.f32 %v2649, %v2655
        %v2667 = vadd.f32 %v2650, %v2655
        %v2668 = vadd.f32 %v2651, %v2655
        %v2669 = vadd.f32 %v2652, %v2655
        %v2670 = vadd.f32 %v2653, %v2655
        %v2671 = vadd.f32 %v2654, %v2655
        %s2672 = scalar_lea.vmem %s348, 128 [#allocation2]
        %v2673 = vld [vmem:[%s2672] sm:$0xff]
        %v2674 = vld [vmem:[%s2672 + $0x8] sm:$0xff]
        %v2675 = vld [vmem:[%s2672 + $0x10] sm:$0xff]
        %v2676 = vld [vmem:[%s2672 + $0x18] sm:$0xff]
        %v2677 = vld [vmem:[%s2672 + $0x20] sm:$0xff]
        %v2678 = vld [vmem:[%s2672 + $0x28] sm:$0xff]
        %v2679 = vld [vmem:[%s2672 + $0x30] sm:$0xff]
        %v2680 = vld [vmem:[%s2672 + $0x38] sm:$0xff]
        %v2681 = vld [vmem:[%s2672 + $0x40] sm:$0xff]
        %v2682 = vld [vmem:[%s2672 + $0x48] sm:$0xff]
        %v2683 = vld [vmem:[%s2672 + $0x50] sm:$0xff]
        %v2684 = vld [vmem:[%s2672 + $0x58] sm:$0xff]
        %v2685 = vld [vmem:[%s2672 + $0x60] sm:$0xff]
        %v2686 = vld [vmem:[%s2672 + $0x68] sm:$0xff]
        %v2687 = vld [vmem:[%s2672 + $0x70] sm:$0xff]
        %v2688 = vld [vmem:[%s2672 + $0x78] sm:$0xff]
        %2689 = vxpose.xlu0.b32.start [1/16] %v2300, 128
        %2690 = vxpose.xlu0.b32.cont [2/16] %v2301, 128
        %2691 = vxpose.xlu0.b32.cont [3/16] %v2302, 128
        %2692 = vxpose.xlu0.b32.cont [4/16] %v2303, 128
        %2693 = vxpose.xlu0.b32.cont [5/16] %v2304, 128
        %2694 = vxpose.xlu0.b32.cont [6/16] %v2305, 128
        %2695 = vxpose.xlu0.b32.cont [7/16] %v2306, 128
        %2696 = vxpose.xlu0.b32.cont [8/16] %v2307, 128
        %2697 = vxpose.xlu0.b32.cont [9/16] %v2308, 128
        %2698 = vxpose.xlu0.b32.cont [10/16] %v2309, 128
        %2699 = vxpose.xlu0.b32.cont [11/16] %v2310, 128
        %2700 = vxpose.xlu0.b32.cont [12/16] %v2311, 128
        %2701 = vxpose.xlu0.b32.cont [13/16] %v2312, 128
        %2702 = vxpose.xlu0.b32.cont [14/16] %v2313, 128
        %2703 = vxpose.xlu0.b32.cont [15/16] %v2314, 128
        %2704 = vxpose.xlu0.b32.end [16/16] %v2315, 128
        %v2705 = vpop.trf.xlu0
        %v2706 = vpop.trf.xlu0
        %v2707 = vpop.trf.xlu0
        %v2708 = vpop.trf.xlu0
        %v2709 = vpop.trf.xlu0
        %v2710 = vpop.trf.xlu0
        %v2711 = vpop.trf.xlu0
        %v2712 = vpop.trf.xlu0
        %v2713 = vpop.trf.xlu0
        %v2714 = vpop.trf.xlu0
        %v2715 = vpop.trf.xlu0
        %v2716 = vpop.trf.xlu0
        %v2717 = vpop.trf.xlu0
        %v2718 = vpop.trf.xlu0
        %v2719 = vpop.trf.xlu0
        %v2720 = vpop.trf.xlu0
        %2721 = vmatpush.msra.mxu0 %v2671
        %2722 = vmatpush.msra.mxu0 %v2670
        %2723 = vmatpush.msra.mxu0 %v2669
        %2724 = vmatpush.msra.mxu0 %v2668
        %2725 = vmatpush.msra.mxu0 %v2667
        %2726 = vmatpush.msra.mxu0 %v2666
        %2727 = vmatpush.msra.mxu0 %v2665
        %2728 = vmatpush.msra.mxu0 %v2664
        %2729 = vmatpush.msra.mxu0 %v2663
        %2730 = vmatpush.msra.mxu0 %v2662
        %2731 = vmatpush.msra.mxu0 %v2661
        %2732 = vmatpush.msra.mxu0 %v2660
        %2733 = vmatpush.msra.mxu0 %v2659
        %2734 = vmatpush.msra.mxu0 %v2658
        %2735 = vmatpush.msra.mxu0 %v2657
        %2736 = vmatpush.msra.mxu0 %v2656
        %2737 = vmatmul.f32.gmra.mxu0 %v2705
        %v2738 = vpop.f32.mrf.mxu0
        %v2739 = vadd.f32 0.0, %v2738
        %2740 = vmatmul.f32.gmra.mxu0 %v2706
        %v2741 = vpop.f32.mrf.mxu0
        %v2742 = vadd.f32 0.0, %v2741
        %2743 = vmatmul.f32.gmra.mxu0 %v2707
        %v2744 = vpop.f32.mrf.mxu0
        %v2745 = vadd.f32 0.0, %v2744
        %2746 = vmatmul.f32.gmra.mxu0 %v2708
        %v2747 = vpop.f32.mrf.mxu0
        %v2748 = vadd.f32 0.0, %v2747
        %2749 = vmatmul.f32.gmra.mxu0 %v2709
        %v2750 = vpop.f32.mrf.mxu0
        %v2751 = vadd.f32 0.0, %v2750
        %2752 = vmatmul.f32.gmra.mxu0 %v2710
        %v2753 = vpop.f32.mrf.mxu0
        %v2754 = vadd.f32 0.0, %v2753
        %2755 = vmatmul.f32.gmra.mxu0 %v2711
        %v2756 = vpop.f32.mrf.mxu0
        %v2757 = vadd.f32 0.0, %v2756
        %2758 = vmatmul.f32.gmra.mxu0 %v2712
        %v2759 = vpop.f32.mrf.mxu0
        %v2760 = vadd.f32 0.0, %v2759
        %2761 = vmatmul.f32.gmra.mxu0 %v2713
        %v2762 = vpop.f32.mrf.mxu0
        %v2763 = vadd.f32 0.0, %v2762
        %2764 = vmatmul.f32.gmra.mxu0 %v2714
        %v2765 = vpop.f32.mrf.mxu0
        %v2766 = vadd.f32 0.0, %v2765
        %2767 = vmatmul.f32.gmra.mxu0 %v2715
        %v2768 = vpop.f32.mrf.mxu0
        %v2769 = vadd.f32 0.0, %v2768
        %2770 = vmatmul.f32.gmra.mxu0 %v2716
        %v2771 = vpop.f32.mrf.mxu0
        %v2772 = vadd.f32 0.0, %v2771
        %2773 = vmatmul.f32.gmra.mxu0 %v2717
        %v2774 = vpop.f32.mrf.mxu0
        %v2775 = vadd.f32 0.0, %v2774
        %2776 = vmatmul.f32.gmra.mxu0 %v2718
        %v2777 = vpop.f32.mrf.mxu0
        %v2778 = vadd.f32 0.0, %v2777
        %2779 = vmatmul.f32.gmra.mxu0 %v2719
        %v2780 = vpop.f32.mrf.mxu0
        %v2781 = vadd.f32 0.0, %v2780
        %2782 = vmatmul.f32.gmra.mxu0 %v2720
        %v2783 = vpop.f32.mrf.mxu0
        %v2784 = vadd.f32 0.0, %v2783
        %2785 = vdwg.mxu0
        %v2786 = vadd.f32 %v2673, %v2739
        %v2787 = vadd.f32 %v2674, %v2742
        %v2788 = vadd.f32 %v2675, %v2745
        %v2789 = vadd.f32 %v2676, %v2748
        %v2790 = vadd.f32 %v2677, %v2751
        %v2791 = vadd.f32 %v2678, %v2754
        %v2792 = vadd.f32 %v2679, %v2757
        %v2793 = vadd.f32 %v2680, %v2760
        %v2794 = vadd.f32 %v2681, %v2763
        %v2795 = vadd.f32 %v2682, %v2766
        %v2796 = vadd.f32 %v2683, %v2769
        %v2797 = vadd.f32 %v2684, %v2772
        %v2798 = vadd.f32 %v2685, %v2775
        %v2799 = vadd.f32 %v2686, %v2778
        %v2800 = vadd.f32 %v2687, %v2781
        %v2801 = vadd.f32 %v2688, %v2784
        %2802 = vst [vmem:[%s2672] sm:$0xff] %v2786
        %2803 = vst [vmem:[%s2672 + $0x8] sm:$0xff] %v2787
        %2804 = vst [vmem:[%s2672 + $0x10] sm:$0xff] %v2788
        %2805 = vst [vmem:[%s2672 + $0x18] sm:$0xff] %v2789
        %2806 = vst [vmem:[%s2672 + $0x20] sm:$0xff] %v2790
        %2807 = vst [vmem:[%s2672 + $0x28] sm:$0xff] %v2791
        %2808 = vst [vmem:[%s2672 + $0x30] sm:$0xff] %v2792
        %2809 = vst [vmem:[%s2672 + $0x38] sm:$0xff] %v2793
        %2810 = vst [vmem:[%s2672 + $0x40] sm:$0xff] %v2794
        %2811 = vst [vmem:[%s2672 + $0x48] sm:$0xff] %v2795
        %2812 = vst [vmem:[%s2672 + $0x50] sm:$0xff] %v2796
        %2813 = vst [vmem:[%s2672 + $0x58] sm:$0xff] %v2797
        %2814 = vst [vmem:[%s2672 + $0x60] sm:$0xff] %v2798
        %2815 = vst [vmem:[%s2672 + $0x68] sm:$0xff] %v2799
        %2816 = vst [vmem:[%s2672 + $0x70] sm:$0xff] %v2800
        %2817 = vst [vmem:[%s2672 + $0x78] sm:$0xff] %v2801
        %v2818 = vld [vmem:[%s5 + $0x2] sm:$0x1]
        %v2819 = vld [vmem:[%s6 + $0x2] sm:$0x1]
        %2820 = vadd.xlane.f32.xlu0 %v682
        %v2821 = vpop.xlane.xlu0 %2820
        %2822 = vadd.xlane.f32.xlu0 %v685
        %v2823 = vpop.xlane.xlu0 %2822
        %2824 = vadd.xlane.f32.xlu0 %v688
        %v2825 = vpop.xlane.xlu0 %2824
        %2826 = vadd.xlane.f32.xlu0 %v691
        %v2827 = vpop.xlane.xlu0 %2826
        %2828 = vadd.xlane.f32.xlu0 %v694
        %v2829 = vpop.xlane.xlu0 %2828
        %2830 = vadd.xlane.f32.xlu0 %v697
        %v2831 = vpop.xlane.xlu0 %2830
        %2832 = vadd.xlane.f32.xlu0 %v700
        %v2833 = vpop.xlane.xlu0 %2832
        %2834 = vadd.xlane.f32.xlu0 %v703
        %v2835 = vpop.xlane.xlu0 %2834
        %2836 = vadd.xlane.f32.xlu0 %v706
        %v2837 = vpop.xlane.xlu0 %2836
        %2838 = vadd.xlane.f32.xlu0 %v709
        %v2839 = vpop.xlane.xlu0 %2838
        %2840 = vadd.xlane.f32.xlu0 %v712
        %v2841 = vpop.xlane.xlu0 %2840
        %2842 = vadd.xlane.f32.xlu0 %v715
        %v2843 = vpop.xlane.xlu0 %2842
        %2844 = vadd.xlane.f32.xlu0 %v718
        %v2845 = vpop.xlane.xlu0 %2844
        %2846 = vadd.xlane.f32.xlu0 %v721
        %v2847 = vpop.xlane.xlu0 %2846
        %2848 = vadd.xlane.f32.xlu0 %v724
        %v2849 = vpop.xlane.xlu0 %2848
        %2850 = vadd.xlane.f32.xlu0 %v727
        %v2851 = vpop.xlane.xlu0 %2850
        %v2852 = vmul.f32 %v2821, %v1136
        %v2853 = vmul.f32 %v2823, %v1136
        %v2854 = vmul.f32 %v2825, %v1136
        %v2855 = vmul.f32 %v2827, %v1136
        %v2856 = vmul.f32 %v2829, %v1136
        %v2857 = vmul.f32 %v2831, %v1136
        %v2858 = vmul.f32 %v2833, %v1136
        %v2859 = vmul.f32 %v2835, %v1136
        %v2860 = vmul.f32 %v2837, %v1136
        %v2861 = vmul.f32 %v2839, %v1136
        %v2862 = vmul.f32 %v2841, %v1136
        %v2863 = vmul.f32 %v2843, %v1136
        %v2864 = vmul.f32 %v2845, %v1136
        %v2865 = vmul.f32 %v2847, %v1136
        %v2866 = vmul.f32 %v2849, %v1136
        %v2867 = vmul.f32 %v2851, %v1136
        %v2868 = vsub.f32 %v682, %v2852
        %v2869 = vsub.f32 %v685, %v2853
        %v2870 = vsub.f32 %v688, %v2854
        %v2871 = vsub.f32 %v691, %v2855
        %v2872 = vsub.f32 %v694, %v2856
        %v2873 = vsub.f32 %v697, %v2857
        %v2874 = vsub.f32 %v700, %v2858
        %v2875 = vsub.f32 %v703, %v2859
        %v2876 = vsub.f32 %v706, %v2860
        %v2877 = vsub.f32 %v709, %v2861
        %v2878 = vsub.f32 %v712, %v2862
        %v2879 = vsub.f32 %v715, %v2863
        %v2880 = vsub.f32 %v718, %v2864
        %v2881 = vsub.f32 %v721, %v2865
        %v2882 = vsub.f32 %v724, %v2866
        %v2883 = vsub.f32 %v727, %v2867
        %v2884 = vmul.f32 %v2868, %v2868
        %v2885 = vmul.f32 %v2869, %v2869
        %v2886 = vmul.f32 %v2870, %v2870
        %v2887 = vmul.f32 %v2871, %v2871
        %v2888 = vmul.f32 %v2872, %v2872
        %v2889 = vmul.f32 %v2873, %v2873
        %v2890 = vmul.f32 %v2874, %v2874
        %v2891 = vmul.f32 %v2875, %v2875
        %v2892 = vmul.f32 %v2876, %v2876
        %v2893 = vmul.f32 %v2877, %v2877
        %v2894 = vmul.f32 %v2878, %v2878
        %v2895 = vmul.f32 %v2879, %v2879
        %v2896 = vmul.f32 %v2880, %v2880
        %v2897 = vmul.f32 %v2881, %v2881
        %v2898 = vmul.f32 %v2882, %v2882
        %v2899 = vmul.f32 %v2883, %v2883
        %2900 = vadd.xlane.f32.xlu0 %v2884
        %v2901 = vpop.xlane.xlu0 %2900
        %2902 = vadd.xlane.f32.xlu0 %v2885
        %v2903 = vpop.xlane.xlu0 %2902
        %2904 = vadd.xlane.f32.xlu0 %v2886
        %v2905 = vpop.xlane.xlu0 %2904
        %2906 = vadd.xlane.f32.xlu0 %v2887
        %v2907 = vpop.xlane.xlu0 %2906
        %2908 = vadd.xlane.f32.xlu0 %v2888
        %v2909 = vpop.xlane.xlu0 %2908
        %2910 = vadd.xlane.f32.xlu0 %v2889
        %v2911 = vpop.xlane.xlu0 %2910
        %2912 = vadd.xlane.f32.xlu0 %v2890
        %v2913 = vpop.xlane.xlu0 %2912
        %2914 = vadd.xlane.f32.xlu0 %v2891
        %v2915 = vpop.xlane.xlu0 %2914
        %2916 = vadd.xlane.f32.xlu0 %v2892
        %v2917 = vpop.xlane.xlu0 %2916
        %2918 = vadd.xlane.f32.xlu0 %v2893
        %v2919 = vpop.xlane.xlu0 %2918
        %2920 = vadd.xlane.f32.xlu0 %v2894
        %v2921 = vpop.xlane.xlu0 %2920
        %2922 = vadd.xlane.f32.xlu0 %v2895
        %v2923 = vpop.xlane.xlu0 %2922
        %2924 = vadd.xlane.f32.xlu0 %v2896
        %v2925 = vpop.xlane.xlu0 %2924
        %2926 = vadd.xlane.f32.xlu0 %v2897
        %v2927 = vpop.xlane.xlu0 %2926
        %2928 = vadd.xlane.f32.xlu0 %v2898
        %v2929 = vpop.xlane.xlu0 %2928
        %2930 = vadd.xlane.f32.xlu0 %v2899
        %v2931 = vpop.xlane.xlu0 %2930
        %v2932 = vmul.f32 %v2901, %v1136
        %v2933 = vmul.f32 %v2903, %v1136
        %v2934 = vmul.f32 %v2905, %v1136
        %v2935 = vmul.f32 %v2907, %v1136
        %v2936 = vmul.f32 %v2909, %v1136
        %v2937 = vmul.f32 %v2911, %v1136
        %v2938 = vmul.f32 %v2913, %v1136
        %v2939 = vmul.f32 %v2915, %v1136
        %v2940 = vmul.f32 %v2917, %v1136
        %v2941 = vmul.f32 %v2919, %v1136
        %v2942 = vmul.f32 %v2921, %v1136
        %v2943 = vmul.f32 %v2923, %v1136
        %v2944 = vmul.f32 %v2925, %v1136
        %v2945 = vmul.f32 %v2927, %v1136
        %v2946 = vmul.f32 %v2929, %v1136
        %v2947 = vmul.f32 %v2931, %v1136
        %v2948 = vadd.f32 %v2932, 1e-05
        %v2949 = vadd.f32 %v2933, 1e-05
        %v2950 = vadd.f32 %v2934, 1e-05
        %v2951 = vadd.f32 %v2935, 1e-05
        %v2952 = vadd.f32 %v2936, 1e-05
        %v2953 = vadd.f32 %v2937, 1e-05
        %v2954 = vadd.f32 %v2938, 1e-05
        %v2955 = vadd.f32 %v2939, 1e-05
        %v2956 = vadd.f32 %v2940, 1e-05
        %v2957 = vadd.f32 %v2941, 1e-05
        %v2958 = vadd.f32 %v2942, 1e-05
        %v2959 = vadd.f32 %v2943, 1e-05
        %v2960 = vadd.f32 %v2944, 1e-05
        %v2961 = vadd.f32 %v2945, 1e-05
        %v2962 = vadd.f32 %v2946, 1e-05
        %v2963 = vadd.f32 %v2947, 1e-05
        %v2964 = vrsqrt.pop %v2948
        %v2965 = vmul.f32 %v2964, %v2948
        %v2966 = vmul.f32 %v2965, %v2964
        %v2967 = vmul.f32 0.5, %v2966
        %v2968 = vsub.f32 1.5, %v2967
        %v2969 = vmul.f32 %v2964, %v2968
        %vm2970 = vweird.f32 %v2948
        %vm2971 = vweird.f32 %v2964
        %vm2972 = vmor %vm2970, %vm2971
        %v2973 = vsel %vm2972, %v2964, %v2969
        %v2974 = vrsqrt.pop %v2949
        %v2975 = vmul.f32 %v2974, %v2949
        %v2976 = vmul.f32 %v2975, %v2974
        %v2977 = vmul.f32 0.5, %v2976
        %v2978 = vsub.f32 1.5, %v2977
        %v2979 = vmul.f32 %v2974, %v2978
        %vm2980 = vweird.f32 %v2949
        %vm2981 = vweird.f32 %v2974
        %vm2982 = vmor %vm2980, %vm2981
        %v2983 = vsel %vm2982, %v2974, %v2979
        %v2984 = vrsqrt.pop %v2950
        %v2985 = vmul.f32 %v2984, %v2950
        %v2986 = vmul.f32 %v2985, %v2984
        %v2987 = vmul.f32 0.5, %v2986
        %v2988 = vsub.f32 1.5, %v2987
        %v2989 = vmul.f32 %v2984, %v2988
        %vm2990 = vweird.f32 %v2950
        %vm2991 = vweird.f32 %v2984
        %vm2992 = vmor %vm2990, %vm2991
        %v2993 = vsel %vm2992, %v2984, %v2989
        %v2994 = vrsqrt.pop %v2951
        %v2995 = vmul.f32 %v2994, %v2951
        %v2996 = vmul.f32 %v2995, %v2994
        %v2997 = vmul.f32 0.5, %v2996
        %v2998 = vsub.f32 1.5, %v2997
        %v2999 = vmul.f32 %v2994, %v2998
        %vm3000 = vweird.f32 %v2951
        %vm3001 = vweird.f32 %v2994
        %vm3002 = vmor %vm3000, %vm3001
        %v3003 = vsel %vm3002, %v2994, %v2999
        %v3004 = vrsqrt.pop %v2952
        %v3005 = vmul.f32 %v3004, %v2952
        %v3006 = vmul.f32 %v3005, %v3004
        %v3007 = vmul.f32 0.5, %v3006
        %v3008 = vsub.f32 1.5, %v3007
        %v3009 = vmul.f32 %v3004, %v3008
        %vm3010 = vweird.f32 %v2952
        %vm3011 = vweird.f32 %v3004
        %vm3012 = vmor %vm3010, %vm3011
        %v3013 = vsel %vm3012, %v3004, %v3009
        %v3014 = vrsqrt.pop %v2953
        %v3015 = vmul.f32 %v3014, %v2953
        %v3016 = vmul.f32 %v3015, %v3014
        %v3017 = vmul.f32 0.5, %v3016
        %v3018 = vsub.f32 1.5, %v3017
        %v3019 = vmul.f32 %v3014, %v3018
        %vm3020 = vweird.f32 %v2953
        %vm3021 = vweird.f32 %v3014
        %vm3022 = vmor %vm3020, %vm3021
        %v3023 = vsel %vm3022, %v3014, %v3019
        %v3024 = vrsqrt.pop %v2954
        %v3025 = vmul.f32 %v3024, %v2954
        %v3026 = vmul.f32 %v3025, %v3024
        %v3027 = vmul.f32 0.5, %v3026
        %v3028 = vsub.f32 1.5, %v3027
        %v3029 = vmul.f32 %v3024, %v3028
        %vm3030 = vweird.f32 %v2954
        %vm3031 = vweird.f32 %v3024
        %vm3032 = vmor %vm3030, %vm3031
        %v3033 = vsel %vm3032, %v3024, %v3029
        %v3034 = vrsqrt.pop %v2955
        %v3035 = vmul.f32 %v3034, %v2955
        %v3036 = vmul.f32 %v3035, %v3034
        %v3037 = vmul.f32 0.5, %v3036
        %v3038 = vsub.f32 1.5, %v3037
        %v3039 = vmul.f32 %v3034, %v3038
        %vm3040 = vweird.f32 %v2955
        %vm3041 = vweird.f32 %v3034
        %vm3042 = vmor %vm3040, %vm3041
        %v3043 = vsel %vm3042, %v3034, %v3039
        %v3044 = vrsqrt.pop %v2956
        %v3045 = vmul.f32 %v3044, %v2956
        %v3046 = vmul.f32 %v3045, %v3044
        %v3047 = vmul.f32 0.5, %v3046
        %v3048 = vsub.f32 1.5, %v3047
        %v3049 = vmul.f32 %v3044, %v3048
        %vm3050 = vweird.f32 %v2956
        %vm3051 = vweird.f32 %v3044
        %vm3052 = vmor %vm3050, %vm3051
        %v3053 = vsel %vm3052, %v3044, %v3049
        %v3054 = vrsqrt.pop %v2957
        %v3055 = vmul.f32 %v3054, %v2957
        %v3056 = vmul.f32 %v3055, %v3054
        %v3057 = vmul.f32 0.5, %v3056
        %v3058 = vsub.f32 1.5, %v3057
        %v3059 = vmul.f32 %v3054, %v3058
        %vm3060 = vweird.f32 %v2957
        %vm3061 = vweird.f32 %v3054
        %vm3062 = vmor %vm3060, %vm3061
        %v3063 = vsel %vm3062, %v3054, %v3059
        %v3064 = vrsqrt.pop %v2958
        %v3065 = vmul.f32 %v3064, %v2958
        %v3066 = vmul.f32 %v3065, %v3064
        %v3067 = vmul.f32 0.5, %v3066
        %v3068 = vsub.f32 1.5, %v3067
        %v3069 = vmul.f32 %v3064, %v3068
        %vm3070 = vweird.f32 %v2958
        %vm3071 = vweird.f32 %v3064
        %vm3072 = vmor %vm3070, %vm3071
        %v3073 = vsel %vm3072, %v3064, %v3069
        %v3074 = vrsqrt.pop %v2959
        %v3075 = vmul.f32 %v3074, %v2959
        %v3076 = vmul.f32 %v3075, %v3074
        %v3077 = vmul.f32 0.5, %v3076
        %v3078 = vsub.f32 1.5, %v3077
        %v3079 = vmul.f32 %v3074, %v3078
        %vm3080 = vweird.f32 %v2959
        %vm3081 = vweird.f32 %v3074
        %vm3082 = vmor %vm3080, %vm3081
        %v3083 = vsel %vm3082, %v3074, %v3079
        %v3084 = vrsqrt.pop %v2960
        %v3085 = vmul.f32 %v3084, %v2960
        %v3086 = vmul.f32 %v3085, %v3084
        %v3087 = vmul.f32 0.5, %v3086
        %v3088 = vsub.f32 1.5, %v3087
        %v3089 = vmul.f32 %v3084, %v3088
        %vm3090 = vweird.f32 %v2960
        %vm3091 = vweird.f32 %v3084
        %vm3092 = vmor %vm3090, %vm3091
        %v3093 = vsel %vm3092, %v3084, %v3089
        %v3094 = vrsqrt.pop %v2961
        %v3095 = vmul.f32 %v3094, %v2961
        %v3096 = vmul.f32 %v3095, %v3094
        %v3097 = vmul.f32 0.5, %v3096
        %v3098 = vsub.f32 1.5, %v3097
        %v3099 = vmul.f32 %v3094, %v3098
        %vm3100 = vweird.f32 %v2961
        %vm3101 = vweird.f32 %v3094
        %vm3102 = vmor %vm3100, %vm3101
        %v3103 = vsel %vm3102, %v3094, %v3099
        %v3104 = vrsqrt.pop %v2962
        %v3105 = vmul.f32 %v3104, %v2962
        %v3106 = vmul.f32 %v3105, %v3104
        %v3107 = vmul.f32 0.5, %v3106
        %v3108 = vsub.f32 1.5, %v3107
        %v3109 = vmul.f32 %v3104, %v3108
        %vm3110 = vweird.f32 %v2962
        %vm3111 = vweird.f32 %v3104
        %vm3112 = vmor %vm3110, %vm3111
        %v3113 = vsel %vm3112, %v3104, %v3109
        %v3114 = vrsqrt.pop %v2963
        %v3115 = vmul.f32 %v3114, %v2963
        %v3116 = vmul.f32 %v3115, %v3114
        %v3117 = vmul.f32 0.5, %v3116
        %v3118 = vsub.f32 1.5, %v3117
        %v3119 = vmul.f32 %v3114, %v3118
        %vm3120 = vweird.f32 %v2963
        %vm3121 = vweird.f32 %v3114
        %vm3122 = vmor %vm3120, %vm3121
        %v3123 = vsel %vm3122, %v3114, %v3119
        %v3124 = vmul.f32 %v2868, %v2973
        %v3125 = vmul.f32 %v2869, %v2983
        %v3126 = vmul.f32 %v2870, %v2993
        %v3127 = vmul.f32 %v2871, %v3003
        %v3128 = vmul.f32 %v2872, %v3013
        %v3129 = vmul.f32 %v2873, %v3023
        %v3130 = vmul.f32 %v2874, %v3033
        %v3131 = vmul.f32 %v2875, %v3043
        %v3132 = vmul.f32 %v2876, %v3053
        %v3133 = vmul.f32 %v2877, %v3063
        %v3134 = vmul.f32 %v2878, %v3073
        %v3135 = vmul.f32 %v2879, %v3083
        %v3136 = vmul.f32 %v2880, %v3093
        %v3137 = vmul.f32 %v2881, %v3103
        %v3138 = vmul.f32 %v2882, %v3113
        %v3139 = vmul.f32 %v2883, %v3123
        %v3140 = vperm.slane %v2818, 0
        %v3141 = vmul.f32 %v3124, %v3140
        %v3142 = vmul.f32 %v3125, %v3140
        %v3143 = vmul.f32 %v3126, %v3140
        %v3144 = vmul.f32 %v3127, %v3140
        %v3145 = vmul.f32 %v3128, %v3140
        %v3146 = vmul.f32 %v3129, %v3140
        %v3147 = vmul.f32 %v3130, %v3140
        %v3148 = vmul.f32 %v3131, %v3140
        %v3149 = vmul.f32 %v3132, %v3140
        %v3150 = vmul.f32 %v3133, %v3140
        %v3151 = vmul.f32 %v3134, %v3140
        %v3152 = vmul.f32 %v3135, %v3140
        %v3153 = vmul.f32 %v3136, %v3140
        %v3154 = vmul.f32 %v3137, %v3140
        %v3155 = vmul.f32 %v3138, %v3140
        %v3156 = vmul.f32 %v3139, %v3140
        %v3157 = vperm.slane %v2819, 0
        %v3158 = vadd.f32 %v3141, %v3157
        %v3159 = vadd.f32 %v3142, %v3157
        %v3160 = vadd.f32 %v3143, %v3157
        %v3161 = vadd.f32 %v3144, %v3157
        %v3162 = vadd.f32 %v3145, %v3157
        %v3163 = vadd.f32 %v3146, %v3157
        %v3164 = vadd.f32 %v3147, %v3157
        %v3165 = vadd.f32 %v3148, %v3157
        %v3166 = vadd.f32 %v3149, %v3157
        %v3167 = vadd.f32 %v3150, %v3157
        %v3168 = vadd.f32 %v3151, %v3157
        %v3169 = vadd.f32 %v3152, %v3157
        %v3170 = vadd.f32 %v3153, %v3157
        %v3171 = vadd.f32 %v3154, %v3157
        %v3172 = vadd.f32 %v3155, %v3157
        %v3173 = vadd.f32 %v3156, %v3157
        %v3174 = vld [vmem:[%s7 + $0x2] sm:$0x1]
        %v3175 = vld [vmem:[%s8 + $0x2] sm:$0x1]
        %3176 = vadd.xlane.f32.xlu0 %v984
        %v3177 = vpop.xlane.xlu0 %3176
        %3178 = vadd.xlane.f32.xlu0 %v987
        %v3179 = vpop.xlane.xlu0 %3178
        %3180 = vadd.xlane.f32.xlu0 %v990
        %v3181 = vpop.xlane.xlu0 %3180
        %3182 = vadd.xlane.f32.xlu0 %v993
        %v3183 = vpop.xlane.xlu0 %3182
        %3184 = vadd.xlane.f32.xlu0 %v996
        %v3185 = vpop.xlane.xlu0 %3184
        %3186 = vadd.xlane.f32.xlu0 %v999
        %v3187 = vpop.xlane.xlu0 %3186
        %3188 = vadd.xlane.f32.xlu0 %v1002
        %v3189 = vpop.xlane.xlu0 %3188
        %3190 = vadd.xlane.f32.xlu0 %v1005
        %v3191 = vpop.xlane.xlu0 %3190
        %3192 = vadd.xlane.f32.xlu0 %v1008
        %v3193 = vpop.xlane.xlu0 %3192
        %3194 = vadd.xlane.f32.xlu0 %v1011
        %v3195 = vpop.xlane.xlu0 %3194
        %3196 = vadd.xlane.f32.xlu0 %v1014
        %v3197 = vpop.xlane.xlu0 %3196
        %3198 = vadd.xlane.f32.xlu0 %v1017
        %v3199 = vpop.xlane.xlu0 %3198
        %3200 = vadd.xlane.f32.xlu0 %v1020
        %v3201 = vpop.xlane.xlu0 %3200
        %3202 = vadd.xlane.f32.xlu0 %v1023
        %v3203 = vpop.xlane.xlu0 %3202
        %3204 = vadd.xlane.f32.xlu0 %v1026
        %v3205 = vpop.xlane.xlu0 %3204
        %3206 = vadd.xlane.f32.xlu0 %v1029
        %v3207 = vpop.xlane.xlu0 %3206
        %v3208 = vmul.f32 %v3177, %v1136
        %v3209 = vmul.f32 %v3179, %v1136
        %v3210 = vmul.f32 %v3181, %v1136
        %v3211 = vmul.f32 %v3183, %v1136
        %v3212 = vmul.f32 %v3185, %v1136
        %v3213 = vmul.f32 %v3187, %v1136
        %v3214 = vmul.f32 %v3189, %v1136
        %v3215 = vmul.f32 %v3191, %v1136
        %v3216 = vmul.f32 %v3193, %v1136
        %v3217 = vmul.f32 %v3195, %v1136
        %v3218 = vmul.f32 %v3197, %v1136
        %v3219 = vmul.f32 %v3199, %v1136
        %v3220 = vmul.f32 %v3201, %v1136
        %v3221 = vmul.f32 %v3203, %v1136
        %v3222 = vmul.f32 %v3205, %v1136
        %v3223 = vmul.f32 %v3207, %v1136
        %v3224 = vsub.f32 %v984, %v3208
        %v3225 = vsub.f32 %v987, %v3209
        %v3226 = vsub.f32 %v990, %v3210
        %v3227 = vsub.f32 %v993, %v3211
        %v3228 = vsub.f32 %v996, %v3212
        %v3229 = vsub.f32 %v999, %v3213
        %v3230 = vsub.f32 %v1002, %v3214
        %v3231 = vsub.f32 %v1005, %v3215
        %v3232 = vsub.f32 %v1008, %v3216
        %v3233 = vsub.f32 %v1011, %v3217
        %v3234 = vsub.f32 %v1014, %v3218
        %v3235 = vsub.f32 %v1017, %v3219
        %v3236 = vsub.f32 %v1020, %v3220
        %v3237 = vsub.f32 %v1023, %v3221
        %v3238 = vsub.f32 %v1026, %v3222
        %v3239 = vsub.f32 %v1029, %v3223
        %v3240 = vmul.f32 %v3224, %v3224
        %v3241 = vmul.f32 %v3225, %v3225
        %v3242 = vmul.f32 %v3226, %v3226
        %v3243 = vmul.f32 %v3227, %v3227
        %v3244 = vmul.f32 %v3228, %v3228
        %v3245 = vmul.f32 %v3229, %v3229
        %v3246 = vmul.f32 %v3230, %v3230
        %v3247 = vmul.f32 %v3231, %v3231
        %v3248 = vmul.f32 %v3232, %v3232
        %v3249 = vmul.f32 %v3233, %v3233
        %v3250 = vmul.f32 %v3234, %v3234
        %v3251 = vmul.f32 %v3235, %v3235
        %v3252 = vmul.f32 %v3236, %v3236
        %v3253 = vmul.f32 %v3237, %v3237
        %v3254 = vmul.f32 %v3238, %v3238
        %v3255 = vmul.f32 %v3239, %v3239
        %3256 = vadd.xlane.f32.xlu0 %v3240
        %v3257 = vpop.xlane.xlu0 %3256
        %3258 = vadd.xlane.f32.xlu0 %v3241
        %v3259 = vpop.xlane.xlu0 %3258
        %3260 = vadd.xlane.f32.xlu0 %v3242
        %v3261 = vpop.xlane.xlu0 %3260
        %3262 = vadd.xlane.f32.xlu0 %v3243
        %v3263 = vpop.xlane.xlu0 %3262
        %3264 = vadd.xlane.f32.xlu0 %v3244
        %v3265 = vpop.xlane.xlu0 %3264
        %3266 = vadd.xlane.f32.xlu0 %v3245
        %v3267 = vpop.xlane.xlu0 %3266
        %3268 = vadd.xlane.f32.xlu0 %v3246
        %v3269 = vpop.xlane.xlu0 %3268
        %3270 = vadd.xlane.f32.xlu0 %v3247
        %v3271 = vpop.xlane.xlu0 %3270
        %3272 = vadd.xlane.f32.xlu0 %v3248
        %v3273 = vpop.xlane.xlu0 %3272
        %3274 = vadd.xlane.f32.xlu0 %v3249
        %v3275 = vpop.xlane.xlu0 %3274
        %3276 = vadd.xlane.f32.xlu0 %v3250
        %v3277 = vpop.xlane.xlu0 %3276
        %3278 = vadd.xlane.f32.xlu0 %v3251
        %v3279 = vpop.xlane.xlu0 %3278
        %3280 = vadd.xlane.f32.xlu0 %v3252
        %v3281 = vpop.xlane.xlu0 %3280
        %3282 = vadd.xlane.f32.xlu0 %v3253
        %v3283 = vpop.xlane.xlu0 %3282
        %3284 = vadd.xlane.f32.xlu0 %v3254
        %v3285 = vpop.xlane.xlu0 %3284
        %3286 = vadd.xlane.f32.xlu0 %v3255
        %v3287 = vpop.xlane.xlu0 %3286
        %v3288 = vmul.f32 %v3257, %v1136
        %v3289 = vmul.f32 %v3259, %v1136
        %v3290 = vmul.f32 %v3261, %v1136
        %v3291 = vmul.f32 %v3263, %v1136
        %v3292 = vmul.f32 %v3265, %v1136
        %v3293 = vmul.f32 %v3267, %v1136
        %v3294 = vmul.f32 %v3269, %v1136
        %v3295 = vmul.f32 %v3271, %v1136
        %v3296 = vmul.f32 %v3273, %v1136
        %v3297 = vmul.f32 %v3275, %v1136
        %v3298 = vmul.f32 %v3277, %v1136
        %v3299 = vmul.f32 %v3279, %v1136
        %v3300 = vmul.f32 %v3281, %v1136
        %v3301 = vmul.f32 %v3283, %v1136
        %v3302 = vmul.f32 %v3285, %v1136
        %v3303 = vmul.f32 %v3287, %v1136
        %v3304 = vadd.f32 %v3288, 1e-05
        %v3305 = vadd.f32 %v3289, 1e-05
        %v3306 = vadd.f32 %v3290, 1e-05
        %v3307 = vadd.f32 %v3291, 1e-05
        %v3308 = vadd.f32 %v3292, 1e-05
        %v3309 = vadd.f32 %v3293, 1e-05
        %v3310 = vadd.f32 %v3294, 1e-05
        %v3311 = vadd.f32 %v3295, 1e-05
        %v3312 = vadd.f32 %v3296, 1e-05
        %v3313 = vadd.f32 %v3297, 1e-05
        %v3314 = vadd.f32 %v3298, 1e-05
        %v3315 = vadd.f32 %v3299, 1e-05
        %v3316 = vadd.f32 %v3300, 1e-05
        %v3317 = vadd.f32 %v3301, 1e-05
        %v3318 = vadd.f32 %v3302, 1e-05
        %v3319 = vadd.f32 %v3303, 1e-05
        %v3320 = vrsqrt.pop %v3304
        %v3321 = vmul.f32 %v3320, %v3304
        %v3322 = vmul.f32 %v3321, %v3320
        %v3323 = vmul.f32 0.5, %v3322
        %v3324 = vsub.f32 1.5, %v3323
        %v3325 = vmul.f32 %v3320, %v3324
        %vm3326 = vweird.f32 %v3304
        %vm3327 = vweird.f32 %v3320
        %vm3328 = vmor %vm3326, %vm3327
        %v3329 = vsel %vm3328, %v3320, %v3325
        %v3330 = vrsqrt.pop %v3305
        %v3331 = vmul.f32 %v3330, %v3305
        %v3332 = vmul.f32 %v3331, %v3330
        %v3333 = vmul.f32 0.5, %v3332
        %v3334 = vsub.f32 1.5, %v3333
        %v3335 = vmul.f32 %v3330, %v3334
        %vm3336 = vweird.f32 %v3305
        %vm3337 = vweird.f32 %v3330
        %vm3338 = vmor %vm3336, %vm3337
        %v3339 = vsel %vm3338, %v3330, %v3335
        %v3340 = vrsqrt.pop %v3306
        %v3341 = vmul.f32 %v3340, %v3306
        %v3342 = vmul.f32 %v3341, %v3340
        %v3343 = vmul.f32 0.5, %v3342
        %v3344 = vsub.f32 1.5, %v3343
        %v3345 = vmul.f32 %v3340, %v3344
        %vm3346 = vweird.f32 %v3306
        %vm3347 = vweird.f32 %v3340
        %vm3348 = vmor %vm3346, %vm3347
        %v3349 = vsel %vm3348, %v3340, %v3345
        %v3350 = vrsqrt.pop %v3307
        %v3351 = vmul.f32 %v3350, %v3307
        %v3352 = vmul.f32 %v3351, %v3350
        %v3353 = vmul.f32 0.5, %v3352
        %v3354 = vsub.f32 1.5, %v3353
        %v3355 = vmul.f32 %v3350, %v3354
        %vm3356 = vweird.f32 %v3307
        %vm3357 = vweird.f32 %v3350
        %vm3358 = vmor %vm3356, %vm3357
        %v3359 = vsel %vm3358, %v3350, %v3355
        %v3360 = vrsqrt.pop %v3308
        %v3361 = vmul.f32 %v3360, %v3308
        %v3362 = vmul.f32 %v3361, %v3360
        %v3363 = vmul.f32 0.5, %v3362
        %v3364 = vsub.f32 1.5, %v3363
        %v3365 = vmul.f32 %v3360, %v3364
        %vm3366 = vweird.f32 %v3308
        %vm3367 = vweird.f32 %v3360
        %vm3368 = vmor %vm3366, %vm3367
        %v3369 = vsel %vm3368, %v3360, %v3365
        %v3370 = vrsqrt.pop %v3309
        %v3371 = vmul.f32 %v3370, %v3309
        %v3372 = vmul.f32 %v3371, %v3370
        %v3373 = vmul.f32 0.5, %v3372
        %v3374 = vsub.f32 1.5, %v3373
        %v3375 = vmul.f32 %v3370, %v3374
        %vm3376 = vweird.f32 %v3309
        %vm3377 = vweird.f32 %v3370
        %vm3378 = vmor %vm3376, %vm3377
        %v3379 = vsel %vm3378, %v3370, %v3375
        %v3380 = vrsqrt.pop %v3310
        %v3381 = vmul.f32 %v3380, %v3310
        %v3382 = vmul.f32 %v3381, %v3380
        %v3383 = vmul.f32 0.5, %v3382
        %v3384 = vsub.f32 1.5, %v3383
        %v3385 = vmul.f32 %v3380, %v3384
        %vm3386 = vweird.f32 %v3310
        %vm3387 = vweird.f32 %v3380
        %vm3388 = vmor %vm3386, %vm3387
        %v3389 = vsel %vm3388, %v3380, %v3385
        %v3390 = vrsqrt.pop %v3311
        %v3391 = vmul.f32 %v3390, %v3311
        %v3392 = vmul.f32 %v3391, %v3390
        %v3393 = vmul.f32 0.5, %v3392
        %v3394 = vsub.f32 1.5, %v3393
        %v3395 = vmul.f32 %v3390, %v3394
        %vm3396 = vweird.f32 %v3311
        %vm3397 = vweird.f32 %v3390
        %vm3398 = vmor %vm3396, %vm3397
        %v3399 = vsel %vm3398, %v3390, %v3395
        %v3400 = vrsqrt.pop %v3312
        %v3401 = vmul.f32 %v3400, %v3312
        %v3402 = vmul.f32 %v3401, %v3400
        %v3403 = vmul.f32 0.5, %v3402
        %v3404 = vsub.f32 1.5, %v3403
        %v3405 = vmul.f32 %v3400, %v3404
        %vm3406 = vweird.f32 %v3312
        %vm3407 = vweird.f32 %v3400
        %vm3408 = vmor %vm3406, %vm3407
        %v3409 = vsel %vm3408, %v3400, %v3405
        %v3410 = vrsqrt.pop %v3313
        %v3411 = vmul.f32 %v3410, %v3313
        %v3412 = vmul.f32 %v3411, %v3410
        %v3413 = vmul.f32 0.5, %v3412
        %v3414 = vsub.f32 1.5, %v3413
        %v3415 = vmul.f32 %v3410, %v3414
        %vm3416 = vweird.f32 %v3313
        %vm3417 = vweird.f32 %v3410
        %vm3418 = vmor %vm3416, %vm3417
        %v3419 = vsel %vm3418, %v3410, %v3415
        %v3420 = vrsqrt.pop %v3314
        %v3421 = vmul.f32 %v3420, %v3314
        %v3422 = vmul.f32 %v3421, %v3420
        %v3423 = vmul.f32 0.5, %v3422
        %v3424 = vsub.f32 1.5, %v3423
        %v3425 = vmul.f32 %v3420, %v3424
        %vm3426 = vweird.f32 %v3314
        %vm3427 = vweird.f32 %v3420
        %vm3428 = vmor %vm3426, %vm3427
        %v3429 = vsel %vm3428, %v3420, %v3425
        %v3430 = vrsqrt.pop %v3315
        %v3431 = vmul.f32 %v3430, %v3315
        %v3432 = vmul.f32 %v3431, %v3430
        %v3433 = vmul.f32 0.5, %v3432
        %v3434 = vsub.f32 1.5, %v3433
        %v3435 = vmul.f32 %v3430, %v3434
        %vm3436 = vweird.f32 %v3315
        %vm3437 = vweird.f32 %v3430
        %vm3438 = vmor %vm3436, %vm3437
        %v3439 = vsel %vm3438, %v3430, %v3435
        %v3440 = vrsqrt.pop %v3316
        %v3441 = vmul.f32 %v3440, %v3316
        %v3442 = vmul.f32 %v3441, %v3440
        %v3443 = vmul.f32 0.5, %v3442
        %v3444 = vsub.f32 1.5, %v3443
        %v3445 = vmul.f32 %v3440, %v3444
        %vm3446 = vweird.f32 %v3316
        %vm3447 = vweird.f32 %v3440
        %vm3448 = vmor %vm3446, %vm3447
        %v3449 = vsel %vm3448, %v3440, %v3445
        %v3450 = vrsqrt.pop %v3317
        %v3451 = vmul.f32 %v3450, %v3317
        %v3452 = vmul.f32 %v3451, %v3450
        %v3453 = vmul.f32 0.5, %v3452
        %v3454 = vsub.f32 1.5, %v3453
        %v3455 = vmul.f32 %v3450, %v3454
        %vm3456 = vweird.f32 %v3317
        %vm3457 = vweird.f32 %v3450
        %vm3458 = vmor %vm3456, %vm3457
        %v3459 = vsel %vm3458, %v3450, %v3455
        %v3460 = vrsqrt.pop %v3318
        %v3461 = vmul.f32 %v3460, %v3318
        %v3462 = vmul.f32 %v3461, %v3460
        %v3463 = vmul.f32 0.5, %v3462
        %v3464 = vsub.f32 1.5, %v3463
        %v3465 = vmul.f32 %v3460, %v3464
        %vm3466 = vweird.f32 %v3318
        %vm3467 = vweird.f32 %v3460
        %vm3468 = vmor %vm3466, %vm3467
        %v3469 = vsel %vm3468, %v3460, %v3465
        %v3470 = vrsqrt.pop %v3319
        %v3471 = vmul.f32 %v3470, %v3319
        %v3472 = vmul.f32 %v3471, %v3470
        %v3473 = vmul.f32 0.5, %v3472
        %v3474 = vsub.f32 1.5, %v3473
        %v3475 = vmul.f32 %v3470, %v3474
        %vm3476 = vweird.f32 %v3319
        %vm3477 = vweird.f32 %v3470
        %vm3478 = vmor %vm3476, %vm3477
        %v3479 = vsel %vm3478, %v3470, %v3475
        %v3480 = vmul.f32 %v3224, %v3329
        %v3481 = vmul.f32 %v3225, %v3339
        %v3482 = vmul.f32 %v3226, %v3349
        %v3483 = vmul.f32 %v3227, %v3359
        %v3484 = vmul.f32 %v3228, %v3369
        %v3485 = vmul.f32 %v3229, %v3379
        %v3486 = vmul.f32 %v3230, %v3389
        %v3487 = vmul.f32 %v3231, %v3399
        %v3488 = vmul.f32 %v3232, %v3409
        %v3489 = vmul.f32 %v3233, %v3419
        %v3490 = vmul.f32 %v3234, %v3429
        %v3491 = vmul.f32 %v3235, %v3439
        %v3492 = vmul.f32 %v3236, %v3449
        %v3493 = vmul.f32 %v3237, %v3459
        %v3494 = vmul.f32 %v3238, %v3469
        %v3495 = vmul.f32 %v3239, %v3479
        %v3496 = vperm.slane %v3174, 0
        %v3497 = vmul.f32 %v3480, %v3496
        %v3498 = vmul.f32 %v3481, %v3496
        %v3499 = vmul.f32 %v3482, %v3496
        %v3500 = vmul.f32 %v3483, %v3496
        %v3501 = vmul.f32 %v3484, %v3496
        %v3502 = vmul.f32 %v3485, %v3496
        %v3503 = vmul.f32 %v3486, %v3496
        %v3504 = vmul.f32 %v3487, %v3496
        %v3505 = vmul.f32 %v3488, %v3496
        %v3506 = vmul.f32 %v3489, %v3496
        %v3507 = vmul.f32 %v3490, %v3496
        %v3508 = vmul.f32 %v3491, %v3496
        %v3509 = vmul.f32 %v3492, %v3496
        %v3510 = vmul.f32 %v3493, %v3496
        %v3511 = vmul.f32 %v3494, %v3496
        %v3512 = vmul.f32 %v3495, %v3496
        %v3513 = vperm.slane %v3175, 0
        %v3514 = vadd.f32 %v3497, %v3513
        %v3515 = vadd.f32 %v3498, %v3513
        %v3516 = vadd.f32 %v3499, %v3513
        %v3517 = vadd.f32 %v3500, %v3513
        %v3518 = vadd.f32 %v3501, %v3513
        %v3519 = vadd.f32 %v3502, %v3513
        %v3520 = vadd.f32 %v3503, %v3513
        %v3521 = vadd.f32 %v3504, %v3513
        %v3522 = vadd.f32 %v3505, %v3513
        %v3523 = vadd.f32 %v3506, %v3513
        %v3524 = vadd.f32 %v3507, %v3513
        %v3525 = vadd.f32 %v3508, %v3513
        %v3526 = vadd.f32 %v3509, %v3513
        %v3527 = vadd.f32 %v3510, %v3513
        %v3528 = vadd.f32 %v3511, %v3513
        %v3529 = vadd.f32 %v3512, %v3513
        %s3530 = scalar_lea.vmem %s348, 256 [#allocation2]
        %v3531 = vld [vmem:[%s3530] sm:$0xff]
        %v3532 = vld [vmem:[%s3530 + $0x8] sm:$0xff]
        %v3533 = vld [vmem:[%s3530 + $0x10] sm:$0xff]
        %v3534 = vld [vmem:[%s3530 + $0x18] sm:$0xff]
        %v3535 = vld [vmem:[%s3530 + $0x20] sm:$0xff]
        %v3536 = vld [vmem:[%s3530 + $0x28] sm:$0xff]
        %v3537 = vld [vmem:[%s3530 + $0x30] sm:$0xff]
        %v3538 = vld [vmem:[%s3530 + $0x38] sm:$0xff]
        %v3539 = vld [vmem:[%s3530 + $0x40] sm:$0xff]
        %v3540 = vld [vmem:[%s3530 + $0x48] sm:$0xff]
        %v3541 = vld [vmem:[%s3530 + $0x50] sm:$0xff]
        %v3542 = vld [vmem:[%s3530 + $0x58] sm:$0xff]
        %v3543 = vld [vmem:[%s3530 + $0x60] sm:$0xff]
        %v3544 = vld [vmem:[%s3530 + $0x68] sm:$0xff]
        %v3545 = vld [vmem:[%s3530 + $0x70] sm:$0xff]
        %v3546 = vld [vmem:[%s3530 + $0x78] sm:$0xff]
        %3547 = vxpose.xlu0.b32.start [1/16] %v3158, 128
        %3548 = vxpose.xlu0.b32.cont [2/16] %v3159, 128
        %3549 = vxpose.xlu0.b32.cont [3/16] %v3160, 128
        %3550 = vxpose.xlu0.b32.cont [4/16] %v3161, 128
        %3551 = vxpose.xlu0.b32.cont [5/16] %v3162, 128
        %3552 = vxpose.xlu0.b32.cont [6/16] %v3163, 128
        %3553 = vxpose.xlu0.b32.cont [7/16] %v3164, 128
        %3554 = vxpose.xlu0.b32.cont [8/16] %v3165, 128
        %3555 = vxpose.xlu0.b32.cont [9/16] %v3166, 128
        %3556 = vxpose.xlu0.b32.cont [10/16] %v3167, 128
        %3557 = vxpose.xlu0.b32.cont [11/16] %v3168, 128
        %3558 = vxpose.xlu0.b32.cont [12/16] %v3169, 128
        %3559 = vxpose.xlu0.b32.cont [13/16] %v3170, 128
        %3560 = vxpose.xlu0.b32.cont [14/16] %v3171, 128
        %3561 = vxpose.xlu0.b32.cont [15/16] %v3172, 128
        %3562 = vxpose.xlu0.b32.end [16/16] %v3173, 128
        %v3563 = vpop.trf.xlu0
        %v3564 = vpop.trf.xlu0
        %v3565 = vpop.trf.xlu0
        %v3566 = vpop.trf.xlu0
        %v3567 = vpop.trf.xlu0
        %v3568 = vpop.trf.xlu0
        %v3569 = vpop.trf.xlu0
        %v3570 = vpop.trf.xlu0
        %v3571 = vpop.trf.xlu0
        %v3572 = vpop.trf.xlu0
        %v3573 = vpop.trf.xlu0
        %v3574 = vpop.trf.xlu0
        %v3575 = vpop.trf.xlu0
        %v3576 = vpop.trf.xlu0
        %v3577 = vpop.trf.xlu0
        %v3578 = vpop.trf.xlu0
        %3579 = vmatpush.msra.mxu0 %v3529
        %3580 = vmatpush.msra.mxu0 %v3528
        %3581 = vmatpush.msra.mxu0 %v3527
        %3582 = vmatpush.msra.mxu0 %v3526
        %3583 = vmatpush.msra.mxu0 %v3525
        %3584 = vmatpush.msra.mxu0 %v3524
        %3585 = vmatpush.msra.mxu0 %v3523
        %3586 = vmatpush.msra.mxu0 %v3522
        %3587 = vmatpush.msra.mxu0 %v3521
        %3588 = vmatpush.msra.mxu0 %v3520
        %3589 = vmatpush.msra.mxu0 %v3519
        %3590 = vmatpush.msra.mxu0 %v3518
        %3591 = vmatpush.msra.mxu0 %v3517
        %3592 = vmatpush.msra.mxu0 %v3516
        %3593 = vmatpush.msra.mxu0 %v3515
        %3594 = vmatpush.msra.mxu0 %v3514
        %3595 = vmatmul.f32.gmra.mxu0 %v3563
        %v3596 = vpop.f32.mrf.mxu0
        %v3597 = vadd.f32 0.0, %v3596
        %3598 = vmatmul.f32.gmra.mxu0 %v3564
        %v3599 = vpop.f32.mrf.mxu0
        %v3600 = vadd.f32 0.0, %v3599
        %3601 = vmatmul.f32.gmra.mxu0 %v3565
        %v3602 = vpop.f32.mrf.mxu0
        %v3603 = vadd.f32 0.0, %v3602
        %3604 = vmatmul.f32.gmra.mxu0 %v3566
        %v3605 = vpop.f32.mrf.mxu0
        %v3606 = vadd.f32 0.0, %v3605
        %3607 = vmatmul.f32.gmra.mxu0 %v3567
        %v3608 = vpop.f32.mrf.mxu0
        %v3609 = vadd.f32 0.0, %v3608
        %3610 = vmatmul.f32.gmra.mxu0 %v3568
        %v3611 = vpop.f32.mrf.mxu0
        %v3612 = vadd.f32 0.0, %v3611
        %3613 = vmatmul.f32.gmra.mxu0 %v3569
        %v3614 = vpop.f32.mrf.mxu0
        %v3615 = vadd.f32 0.0, %v3614
        %3616 = vmatmul.f32.gmra.mxu0 %v3570
        %v3617 = vpop.f32.mrf.mxu0
        %v3618 = vadd.f32 0.0, %v3617
        %3619 = vmatmul.f32.gmra.mxu0 %v3571
        %v3620 = vpop.f32.mrf.mxu0
        %v3621 = vadd.f32 0.0, %v3620
        %3622 = vmatmul.f32.gmra.mxu0 %v3572
        %v3623 = vpop.f32.mrf.mxu0
        %v3624 = vadd.f32 0.0, %v3623
        %3625 = vmatmul.f32.gmra.mxu0 %v3573
        %v3626 = vpop.f32.mrf.mxu0
        %v3627 = vadd.f32 0.0, %v3626
        %3628 = vmatmul.f32.gmra.mxu0 %v3574
        %v3629 = vpop.f32.mrf.mxu0
        %v3630 = vadd.f32 0.0, %v3629
        %3631 = vmatmul.f32.gmra.mxu0 %v3575
        %v3632 = vpop.f32.mrf.mxu0
        %v3633 = vadd.f32 0.0, %v3632
        %3634 = vmatmul.f32.gmra.mxu0 %v3576
        %v3635 = vpop.f32.mrf.mxu0
        %v3636 = vadd.f32 0.0, %v3635
        %3637 = vmatmul.f32.gmra.mxu0 %v3577
        %v3638 = vpop.f32.mrf.mxu0
        %v3639 = vadd.f32 0.0, %v3638
        %3640 = vmatmul.f32.gmra.mxu0 %v3578
        %v3641 = vpop.f32.mrf.mxu0
        %v3642 = vadd.f32 0.0, %v3641
        %3643 = vdwg.mxu0
        %v3644 = vadd.f32 %v3531, %v3597
        %v3645 = vadd.f32 %v3532, %v3600
        %v3646 = vadd.f32 %v3533, %v3603
        %v3647 = vadd.f32 %v3534, %v3606
        %v3648 = vadd.f32 %v3535, %v3609
        %v3649 = vadd.f32 %v3536, %v3612
        %v3650 = vadd.f32 %v3537, %v3615
        %v3651 = vadd.f32 %v3538, %v3618
        %v3652 = vadd.f32 %v3539, %v3621
        %v3653 = vadd.f32 %v3540, %v3624
        %v3654 = vadd.f32 %v3541, %v3627
        %v3655 = vadd.f32 %v3542, %v3630
        %v3656 = vadd.f32 %v3543, %v3633
        %v3657 = vadd.f32 %v3544, %v3636
        %v3658 = vadd.f32 %v3545, %v3639
        %v3659 = vadd.f32 %v3546, %v3642
        %3660 = vst [vmem:[%s3530] sm:$0xff] %v3644
        %3661 = vst [vmem:[%s3530 + $0x8] sm:$0xff] %v3645
        %3662 = vst [vmem:[%s3530 + $0x10] sm:$0xff] %v3646
        %3663 = vst [vmem:[%s3530 + $0x18] sm:$0xff] %v3647
        %3664 = vst [vmem:[%s3530 + $0x20] sm:$0xff] %v3648
        %3665 = vst [vmem:[%s3530 + $0x28] sm:$0xff] %v3649
        %3666 = vst [vmem:[%s3530 + $0x30] sm:$0xff] %v3650
        %3667 = vst [vmem:[%s3530 + $0x38] sm:$0xff] %v3651
        %3668 = vst [vmem:[%s3530 + $0x40] sm:$0xff] %v3652
        %3669 = vst [vmem:[%s3530 + $0x48] sm:$0xff] %v3653
        %3670 = vst [vmem:[%s3530 + $0x50] sm:$0xff] %v3654
        %3671 = vst [vmem:[%s3530 + $0x58] sm:$0xff] %v3655
        %3672 = vst [vmem:[%s3530 + $0x60] sm:$0xff] %v3656
        %3673 = vst [vmem:[%s3530 + $0x68] sm:$0xff] %v3657
        %3674 = vst [vmem:[%s3530 + $0x70] sm:$0xff] %v3658
        %3675 = vst [vmem:[%s3530 + $0x78] sm:$0xff] %v3659
        %v3676 = vld [vmem:[%s5 + $0x3] sm:$0x1]
        %v3677 = vld [vmem:[%s6 + $0x3] sm:$0x1]
        %3678 = vadd.xlane.f32.xlu0 %v747
        %v3679 = vpop.xlane.xlu0 %3678
        %3680 = vadd.xlane.f32.xlu0 %v750
        %v3681 = vpop.xlane.xlu0 %3680
        %3682 = vadd.xlane.f32.xlu0 %v753
        %v3683 = vpop.xlane.xlu0 %3682
        %3684 = vadd.xlane.f32.xlu0 %v756
        %v3685 = vpop.xlane.xlu0 %3684
        %3686 = vadd.xlane.f32.xlu0 %v759
        %v3687 = vpop.xlane.xlu0 %3686
        %3688 = vadd.xlane.f32.xlu0 %v762
        %v3689 = vpop.xlane.xlu0 %3688
        %3690 = vadd.xlane.f32.xlu0 %v765
        %v3691 = vpop.xlane.xlu0 %3690
        %3692 = vadd.xlane.f32.xlu0 %v768
        %v3693 = vpop.xlane.xlu0 %3692
        %3694 = vadd.xlane.f32.xlu0 %v771
        %v3695 = vpop.xlane.xlu0 %3694
        %3696 = vadd.xlane.f32.xlu0 %v774
        %v3697 = vpop.xlane.xlu0 %3696
        %3698 = vadd.xlane.f32.xlu0 %v777
        %v3699 = vpop.xlane.xlu0 %3698
        %3700 = vadd.xlane.f32.xlu0 %v780
        %v3701 = vpop.xlane.xlu0 %3700
        %3702 = vadd.xlane.f32.xlu0 %v783
        %v3703 = vpop.xlane.xlu0 %3702
        %3704 = vadd.xlane.f32.xlu0 %v786
        %v3705 = vpop.xlane.xlu0 %3704
        %3706 = vadd.xlane.f32.xlu0 %v789
        %v3707 = vpop.xlane.xlu0 %3706
        %3708 = vadd.xlane.f32.xlu0 %v792
        %v3709 = vpop.xlane.xlu0 %3708
        %v3710 = vmul.f32 %v3679, %v1136
        %v3711 = vmul.f32 %v3681, %v1136
        %v3712 = vmul.f32 %v3683, %v1136
        %v3713 = vmul.f32 %v3685, %v1136
        %v3714 = vmul.f32 %v3687, %v1136
        %v3715 = vmul.f32 %v3689, %v1136
        %v3716 = vmul.f32 %v3691, %v1136
        %v3717 = vmul.f32 %v3693, %v1136
        %v3718 = vmul.f32 %v3695, %v1136
        %v3719 = vmul.f32 %v3697, %v1136
        %v3720 = vmul.f32 %v3699, %v1136
        %v3721 = vmul.f32 %v3701, %v1136
        %v3722 = vmul.f32 %v3703, %v1136
        %v3723 = vmul.f32 %v3705, %v1136
        %v3724 = vmul.f32 %v3707, %v1136
        %v3725 = vmul.f32 %v3709, %v1136
        %v3726 = vsub.f32 %v747, %v3710
        %v3727 = vsub.f32 %v750, %v3711
        %v3728 = vsub.f32 %v753, %v3712
        %v3729 = vsub.f32 %v756, %v3713
        %v3730 = vsub.f32 %v759, %v3714
        %v3731 = vsub.f32 %v762, %v3715
        %v3732 = vsub.f32 %v765, %v3716
        %v3733 = vsub.f32 %v768, %v3717
        %v3734 = vsub.f32 %v771, %v3718
        %v3735 = vsub.f32 %v774, %v3719
        %v3736 = vsub.f32 %v777, %v3720
        %v3737 = vsub.f32 %v780, %v3721
        %v3738 = vsub.f32 %v783, %v3722
        %v3739 = vsub.f32 %v786, %v3723
        %v3740 = vsub.f32 %v789, %v3724
        %v3741 = vsub.f32 %v792, %v3725
        %v3742 = vmul.f32 %v3726, %v3726
        %v3743 = vmul.f32 %v3727, %v3727
        %v3744 = vmul.f32 %v3728, %v3728
        %v3745 = vmul.f32 %v3729, %v3729
        %v3746 = vmul.f32 %v3730, %v3730
        %v3747 = vmul.f32 %v3731, %v3731
        %v3748 = vmul.f32 %v3732, %v3732
        %v3749 = vmul.f32 %v3733, %v3733
        %v3750 = vmul.f32 %v3734, %v3734
        %v3751 = vmul.f32 %v3735, %v3735
        %v3752 = vmul.f32 %v3736, %v3736
        %v3753 = vmul.f32 %v3737, %v3737
        %v3754 = vmul.f32 %v3738, %v3738
        %v3755 = vmul.f32 %v3739, %v3739
        %v3756 = vmul.f32 %v3740, %v3740
        %v3757 = vmul.f32 %v3741, %v3741
        %3758 = vadd.xlane.f32.xlu0 %v3742
        %v3759 = vpop.xlane.xlu0 %3758
        %3760 = vadd.xlane.f32.xlu0 %v3743
        %v3761 = vpop.xlane.xlu0 %3760
        %3762 = vadd.xlane.f32.xlu0 %v3744
        %v3763 = vpop.xlane.xlu0 %3762
        %3764 = vadd.xlane.f32.xlu0 %v3745
        %v3765 = vpop.xlane.xlu0 %3764
        %3766 = vadd.xlane.f32.xlu0 %v3746
        %v3767 = vpop.xlane.xlu0 %3766
        %3768 = vadd.xlane.f32.xlu0 %v3747
        %v3769 = vpop.xlane.xlu0 %3768
        %3770 = vadd.xlane.f32.xlu0 %v3748
        %v3771 = vpop.xlane.xlu0 %3770
        %3772 = vadd.xlane.f32.xlu0 %v3749
        %v3773 = vpop.xlane.xlu0 %3772
        %3774 = vadd.xlane.f32.xlu0 %v3750
        %v3775 = vpop.xlane.xlu0 %3774
        %3776 = vadd.xlane.f32.xlu0 %v3751
        %v3777 = vpop.xlane.xlu0 %3776
        %3778 = vadd.xlane.f32.xlu0 %v3752
        %v3779 = vpop.xlane.xlu0 %3778
        %3780 = vadd.xlane.f32.xlu0 %v3753
        %v3781 = vpop.xlane.xlu0 %3780
        %3782 = vadd.xlane.f32.xlu0 %v3754
        %v3783 = vpop.xlane.xlu0 %3782
        %3784 = vadd.xlane.f32.xlu0 %v3755
        %v3785 = vpop.xlane.xlu0 %3784
        %3786 = vadd.xlane.f32.xlu0 %v3756
        %v3787 = vpop.xlane.xlu0 %3786
        %3788 = vadd.xlane.f32.xlu0 %v3757
        %v3789 = vpop.xlane.xlu0 %3788
        %v3790 = vmul.f32 %v3759, %v1136
        %v3791 = vmul.f32 %v3761, %v1136
        %v3792 = vmul.f32 %v3763, %v1136
        %v3793 = vmul.f32 %v3765, %v1136
        %v3794 = vmul.f32 %v3767, %v1136
        %v3795 = vmul.f32 %v3769, %v1136
        %v3796 = vmul.f32 %v3771, %v1136
        %v3797 = vmul.f32 %v3773, %v1136
        %v3798 = vmul.f32 %v3775, %v1136
        %v3799 = vmul.f32 %v3777, %v1136
        %v3800 = vmul.f32 %v3779, %v1136
        %v3801 = vmul.f32 %v3781, %v1136
        %v3802 = vmul.f32 %v3783, %v1136
        %v3803 = vmul.f32 %v3785, %v1136
        %v3804 = vmul.f32 %v3787, %v1136
        %v3805 = vmul.f32 %v3789, %v1136
        %v3806 = vadd.f32 %v3790, 1e-05
        %v3807 = vadd.f32 %v3791, 1e-05
        %v3808 = vadd.f32 %v3792, 1e-05
        %v3809 = vadd.f32 %v3793, 1e-05
        %v3810 = vadd.f32 %v3794, 1e-05
        %v3811 = vadd.f32 %v3795, 1e-05
        %v3812 = vadd.f32 %v3796, 1e-05
        %v3813 = vadd.f32 %v3797, 1e-05
        %v3814 = vadd.f32 %v3798, 1e-05
        %v3815 = vadd.f32 %v3799, 1e-05
        %v3816 = vadd.f32 %v3800, 1e-05
        %v3817 = vadd.f32 %v3801, 1e-05
        %v3818 = vadd.f32 %v3802, 1e-05
        %v3819 = vadd.f32 %v3803, 1e-05
        %v3820 = vadd.f32 %v3804, 1e-05
        %v3821 = vadd.f32 %v3805, 1e-05
        %v3822 = vrsqrt.pop %v3806
        %v3823 = vmul.f32 %v3822, %v3806
        %v3824 = vmul.f32 %v3823, %v3822
        %v3825 = vmul.f32 0.5, %v3824
        %v3826 = vsub.f32 1.5, %v3825
        %v3827 = vmul.f32 %v3822, %v3826
        %vm3828 = vweird.f32 %v3806
        %vm3829 = vweird.f32 %v3822
        %vm3830 = vmor %vm3828, %vm3829
        %v3831 = vsel %vm3830, %v3822, %v3827
        %v3832 = vrsqrt.pop %v3807
        %v3833 = vmul.f32 %v3832, %v3807
        %v3834 = vmul.f32 %v3833, %v3832
        %v3835 = vmul.f32 0.5, %v3834
        %v3836 = vsub.f32 1.5, %v3835
        %v3837 = vmul.f32 %v3832, %v3836
        %vm3838 = vweird.f32 %v3807
        %vm3839 = vweird.f32 %v3832
        %vm3840 = vmor %vm3838, %vm3839
        %v3841 = vsel %vm3840, %v3832, %v3837
        %v3842 = vrsqrt.pop %v3808
        %v3843 = vmul.f32 %v3842, %v3808
        %v3844 = vmul.f32 %v3843, %v3842
        %v3845 = vmul.f32 0.5, %v3844
        %v3846 = vsub.f32 1.5, %v3845
        %v3847 = vmul.f32 %v3842, %v3846
        %vm3848 = vweird.f32 %v3808
        %vm3849 = vweird.f32 %v3842
        %vm3850 = vmor %vm3848, %vm3849
        %v3851 = vsel %vm3850, %v3842, %v3847
        %v3852 = vrsqrt.pop %v3809
        %v3853 = vmul.f32 %v3852, %v3809
        %v3854 = vmul.f32 %v3853, %v3852
        %v3855 = vmul.f32 0.5, %v3854
        %v3856 = vsub.f32 1.5, %v3855
        %v3857 = vmul.f32 %v3852, %v3856
        %vm3858 = vweird.f32 %v3809
        %vm3859 = vweird.f32 %v3852
        %vm3860 = vmor %vm3858, %vm3859
        %v3861 = vsel %vm3860, %v3852, %v3857
        %v3862 = vrsqrt.pop %v3810
        %v3863 = vmul.f32 %v3862, %v3810
        %v3864 = vmul.f32 %v3863, %v3862
        %v3865 = vmul.f32 0.5, %v3864
        %v3866 = vsub.f32 1.5, %v3865
        %v3867 = vmul.f32 %v3862, %v3866
        %vm3868 = vweird.f32 %v3810
        %vm3869 = vweird.f32 %v3862
        %vm3870 = vmor %vm3868, %vm3869
        %v3871 = vsel %vm3870, %v3862, %v3867
        %v3872 = vrsqrt.pop %v3811
        %v3873 = vmul.f32 %v3872, %v3811
        %v3874 = vmul.f32 %v3873, %v3872
        %v3875 = vmul.f32 0.5, %v3874
        %v3876 = vsub.f32 1.5, %v3875
        %v3877 = vmul.f32 %v3872, %v3876
        %vm3878 = vweird.f32 %v3811
        %vm3879 = vweird.f32 %v3872
        %vm3880 = vmor %vm3878, %vm3879
        %v3881 = vsel %vm3880, %v3872, %v3877
        %v3882 = vrsqrt.pop %v3812
        %v3883 = vmul.f32 %v3882, %v3812
        %v3884 = vmul.f32 %v3883, %v3882
        %v3885 = vmul.f32 0.5, %v3884
        %v3886 = vsub.f32 1.5, %v3885
        %v3887 = vmul.f32 %v3882, %v3886
        %vm3888 = vweird.f32 %v3812
        %vm3889 = vweird.f32 %v3882
        %vm3890 = vmor %vm3888, %vm3889
        %v3891 = vsel %vm3890, %v3882, %v3887
        %v3892 = vrsqrt.pop %v3813
        %v3893 = vmul.f32 %v3892, %v3813
        %v3894 = vmul.f32 %v3893, %v3892
        %v3895 = vmul.f32 0.5, %v3894
        %v3896 = vsub.f32 1.5, %v3895
        %v3897 = vmul.f32 %v3892, %v3896
        %vm3898 = vweird.f32 %v3813
        %vm3899 = vweird.f32 %v3892
        %vm3900 = vmor %vm3898, %vm3899
        %v3901 = vsel %vm3900, %v3892, %v3897
        %v3902 = vrsqrt.pop %v3814
        %v3903 = vmul.f32 %v3902, %v3814
        %v3904 = vmul.f32 %v3903, %v3902
        %v3905 = vmul.f32 0.5, %v3904
        %v3906 = vsub.f32 1.5, %v3905
        %v3907 = vmul.f32 %v3902, %v3906
        %vm3908 = vweird.f32 %v3814
        %vm3909 = vweird.f32 %v3902
        %vm3910 = vmor %vm3908, %vm3909
        %v3911 = vsel %vm3910, %v3902, %v3907
        %v3912 = vrsqrt.pop %v3815
        %v3913 = vmul.f32 %v3912, %v3815
        %v3914 = vmul.f32 %v3913, %v3912
        %v3915 = vmul.f32 0.5, %v3914
        %v3916 = vsub.f32 1.5, %v3915
        %v3917 = vmul.f32 %v3912, %v3916
        %vm3918 = vweird.f32 %v3815
        %vm3919 = vweird.f32 %v3912
        %vm3920 = vmor %vm3918, %vm3919
        %v3921 = vsel %vm3920, %v3912, %v3917
        %v3922 = vrsqrt.pop %v3816
        %v3923 = vmul.f32 %v3922, %v3816
        %v3924 = vmul.f32 %v3923, %v3922
        %v3925 = vmul.f32 0.5, %v3924
        %v3926 = vsub.f32 1.5, %v3925
        %v3927 = vmul.f32 %v3922, %v3926
        %vm3928 = vweird.f32 %v3816
        %vm3929 = vweird.f32 %v3922
        %vm3930 = vmor %vm3928, %vm3929
        %v3931 = vsel %vm3930, %v3922, %v3927
        %v3932 = vrsqrt.pop %v3817
        %v3933 = vmul.f32 %v3932, %v3817
        %v3934 = vmul.f32 %v3933, %v3932
        %v3935 = vmul.f32 0.5, %v3934
        %v3936 = vsub.f32 1.5, %v3935
        %v3937 = vmul.f32 %v3932, %v3936
        %vm3938 = vweird.f32 %v3817
        %vm3939 = vweird.f32 %v3932
        %vm3940 = vmor %vm3938, %vm3939
        %v3941 = vsel %vm3940, %v3932, %v3937
        %v3942 = vrsqrt.pop %v3818
        %v3943 = vmul.f32 %v3942, %v3818
        %v3944 = vmul.f32 %v3943, %v3942
        %v3945 = vmul.f32 0.5, %v3944
        %v3946 = vsub.f32 1.5, %v3945
        %v3947 = vmul.f32 %v3942, %v3946
        %vm3948 = vweird.f32 %v3818
        %vm3949 = vweird.f32 %v3942
        %vm3950 = vmor %vm3948, %vm3949
        %v3951 = vsel %vm3950, %v3942, %v3947
        %v3952 = vrsqrt.pop %v3819
        %v3953 = vmul.f32 %v3952, %v3819
        %v3954 = vmul.f32 %v3953, %v3952
        %v3955 = vmul.f32 0.5, %v3954
        %v3956 = vsub.f32 1.5, %v3955
        %v3957 = vmul.f32 %v3952, %v3956
        %vm3958 = vweird.f32 %v3819
        %vm3959 = vweird.f32 %v3952
        %vm3960 = vmor %vm3958, %vm3959
        %v3961 = vsel %vm3960, %v3952, %v3957
        %v3962 = vrsqrt.pop %v3820
        %v3963 = vmul.f32 %v3962, %v3820
        %v3964 = vmul.f32 %v3963, %v3962
        %v3965 = vmul.f32 0.5, %v3964
        %v3966 = vsub.f32 1.5, %v3965
        %v3967 = vmul.f32 %v3962, %v3966
        %vm3968 = vweird.f32 %v3820
        %vm3969 = vweird.f32 %v3962
        %vm3970 = vmor %vm3968, %vm3969
        %v3971 = vsel %vm3970, %v3962, %v3967
        %v3972 = vrsqrt.pop %v3821
        %v3973 = vmul.f32 %v3972, %v3821
        %v3974 = vmul.f32 %v3973, %v3972
        %v3975 = vmul.f32 0.5, %v3974
        %v3976 = vsub.f32 1.5, %v3975
        %v3977 = vmul.f32 %v3972, %v3976
        %vm3978 = vweird.f32 %v3821
        %vm3979 = vweird.f32 %v3972
        %vm3980 = vmor %vm3978, %vm3979
        %v3981 = vsel %vm3980, %v3972, %v3977
        %v3982 = vmul.f32 %v3726, %v3831
        %v3983 = vmul.f32 %v3727, %v3841
        %v3984 = vmul.f32 %v3728, %v3851
        %v3985 = vmul.f32 %v3729, %v3861
        %v3986 = vmul.f32 %v3730, %v3871
        %v3987 = vmul.f32 %v3731, %v3881
        %v3988 = vmul.f32 %v3732, %v3891
        %v3989 = vmul.f32 %v3733, %v3901
        %v3990 = vmul.f32 %v3734, %v3911
        %v3991 = vmul.f32 %v3735, %v3921
        %v3992 = vmul.f32 %v3736, %v3931
        %v3993 = vmul.f32 %v3737, %v3941
        %v3994 = vmul.f32 %v3738, %v3951
        %v3995 = vmul.f32 %v3739, %v3961
        %v3996 = vmul.f32 %v3740, %v3971
        %v3997 = vmul.f32 %v3741, %v3981
        %v3998 = vperm.slane %v3676, 0
        %v3999 = vmul.f32 %v3982, %v3998
        %v4000 = vmul.f32 %v3983, %v3998
        %v4001 = vmul.f32 %v3984, %v3998
        %v4002 = vmul.f32 %v3985, %v3998
        %v4003 = vmul.f32 %v3986, %v3998
        %v4004 = vmul.f32 %v3987, %v3998
        %v4005 = vmul.f32 %v3988, %v3998
        %v4006 = vmul.f32 %v3989, %v3998
        %v4007 = vmul.f32 %v3990, %v3998
        %v4008 = vmul.f32 %v3991, %v3998
        %v4009 = vmul.f32 %v3992, %v3998
        %v4010 = vmul.f32 %v3993, %v3998
        %v4011 = vmul.f32 %v3994, %v3998
        %v4012 = vmul.f32 %v3995, %v3998
        %v4013 = vmul.f32 %v3996, %v3998
        %v4014 = vmul.f32 %v3997, %v3998
        %v4015 = vperm.slane %v3677, 0
        %v4016 = vadd.f32 %v3999, %v4015
        %v4017 = vadd.f32 %v4000, %v4015
        %v4018 = vadd.f32 %v4001, %v4015
        %v4019 = vadd.f32 %v4002, %v4015
        %v4020 = vadd.f32 %v4003, %v4015
        %v4021 = vadd.f32 %v4004, %v4015
        %v4022 = vadd.f32 %v4005, %v4015
        %v4023 = vadd.f32 %v4006, %v4015
        %v4024 = vadd.f32 %v4007, %v4015
        %v4025 = vadd.f32 %v4008, %v4015
        %v4026 = vadd.f32 %v4009, %v4015
        %v4027 = vadd.f32 %v4010, %v4015
        %v4028 = vadd.f32 %v4011, %v4015
        %v4029 = vadd.f32 %v4012, %v4015
        %v4030 = vadd.f32 %v4013, %v4015
        %v4031 = vadd.f32 %v4014, %v4015
        %v4032 = vld [vmem:[%s7 + $0x3] sm:$0x1]
        %v4033 = vld [vmem:[%s8 + $0x3] sm:$0x1]
        %4034 = vadd.xlane.f32.xlu0 %v1049
        %v4035 = vpop.xlane.xlu0 %4034
        %4036 = vadd.xlane.f32.xlu0 %v1052
        %v4037 = vpop.xlane.xlu0 %4036
        %4038 = vadd.xlane.f32.xlu0 %v1055
        %v4039 = vpop.xlane.xlu0 %4038
        %4040 = vadd.xlane.f32.xlu0 %v1058
        %v4041 = vpop.xlane.xlu0 %4040
        %4042 = vadd.xlane.f32.xlu0 %v1061
        %v4043 = vpop.xlane.xlu0 %4042
        %4044 = vadd.xlane.f32.xlu0 %v1064
        %v4045 = vpop.xlane.xlu0 %4044
        %4046 = vadd.xlane.f32.xlu0 %v1067
        %v4047 = vpop.xlane.xlu0 %4046
        %4048 = vadd.xlane.f32.xlu0 %v1070
        %v4049 = vpop.xlane.xlu0 %4048
        %4050 = vadd.xlane.f32.xlu0 %v1073
        %v4051 = vpop.xlane.xlu0 %4050
        %4052 = vadd.xlane.f32.xlu0 %v1076
        %v4053 = vpop.xlane.xlu0 %4052
        %4054 = vadd.xlane.f32.xlu0 %v1079
        %v4055 = vpop.xlane.xlu0 %4054
        %4056 = vadd.xlane.f32.xlu0 %v1082
        %v4057 = vpop.xlane.xlu0 %4056
        %4058 = vadd.xlane.f32.xlu0 %v1085
        %v4059 = vpop.xlane.xlu0 %4058
        %4060 = vadd.xlane.f32.xlu0 %v1088
        %v4061 = vpop.xlane.xlu0 %4060
        %4062 = vadd.xlane.f32.xlu0 %v1091
        %v4063 = vpop.xlane.xlu0 %4062
        %4064 = vadd.xlane.f32.xlu0 %v1094
        %v4065 = vpop.xlane.xlu0 %4064
        %v4066 = vmul.f32 %v4035, %v1136
        %v4067 = vmul.f32 %v4037, %v1136
        %v4068 = vmul.f32 %v4039, %v1136
        %v4069 = vmul.f32 %v4041, %v1136
        %v4070 = vmul.f32 %v4043, %v1136
        %v4071 = vmul.f32 %v4045, %v1136
        %v4072 = vmul.f32 %v4047, %v1136
        %v4073 = vmul.f32 %v4049, %v1136
        %v4074 = vmul.f32 %v4051, %v1136
        %v4075 = vmul.f32 %v4053, %v1136
        %v4076 = vmul.f32 %v4055, %v1136
        %v4077 = vmul.f32 %v4057, %v1136
        %v4078 = vmul.f32 %v4059, %v1136
        %v4079 = vmul.f32 %v4061, %v1136
        %v4080 = vmul.f32 %v4063, %v1136
        %v4081 = vmul.f32 %v4065, %v1136
        %v4082 = vsub.f32 %v1049, %v4066
        %v4083 = vsub.f32 %v1052, %v4067
        %v4084 = vsub.f32 %v1055, %v4068
        %v4085 = vsub.f32 %v1058, %v4069
        %v4086 = vsub.f32 %v1061, %v4070
        %v4087 = vsub.f32 %v1064, %v4071
        %v4088 = vsub.f32 %v1067, %v4072
        %v4089 = vsub.f32 %v1070, %v4073
        %v4090 = vsub.f32 %v1073, %v4074
        %v4091 = vsub.f32 %v1076, %v4075
        %v4092 = vsub.f32 %v1079, %v4076
        %v4093 = vsub.f32 %v1082, %v4077
        %v4094 = vsub.f32 %v1085, %v4078
        %v4095 = vsub.f32 %v1088, %v4079
        %v4096 = vsub.f32 %v1091, %v4080
        %v4097 = vsub.f32 %v1094, %v4081
        %v4098 = vmul.f32 %v4082, %v4082
        %v4099 = vmul.f32 %v4083, %v4083
        %v4100 = vmul.f32 %v4084, %v4084
        %v4101 = vmul.f32 %v4085, %v4085
        %v4102 = vmul.f32 %v4086, %v4086
        %v4103 = vmul.f32 %v4087, %v4087
        %v4104 = vmul.f32 %v4088, %v4088
        %v4105 = vmul.f32 %v4089, %v4089
        %v4106 = vmul.f32 %v4090, %v4090
        %v4107 = vmul.f32 %v4091, %v4091
        %v4108 = vmul.f32 %v4092, %v4092
        %v4109 = vmul.f32 %v4093, %v4093
        %v4110 = vmul.f32 %v4094, %v4094
        %v4111 = vmul.f32 %v4095, %v4095
        %v4112 = vmul.f32 %v4096, %v4096
        %v4113 = vmul.f32 %v4097, %v4097
        %4114 = vadd.xlane.f32.xlu0 %v4098
        %v4115 = vpop.xlane.xlu0 %4114
        %4116 = vadd.xlane.f32.xlu0 %v4099
        %v4117 = vpop.xlane.xlu0 %4116
        %4118 = vadd.xlane.f32.xlu0 %v4100
        %v4119 = vpop.xlane.xlu0 %4118
        %4120 = vadd.xlane.f32.xlu0 %v4101
        %v4121 = vpop.xlane.xlu0 %4120
        %4122 = vadd.xlane.f32.xlu0 %v4102
        %v4123 = vpop.xlane.xlu0 %4122
        %4124 = vadd.xlane.f32.xlu0 %v4103
        %v4125 = vpop.xlane.xlu0 %4124
        %4126 = vadd.xlane.f32.xlu0 %v4104
        %v4127 = vpop.xlane.xlu0 %4126
        %4128 = vadd.xlane.f32.xlu0 %v4105
        %v4129 = vpop.xlane.xlu0 %4128
        %4130 = vadd.xlane.f32.xlu0 %v4106
        %v4131 = vpop.xlane.xlu0 %4130
        %4132 = vadd.xlane.f32.xlu0 %v4107
        %v4133 = vpop.xlane.xlu0 %4132
        %4134 = vadd.xlane.f32.xlu0 %v4108
        %v4135 = vpop.xlane.xlu0 %4134
        %4136 = vadd.xlane.f32.xlu0 %v4109
        %v4137 = vpop.xlane.xlu0 %4136
        %4138 = vadd.xlane.f32.xlu0 %v4110
        %v4139 = vpop.xlane.xlu0 %4138
        %4140 = vadd.xlane.f32.xlu0 %v4111
        %v4141 = vpop.xlane.xlu0 %4140
        %4142 = vadd.xlane.f32.xlu0 %v4112
        %v4143 = vpop.xlane.xlu0 %4142
        %4144 = vadd.xlane.f32.xlu0 %v4113
        %v4145 = vpop.xlane.xlu0 %4144
        %v4146 = vmul.f32 %v4115, %v1136
        %v4147 = vmul.f32 %v4117, %v1136
        %v4148 = vmul.f32 %v4119, %v1136
        %v4149 = vmul.f32 %v4121, %v1136
        %v4150 = vmul.f32 %v4123, %v1136
        %v4151 = vmul.f32 %v4125, %v1136
        %v4152 = vmul.f32 %v4127, %v1136
        %v4153 = vmul.f32 %v4129, %v1136
        %v4154 = vmul.f32 %v4131, %v1136
        %v4155 = vmul.f32 %v4133, %v1136
        %v4156 = vmul.f32 %v4135, %v1136
        %v4157 = vmul.f32 %v4137, %v1136
        %v4158 = vmul.f32 %v4139, %v1136
        %v4159 = vmul.f32 %v4141, %v1136
        %v4160 = vmul.f32 %v4143, %v1136
        %v4161 = vmul.f32 %v4145, %v1136
        %v4162 = vadd.f32 %v4146, 1e-05
        %v4163 = vadd.f32 %v4147, 1e-05
        %v4164 = vadd.f32 %v4148, 1e-05
        %v4165 = vadd.f32 %v4149, 1e-05
        %v4166 = vadd.f32 %v4150, 1e-05
        %v4167 = vadd.f32 %v4151, 1e-05
        %v4168 = vadd.f32 %v4152, 1e-05
        %v4169 = vadd.f32 %v4153, 1e-05
        %v4170 = vadd.f32 %v4154, 1e-05
        %v4171 = vadd.f32 %v4155, 1e-05
        %v4172 = vadd.f32 %v4156, 1e-05
        %v4173 = vadd.f32 %v4157, 1e-05
        %v4174 = vadd.f32 %v4158, 1e-05
        %v4175 = vadd.f32 %v4159, 1e-05
        %v4176 = vadd.f32 %v4160, 1e-05
        %v4177 = vadd.f32 %v4161, 1e-05
        %v4178 = vrsqrt.pop %v4162
        %v4179 = vmul.f32 %v4178, %v4162
        %v4180 = vmul.f32 %v4179, %v4178
        %v4181 = vmul.f32 0.5, %v4180
        %v4182 = vsub.f32 1.5, %v4181
        %v4183 = vmul.f32 %v4178, %v4182
        %vm4184 = vweird.f32 %v4162
        %vm4185 = vweird.f32 %v4178
        %vm4186 = vmor %vm4184, %vm4185
        %v4187 = vsel %vm4186, %v4178, %v4183
        %v4188 = vrsqrt.pop %v4163
        %v4189 = vmul.f32 %v4188, %v4163
        %v4190 = vmul.f32 %v4189, %v4188
        %v4191 = vmul.f32 0.5, %v4190
        %v4192 = vsub.f32 1.5, %v4191
        %v4193 = vmul.f32 %v4188, %v4192
        %vm4194 = vweird.f32 %v4163
        %vm4195 = vweird.f32 %v4188
        %vm4196 = vmor %vm4194, %vm4195
        %v4197 = vsel %vm4196, %v4188, %v4193
        %v4198 = vrsqrt.pop %v4164
        %v4199 = vmul.f32 %v4198, %v4164
        %v4200 = vmul.f32 %v4199, %v4198
        %v4201 = vmul.f32 0.5, %v4200
        %v4202 = vsub.f32 1.5, %v4201
        %v4203 = vmul.f32 %v4198, %v4202
        %vm4204 = vweird.f32 %v4164
        %vm4205 = vweird.f32 %v4198
        %vm4206 = vmor %vm4204, %vm4205
        %v4207 = vsel %vm4206, %v4198, %v4203
        %v4208 = vrsqrt.pop %v4165
        %v4209 = vmul.f32 %v4208, %v4165
        %v4210 = vmul.f32 %v4209, %v4208
        %v4211 = vmul.f32 0.5, %v4210
        %v4212 = vsub.f32 1.5, %v4211
        %v4213 = vmul.f32 %v4208, %v4212
        %vm4214 = vweird.f32 %v4165
        %vm4215 = vweird.f32 %v4208
        %vm4216 = vmor %vm4214, %vm4215
        %v4217 = vsel %vm4216, %v4208, %v4213
        %v4218 = vrsqrt.pop %v4166
        %v4219 = vmul.f32 %v4218, %v4166
        %v4220 = vmul.f32 %v4219, %v4218
        %v4221 = vmul.f32 0.5, %v4220
        %v4222 = vsub.f32 1.5, %v4221
        %v4223 = vmul.f32 %v4218, %v4222
        %vm4224 = vweird.f32 %v4166
        %vm4225 = vweird.f32 %v4218
        %vm4226 = vmor %vm4224, %vm4225
        %v4227 = vsel %vm4226, %v4218, %v4223
        %v4228 = vrsqrt.pop %v4167
        %v4229 = vmul.f32 %v4228, %v4167
        %v4230 = vmul.f32 %v4229, %v4228
        %v4231 = vmul.f32 0.5, %v4230
        %v4232 = vsub.f32 1.5, %v4231
        %v4233 = vmul.f32 %v4228, %v4232
        %vm4234 = vweird.f32 %v4167
        %vm4235 = vweird.f32 %v4228
        %vm4236 = vmor %vm4234, %vm4235
        %v4237 = vsel %vm4236, %v4228, %v4233
        %v4238 = vrsqrt.pop %v4168
        %v4239 = vmul.f32 %v4238, %v4168
        %v4240 = vmul.f32 %v4239, %v4238
        %v4241 = vmul.f32 0.5, %v4240
        %v4242 = vsub.f32 1.5, %v4241
        %v4243 = vmul.f32 %v4238, %v4242
        %vm4244 = vweird.f32 %v4168
        %vm4245 = vweird.f32 %v4238
        %vm4246 = vmor %vm4244, %vm4245
        %v4247 = vsel %vm4246, %v4238, %v4243
        %v4248 = vrsqrt.pop %v4169
        %v4249 = vmul.f32 %v4248, %v4169
        %v4250 = vmul.f32 %v4249, %v4248
        %v4251 = vmul.f32 0.5, %v4250
        %v4252 = vsub.f32 1.5, %v4251
        %v4253 = vmul.f32 %v4248, %v4252
        %vm4254 = vweird.f32 %v4169
        %vm4255 = vweird.f32 %v4248
        %vm4256 = vmor %vm4254, %vm4255
        %v4257 = vsel %vm4256, %v4248, %v4253
        %v4258 = vrsqrt.pop %v4170
        %v4259 = vmul.f32 %v4258, %v4170
        %v4260 = vmul.f32 %v4259, %v4258
        %v4261 = vmul.f32 0.5, %v4260
        %v4262 = vsub.f32 1.5, %v4261
        %v4263 = vmul.f32 %v4258, %v4262
        %vm4264 = vweird.f32 %v4170
        %vm4265 = vweird.f32 %v4258
        %vm4266 = vmor %vm4264, %vm4265
        %v4267 = vsel %vm4266, %v4258, %v4263
        %v4268 = vrsqrt.pop %v4171
        %v4269 = vmul.f32 %v4268, %v4171
        %v4270 = vmul.f32 %v4269, %v4268
        %v4271 = vmul.f32 0.5, %v4270
        %v4272 = vsub.f32 1.5, %v4271
        %v4273 = vmul.f32 %v4268, %v4272
        %vm4274 = vweird.f32 %v4171
        %vm4275 = vweird.f32 %v4268
        %vm4276 = vmor %vm4274, %vm4275
        %v4277 = vsel %vm4276, %v4268, %v4273
        %v4278 = vrsqrt.pop %v4172
        %v4279 = vmul.f32 %v4278, %v4172
        %v4280 = vmul.f32 %v4279, %v4278
        %v4281 = vmul.f32 0.5, %v4280
        %v4282 = vsub.f32 1.5, %v4281
        %v4283 = vmul.f32 %v4278, %v4282
        %vm4284 = vweird.f32 %v4172
        %vm4285 = vweird.f32 %v4278
        %vm4286 = vmor %vm4284, %vm4285
        %v4287 = vsel %vm4286, %v4278, %v4283
        %v4288 = vrsqrt.pop %v4173
        %v4289 = vmul.f32 %v4288, %v4173
        %v4290 = vmul.f32 %v4289, %v4288
        %v4291 = vmul.f32 0.5, %v4290
        %v4292 = vsub.f32 1.5, %v4291
        %v4293 = vmul.f32 %v4288, %v4292
        %vm4294 = vweird.f32 %v4173
        %vm4295 = vweird.f32 %v4288
        %vm4296 = vmor %vm4294, %vm4295
        %v4297 = vsel %vm4296, %v4288, %v4293
        %v4298 = vrsqrt.pop %v4174
        %v4299 = vmul.f32 %v4298, %v4174
        %v4300 = vmul.f32 %v4299, %v4298
        %v4301 = vmul.f32 0.5, %v4300
        %v4302 = vsub.f32 1.5, %v4301
        %v4303 = vmul.f32 %v4298, %v4302
        %vm4304 = vweird.f32 %v4174
        %vm4305 = vweird.f32 %v4298
        %vm4306 = vmor %vm4304, %vm4305
        %v4307 = vsel %vm4306, %v4298, %v4303
        %v4308 = vrsqrt.pop %v4175
        %v4309 = vmul.f32 %v4308, %v4175
        %v4310 = vmul.f32 %v4309, %v4308
        %v4311 = vmul.f32 0.5, %v4310
        %v4312 = vsub.f32 1.5, %v4311
        %v4313 = vmul.f32 %v4308, %v4312
        %vm4314 = vweird.f32 %v4175
        %vm4315 = vweird.f32 %v4308
        %vm4316 = vmor %vm4314, %vm4315
        %v4317 = vsel %vm4316, %v4308, %v4313
        %v4318 = vrsqrt.pop %v4176
        %v4319 = vmul.f32 %v4318, %v4176
        %v4320 = vmul.f32 %v4319, %v4318
        %v4321 = vmul.f32 0.5, %v4320
        %v4322 = vsub.f32 1.5, %v4321
        %v4323 = vmul.f32 %v4318, %v4322
        %vm4324 = vweird.f32 %v4176
        %vm4325 = vweird.f32 %v4318
        %vm4326 = vmor %vm4324, %vm4325
        %v4327 = vsel %vm4326, %v4318, %v4323
        %v4328 = vrsqrt.pop %v4177
        %v4329 = vmul.f32 %v4328, %v4177
        %v4330 = vmul.f32 %v4329, %v4328
        %v4331 = vmul.f32 0.5, %v4330
        %v4332 = vsub.f32 1.5, %v4331
        %v4333 = vmul.f32 %v4328, %v4332
        %vm4334 = vweird.f32 %v4177
        %vm4335 = vweird.f32 %v4328
        %vm4336 = vmor %vm4334, %vm4335
        %v4337 = vsel %vm4336, %v4328, %v4333
        %v4338 = vmul.f32 %v4082, %v4187
        %v4339 = vmul.f32 %v4083, %v4197
        %v4340 = vmul.f32 %v4084, %v4207
        %v4341 = vmul.f32 %v4085, %v4217
        %v4342 = vmul.f32 %v4086, %v4227
        %v4343 = vmul.f32 %v4087, %v4237
        %v4344 = vmul.f32 %v4088, %v4247
        %v4345 = vmul.f32 %v4089, %v4257
        %v4346 = vmul.f32 %v4090, %v4267
        %v4347 = vmul.f32 %v4091, %v4277
        %v4348 = vmul.f32 %v4092, %v4287
        %v4349 = vmul.f32 %v4093, %v4297
        %v4350 = vmul.f32 %v4094, %v4307
        %v4351 = vmul.f32 %v4095, %v4317
        %v4352 = vmul.f32 %v4096, %v4327
        %v4353 = vmul.f32 %v4097, %v4337
        %v4354 = vperm.slane %v4032, 0
        %v4355 = vmul.f32 %v4338, %v4354
        %v4356 = vmul.f32 %v4339, %v4354
        %v4357 = vmul.f32 %v4340, %v4354
        %v4358 = vmul.f32 %v4341, %v4354
        %v4359 = vmul.f32 %v4342, %v4354
        %v4360 = vmul.f32 %v4343, %v4354
        %v4361 = vmul.f32 %v4344, %v4354
        %v4362 = vmul.f32 %v4345, %v4354
        %v4363 = vmul.f32 %v4346, %v4354
        %v4364 = vmul.f32 %v4347, %v4354
        %v4365 = vmul.f32 %v4348, %v4354
        %v4366 = vmul.f32 %v4349, %v4354
        %v4367 = vmul.f32 %v4350, %v4354
        %v4368 = vmul.f32 %v4351, %v4354
        %v4369 = vmul.f32 %v4352, %v4354
        %v4370 = vmul.f32 %v4353, %v4354
        %v4371 = vperm.slane %v4033, 0
        %v4372 = vadd.f32 %v4355, %v4371
        %v4373 = vadd.f32 %v4356, %v4371
        %v4374 = vadd.f32 %v4357, %v4371
        %v4375 = vadd.f32 %v4358, %v4371
        %v4376 = vadd.f32 %v4359, %v4371
        %v4377 = vadd.f32 %v4360, %v4371
        %v4378 = vadd.f32 %v4361, %v4371
        %v4379 = vadd.f32 %v4362, %v4371
        %v4380 = vadd.f32 %v4363, %v4371
        %v4381 = vadd.f32 %v4364, %v4371
        %v4382 = vadd.f32 %v4365, %v4371
        %v4383 = vadd.f32 %v4366, %v4371
        %v4384 = vadd.f32 %v4367, %v4371
        %v4385 = vadd.f32 %v4368, %v4371
        %v4386 = vadd.f32 %v4369, %v4371
        %v4387 = vadd.f32 %v4370, %v4371
        %s4388 = scalar_lea.vmem %s348, 384 [#allocation2]
        %v4389 = vld [vmem:[%s4388] sm:$0xff]
        %v4390 = vld [vmem:[%s4388 + $0x8] sm:$0xff]
        %v4391 = vld [vmem:[%s4388 + $0x10] sm:$0xff]
        %v4392 = vld [vmem:[%s4388 + $0x18] sm:$0xff]
        %v4393 = vld [vmem:[%s4388 + $0x20] sm:$0xff]
        %v4394 = vld [vmem:[%s4388 + $0x28] sm:$0xff]
        %v4395 = vld [vmem:[%s4388 + $0x30] sm:$0xff]
        %v4396 = vld [vmem:[%s4388 + $0x38] sm:$0xff]
        %v4397 = vld [vmem:[%s4388 + $0x40] sm:$0xff]
        %v4398 = vld [vmem:[%s4388 + $0x48] sm:$0xff]
        %v4399 = vld [vmem:[%s4388 + $0x50] sm:$0xff]
        %v4400 = vld [vmem:[%s4388 + $0x58] sm:$0xff]
        %v4401 = vld [vmem:[%s4388 + $0x60] sm:$0xff]
        %v4402 = vld [vmem:[%s4388 + $0x68] sm:$0xff]
        %v4403 = vld [vmem:[%s4388 + $0x70] sm:$0xff]
        %v4404 = vld [vmem:[%s4388 + $0x78] sm:$0xff]
        %4405 = vxpose.xlu0.b32.start [1/16] %v4016, 128
        %4406 = vxpose.xlu0.b32.cont [2/16] %v4017, 128
        %4407 = vxpose.xlu0.b32.cont [3/16] %v4018, 128
        %4408 = vxpose.xlu0.b32.cont [4/16] %v4019, 128
        %4409 = vxpose.xlu0.b32.cont [5/16] %v4020, 128
        %4410 = vxpose.xlu0.b32.cont [6/16] %v4021, 128
        %4411 = vxpose.xlu0.b32.cont [7/16] %v4022, 128
        %4412 = vxpose.xlu0.b32.cont [8/16] %v4023, 128
        %4413 = vxpose.xlu0.b32.cont [9/16] %v4024, 128
        %4414 = vxpose.xlu0.b32.cont [10/16] %v4025, 128
        %4415 = vxpose.xlu0.b32.cont [11/16] %v4026, 128
        %4416 = vxpose.xlu0.b32.cont [12/16] %v4027, 128
        %4417 = vxpose.xlu0.b32.cont [13/16] %v4028, 128
        %4418 = vxpose.xlu0.b32.cont [14/16] %v4029, 128
        %4419 = vxpose.xlu0.b32.cont [15/16] %v4030, 128
        %4420 = vxpose.xlu0.b32.end [16/16] %v4031, 128
        %v4421 = vpop.trf.xlu0
        %v4422 = vpop.trf.xlu0
        %v4423 = vpop.trf.xlu0
        %v4424 = vpop.trf.xlu0
        %v4425 = vpop.trf.xlu0
        %v4426 = vpop.trf.xlu0
        %v4427 = vpop.trf.xlu0
        %v4428 = vpop.trf.xlu0
        %v4429 = vpop.trf.xlu0
        %v4430 = vpop.trf.xlu0
        %v4431 = vpop.trf.xlu0
        %v4432 = vpop.trf.xlu0
        %v4433 = vpop.trf.xlu0
        %v4434 = vpop.trf.xlu0
        %v4435 = vpop.trf.xlu0
        %v4436 = vpop.trf.xlu0
        %4437 = vmatpush.msra.mxu0 %v4387
        %4438 = vmatpush.msra.mxu0 %v4386
        %4439 = vmatpush.msra.mxu0 %v4385
        %4440 = vmatpush.msra.mxu0 %v4384
        %4441 = vmatpush.msra.mxu0 %v4383
        %4442 = vmatpush.msra.mxu0 %v4382
        %4443 = vmatpush.msra.mxu0 %v4381
        %4444 = vmatpush.msra.mxu0 %v4380
        %4445 = vmatpush.msra.mxu0 %v4379
        %4446 = vmatpush.msra.mxu0 %v4378
        %4447 = vmatpush.msra.mxu0 %v4377
        %4448 = vmatpush.msra.mxu0 %v4376
        %4449 = vmatpush.msra.mxu0 %v4375
        %4450 = vmatpush.msra.mxu0 %v4374
        %4451 = vmatpush.msra.mxu0 %v4373
        %4452 = vmatpush.msra.mxu0 %v4372
        %4453 = vmatmul.f32.gmra.mxu0 %v4421
        %v4454 = vpop.f32.mrf.mxu0
        %v4455 = vadd.f32 0.0, %v4454
        %4456 = vmatmul.f32.gmra.mxu0 %v4422
        %v4457 = vpop.f32.mrf.mxu0
        %v4458 = vadd.f32 0.0, %v4457
        %4459 = vmatmul.f32.gmra.mxu0 %v4423
        %v4460 = vpop.f32.mrf.mxu0
        %v4461 = vadd.f32 0.0, %v4460
        %4462 = vmatmul.f32.gmra.mxu0 %v4424
        %v4463 = vpop.f32.mrf.mxu0
        %v4464 = vadd.f32 0.0, %v4463
        %4465 = vmatmul.f32.gmra.mxu0 %v4425
        %v4466 = vpop.f32.mrf.mxu0
        %v4467 = vadd.f32 0.0, %v4466
        %4468 = vmatmul.f32.gmra.mxu0 %v4426
        %v4469 = vpop.f32.mrf.mxu0
        %v4470 = vadd.f32 0.0, %v4469
        %4471 = vmatmul.f32.gmra.mxu0 %v4427
        %v4472 = vpop.f32.mrf.mxu0
        %v4473 = vadd.f32 0.0, %v4472
        %4474 = vmatmul.f32.gmra.mxu0 %v4428
        %v4475 = vpop.f32.mrf.mxu0
        %v4476 = vadd.f32 0.0, %v4475
        %4477 = vmatmul.f32.gmra.mxu0 %v4429
        %v4478 = vpop.f32.mrf.mxu0
        %v4479 = vadd.f32 0.0, %v4478
        %4480 = vmatmul.f32.gmra.mxu0 %v4430
        %v4481 = vpop.f32.mrf.mxu0
        %v4482 = vadd.f32 0.0, %v4481
        %4483 = vmatmul.f32.gmra.mxu0 %v4431
        %v4484 = vpop.f32.mrf.mxu0
        %v4485 = vadd.f32 0.0, %v4484
        %4486 = vmatmul.f32.gmra.mxu0 %v4432
        %v4487 = vpop.f32.mrf.mxu0
        %v4488 = vadd.f32 0.0, %v4487
        %4489 = vmatmul.f32.gmra.mxu0 %v4433
        %v4490 = vpop.f32.mrf.mxu0
        %v4491 = vadd.f32 0.0, %v4490
        %4492 = vmatmul.f32.gmra.mxu0 %v4434
        %v4493 = vpop.f32.mrf.mxu0
        %v4494 = vadd.f32 0.0, %v4493
        %4495 = vmatmul.f32.gmra.mxu0 %v4435
        %v4496 = vpop.f32.mrf.mxu0
        %v4497 = vadd.f32 0.0, %v4496
        %4498 = vmatmul.f32.gmra.mxu0 %v4436
        %v4499 = vpop.f32.mrf.mxu0
        %v4500 = vadd.f32 0.0, %v4499
        %4501 = vdwg.mxu0
        %v4502 = vadd.f32 %v4389, %v4455
        %v4503 = vadd.f32 %v4390, %v4458
        %v4504 = vadd.f32 %v4391, %v4461
        %v4505 = vadd.f32 %v4392, %v4464
        %v4506 = vadd.f32 %v4393, %v4467
        %v4507 = vadd.f32 %v4394, %v4470
        %v4508 = vadd.f32 %v4395, %v4473
        %v4509 = vadd.f32 %v4396, %v4476
        %v4510 = vadd.f32 %v4397, %v4479
        %v4511 = vadd.f32 %v4398, %v4482
        %v4512 = vadd.f32 %v4399, %v4485
        %v4513 = vadd.f32 %v4400, %v4488
        %v4514 = vadd.f32 %v4401, %v4491
        %v4515 = vadd.f32 %v4402, %v4494
        %v4516 = vadd.f32 %v4403, %v4497
        %v4517 = vadd.f32 %v4404, %v4500
        %4518 = vst [vmem:[%s4388] sm:$0xff] %v4502
        %4519 = vst [vmem:[%s4388 + $0x8] sm:$0xff] %v4503
        %4520 = vst [vmem:[%s4388 + $0x10] sm:$0xff] %v4504
        %4521 = vst [vmem:[%s4388 + $0x18] sm:$0xff] %v4505
        %4522 = vst [vmem:[%s4388 + $0x20] sm:$0xff] %v4506
        %4523 = vst [vmem:[%s4388 + $0x28] sm:$0xff] %v4507
        %4524 = vst [vmem:[%s4388 + $0x30] sm:$0xff] %v4508
        %4525 = vst [vmem:[%s4388 + $0x38] sm:$0xff] %v4509
        %4526 = vst [vmem:[%s4388 + $0x40] sm:$0xff] %v4510
        %4527 = vst [vmem:[%s4388 + $0x48] sm:$0xff] %v4511
        %4528 = vst [vmem:[%s4388 + $0x50] sm:$0xff] %v4512
        %4529 = vst [vmem:[%s4388 + $0x58] sm:$0xff] %v4513
        %4530 = vst [vmem:[%s4388 + $0x60] sm:$0xff] %v4514
        %4531 = vst [vmem:[%s4388 + $0x68] sm:$0xff] %v4515
        %4532 = vst [vmem:[%s4388 + $0x70] sm:$0xff] %v4516
        %4533 = vst [vmem:[%s4388 + $0x78] sm:$0xff] %v4517
        %s4534 = sand.u32 %s239, 1
        %s4535 = scalar_lea.sflag [#allocation3], %s4534
        %s4536 = sand.u32 %s239, 1
        %s4537 = smul.addr %s4536, 512
        %s4538 = scalar_lea.vmem [#allocation2], %s4537
        // Predicated region
        $region61: #{tpu_custom_call.1} parent=55 // pred_check
          %p4539 = pneg %p249
        $region62: #{tpu_custom_call.1} parent=55 // pred_check_branch
          %4541 = sbr.rel (%p4539) target = $region64
        $region63: #{tpu_custom_call.1} parent=55 // pred_region
          %4543 = vsyncadd %s4535, 0
          %s4544 = smul.addr %s27, 64
          %s4545 = smul.addr %s4544, 8
          %s4546 = scalar_lea.hbm %s9, %s4545
          %s4547 = sshll.u32 %s4538, 4
          %s4548 = int_to_ptr.vmem [resolvable:$true] %s4547
          %s4549 = sshll.u32 %s4546, 4
          %s4550 = int_to_ptr.hbm [resolvable:$true] %s4549
          %4555 = dma.vmem_to_hbm [thread:$0]  %s4548, 8192, %s4550, %s4535, 128, 128, 8
        $region64: #{tpu_custom_call.1} parent=55 // pred_fallthru
          _
      $region56: #{tpu_custom_call.1} parent=5 // pred_fallthru
        _
      %p4556 = scmp.le.s32.totalorder 2, %s18
      // Predicated region
      $region65: #{tpu_custom_call.1} parent=5 // pred_check
        %p4557 = pneg %p4556
      $region66: #{tpu_custom_call.1} parent=5 // pred_check_branch
        %4559 = sbr.rel (%p4557) target = $region68
      $region67: #{tpu_custom_call.1} parent=5 // pred_region
        %s4560 = ssub.s32 %s18, 2
        // Predicated region
        $region69: #{tpu_custom_call.1} parent=67 // pred_check
          %p4561 = pneg %p255
        $region70: #{tpu_custom_call.1} parent=67 // pred_check_branch
          %4563 = sbr.rel (%p4561) target = $region72
        $region71: #{tpu_custom_call.1} parent=67 // pred_region
          %s4564 = sand.u32 %s240, 1
          %s4565 = scalar_lea.sflag [#allocation3], %s4564
          %s4566 = sand.u32 %s240, 1
          %s4567 = smul.addr %s4566, 512
          %s4568 = scalar_lea.vmem [#allocation2], %s4567
          %4570 = dma.done %s4565, 8192
        $region72: #{tpu_custom_call.1} parent=67 // pred_fallthru
          _
      $region68: #{tpu_custom_call.1} parent=5 // pred_fallthru
        _
    $region6: #{tpu_custom_call.1} parent=1 // loop_footer
      %s22 = sadd.s32 1, %s18
    $region7: #{tpu_custom_call.1} parent=1 // loop_footer_branch
      %17 = sbr.rel target = $region3
    $region8: #{tpu_custom_call.1} parent=1 // loop_exit
      _
    %4571 = vsyncpa [#allocation3], 1
    %s4572 = scalar_lea.sflag [#allocation3], 1
    %4573 = vsyncpa %s4572, 1

</llo_original>
